<compile_context>
chip_gen: v7x
topology: tpu7x:2x2x1
jax: 0.10.0
libtpu: 0.0.40
codegen_flags: <defaults>
</compile_context>

<pallas_src>
import functools
from math import ceil

import jax
import jax.numpy as jnp
from jax import lax
from jax.experimental import pallas as pl
from jax.experimental.pallas import tpu as pltpu

LANE = 128


# ----------------------------------------------------------------------------
# fused forward kernel
# ----------------------------------------------------------------------------

def _fused_diffpool_kernel(*refs, num_layers, bias_widths):
    """Whole DiffPool forward in one kernel invocation.

    ref order:
        x, adj, bias_pack,
        [ w x 3 for pool_i, w x 3 for embed_i ] for each level i,
        w x 3 for the final GCN, lin1_w, lin2_w (bf16),
        out_logits_ref (VMEM, lane-padded), losses_ref (SMEM, shape (2,))
    """
    in_refs = refs[:-2]
    out_ref, losses_ref = refs[-2], refs[-1]

    it = iter(in_refs)
    x = next(it)[...]            # [N, F] f32
    adj = next(it)[...]          # [N, N] f32 symmetric (kept f32 for degrees / losses)
    biases_ref = next(it)        # [NB, BPAD] f32, packed biases

    def take3():
        return [next(it) for _ in range(3)]

    level_w = [(take3(), take3()) for _ in range(num_layers)]   # (pool, embed) per level
    fin_w = take3()
    w1_ref = next(it)
    w2_ref = next(it)

    bf16 = jnp.bfloat16
    f32 = jnp.float32

    # biases are consumed in exactly the order they were packed by the wrapper
    bias_counter = [0]

    def next_bias():
        i = bias_counter[0]
        bias_counter[0] = i + 1
        return biases_ref[i:i + 1, :bias_widths[i]]              # [1, w] f32

    def mxu(a, b):
        # MXU matmul with bf16 operands, f32 accumulation
        return jnp.dot(a.astype(bf16), b.astype(bf16), preferred_element_type=f32)

    def mxu_t0(a, b):
        # a^T @ b (contract over dim 0 of both), bf16 operands, f32 accumulation
        return lax.dot_general(a.astype(bf16), b.astype(bf16),
                               (((0,), (0,)), ((), ())),
                               preferred_element_type=f32)

    def gcn(h, a_bf, inv, w_refs):
        # relu( D^{-1/2}(A+I)D^{-1/2} @ (H W) + b ), normalization applied implicitly:
        #   prop(H) = inv * (A @ (inv*H) + inv*H),  inv = rsqrt(rowsum(A) + 1)  [n, 1]
        for w_ref in w_refs:
            h = mxu(h, w_ref[...])
            ih = inv * h
            h = inv * (mxu(a_bf, ih) + ih) + next_bias()
            h = jnp.maximum(h, 0.0)
        return h

    ll_sum = jnp.zeros((1, 1), f32)
    el_sum = jnp.zeros((1, 1), f32)
    assigns = []

    for lvl in range(num_layers):
        pool_w, embed_w = level_w[lvl]
        n = adj.shape[0]

        # single f32 row-degree reduction (adjacency symmetric); +1 for the self loop
        inv = lax.rsqrt(jnp.sum(adj, axis=1, keepdims=True) + 1.0)    # [n, 1]
        a_bf = adj.astype(bf16)                                       # cast once per level

        z = gcn(x, a_bf, inv, pool_w)                                 # [n, c]  assignment logits
        xe = gcn(x, a_bf, inv, embed_w)                               # [n, h]

        # fused softmax + entropy from the logits (one exp, one log per row)
        m = jnp.max(z, axis=-1, keepdims=True)
        e = jnp.exp(z - m)
        d = jnp.sum(e, axis=-1, keepdims=True)
        s = e * pl.reciprocal(d, approx=True)                         # [n, c] f32
        log_s = (z - m) - jnp.log(d)
        el_sum = el_sum + jnp.sum(-s * log_s, keepdims=True) / float(n)
        assigns.append(s)

        # A symmetric: AS = A @ S once; then S^T(AS), S^T X, and tr = sum(S * AS).
        as_ = mxu(a_bf, s)                                            # [n, c]
        new_adj = mxu_t0(s, as_)                                      # [c, c] = S^T A S
        x = mxu_t0(s, xe)                                             # [c, h] = S^T X
        sts = mxu_t0(s, s)                                            # [c, c] = S^T S

        # link loss via the trace identity (never materializes the [n, n] S S^T):
        #   ||A - S S^T||_F^2 = (||A||_F^2 + ||S^T S||_F^2) - 2 tr(S^T A S)
        tr = jnp.sum(s * as_, keepdims=True)                          # (1, 1) f32
        fro2 = (jnp.sum(adj * adj, keepdims=True)
                + jnp.sum(sts * sts, keepdims=True)
                - 2.0 * tr)
        ll_sum = ll_sum + jnp.sqrt(jnp.maximum(fro2, 0.0)) / float(n * n)

        adj = new_adj

    # final embedding GCN on the coarsest graph
    inv = lax.rsqrt(jnp.sum(adj, axis=1, keepdims=True) + 1.0)
    h = gcn(x, adj.astype(bf16), inv, fin_w)

    # unpool -- eval mode uses plain softmax over clusters; the softmaxed S is reused.
    # TODO(synk): gumbel_softmax / tau annealing is a training-only path, not implemented.
    for lvl in range(num_layers - 1, -1, -1):
        h = mxu(assigns[lvl], h)

    # heads (dropout is identity in eval mode); output is lane-padded -> unmasked store
    h = jnp.maximum(mxu(h, w1_ref[...]) + next_bias(), 0.0)
    out_ref[...] = mxu(h, w2_ref[...]) + next_bias()

    # scalar losses -> SMEM output (avoids lane-sparse 1x1 VMEM stores)
    losses_ref[0] = jnp.sum(ll_sum)
    losses_ref[1] = jnp.sum(el_sum)


# ----------------------------------------------------------------------------
# wrapper: one pallas_call for the whole forward
# ----------------------------------------------------------------------------

def _round_up(v, m):
    return ((v + m - 1) // m) * m


def diffpool_forward(x, adj, params, cfg):
    num_layers = cfg["num_layers"]
    num_classes = cfg["num_classes"]
    n = x.shape[0]

    cpad = max(LANE, _round_up(num_classes, LANE))   # lane-dense logits width

    weights = []
    bias_rows = []
    bias_widths = []

    def add_gcn(layers):
        for (w, b) in layers:
            weights.append(w.astype(jnp.bfloat16))   # bf16 weights: MXU-native, half the DMA
            bias_rows.append(b)
            bias_widths.append(b.shape[0])

    for i in range(num_layers):
        add_gcn(params[f"pool{i}"])
        add_gcn(params[f"embed{i}"])
    add_gcn(params["fin"])

    w1, b1 = params["lin1"]
    w2, b2 = params["lin2"]
    # pad lin2 to a lane-dense (multiple of 128) output; sliced back after the call
    w2p = jnp.zeros((w2.shape[0], cpad), jnp.float32).at[:, :num_classes].set(w2)
    b2p = jnp.zeros((cpad,), jnp.float32).at[:num_classes].set(b2)

    weights.append(w1.astype(jnp.bfloat16))
    bias_rows.append(b1)
    bias_widths.append(b1.shape[0])
    weights.append(w2p.astype(jnp.bfloat16))
    bias_rows.append(b2p)
    bias_widths.append(cpad)

    # pack all biases into a single [NB, BPAD] f32 VMEM input (one DMA descriptor)
    bpad = max(LANE, max(_round_up(w, LANE) for w in bias_widths))
    bias_pack = jnp.zeros((len(bias_rows), bpad), jnp.float32)
    for i, b in enumerate(bias_rows):
        bias_pack = bias_pack.at[i, :b.shape[0]].set(b)

    flat = [x, adj, bias_pack] + weights

    # TODO(synk): batching several graphs along a leading "parallel" grid axis (and
    # row-tiling adj for very large N on v7x's 64 MiB VMEM) would engage the second
    # TensorCore; the reference module forward is single-graph so it is not added here.
    kernel = functools.partial(_fused_diffpool_kernel,
                               num_layers=num_layers,
                               bias_widths=tuple(bias_widths))
    logits_padded, losses = pl.pallas_call(
        kernel,
        in_specs=[pl.BlockSpec(memory_space=pltpu.MemorySpace.VMEM)] * len(flat),
        out_specs=(pl.BlockSpec(memory_space=pltpu.MemorySpace.VMEM),
                   pl.BlockSpec(memory_space=pltpu.MemorySpace.SMEM)),
        out_shape=(jax.ShapeDtypeStruct((n, cpad), jnp.float32),
                   jax.ShapeDtypeStruct((2,), jnp.float32)),
        compiler_params=pltpu.CompilerParams(vmem_limit_bytes=64 * 1024 * 1024),
    )(*flat)
    return logits_padded[:, :num_classes], losses[0], losses[1]


# ----------------------------------------------------------------------------
# deterministic parameter construction (mirrors DiffPool.__init__)
# ----------------------------------------------------------------------------

def _glorot(key, shape):
    fan_in, fan_out = shape
    lim = (6.0 / (fan_in + fan_out)) ** 0.5
    return jax.random.uniform(key, shape, jnp.float32, -lim, lim)


def _make_gcn_params(key, in_c, hidden_c, out_c):
    dims = [(in_c, hidden_c), (hidden_c, hidden_c), (hidden_c, out_c)]
    layers = []
    for d in dims:
        key, kw = jax.random.split(key)
        layers.append((_glorot(kw, d), jnp.zeros((d[1],), jnp.float32)))
    return key, layers


def make_params(key, cfg):
    params = {}
    cur_features = cfg["num_features"]
    prev_num_nodes = cfg["num_nodes"]
    final_nodes = ceil(cfg["num_nodes"] * cfg["density"])
    for layer in range(1, cfg["num_layers"] + 1):
        if layer < cfg["num_layers"]:
            cur_num_nodes = max(ceil(prev_num_nodes * cfg["coarse_ratio"]), final_nodes)
        else:
            cur_num_nodes = final_nodes
        key, params[f"pool{layer - 1}"] = _make_gcn_params(
            key, cur_features, cfg["hidden_dim"], cur_num_nodes)
        key, params[f"embed{layer - 1}"] = _make_gcn_params(
            key, cur_features, cfg["hidden_dim"], cfg["hidden_dim"])
        cur_features = cfg["hidden_dim"]
        prev_num_nodes = cur_num_nodes
    key, params["fin"] = _make_gcn_params(
        key, cfg["hidden_dim"], cfg["hidden_dim"], cfg["hidden_dim"])
    key, k1, k2 = jax.random.split(key, 3)
    params["lin1"] = (_glorot(k1, (cfg["hidden_dim"], cfg["hidden_dim"])),
                      jnp.zeros((cfg["hidden_dim"],), jnp.float32))
    params["lin2"] = (_glorot(k2, (cfg["hidden_dim"], cfg["num_classes"])),
                      jnp.zeros((cfg["num_classes"],), jnp.float32))
    return params


# ----------------------------------------------------------------------------
# main
# ----------------------------------------------------------------------------

if __name__ == "__main__":
    cfg = dict(num_features=8, num_nodes=16, hidden_dim=32, num_layers=2,
               density=0.25, coarse_ratio=0.5, num_classes=3, epochs=100)

    key = jax.random.PRNGKey(0)
    kx, ka, kp = jax.random.split(key, 3)

    params = make_params(kp, cfg)

    # deterministic inputs: node features + symmetric 0/1 adjacency (no self loops)
    x = jax.random.normal(kx, (cfg["num_nodes"], cfg["num_features"]), jnp.float32)
    a = (jax.random.uniform(ka, (cfg["num_nodes"], cfg["num_nodes"])) < 0.3).astype(jnp.float32)
    adj = jnp.maximum(a, a.T) * (1.0 - jnp.eye(cfg["num_nodes"], dtype=jnp.float32))

    out, link_loss, ent_loss = diffpool_forward(x, adj, params, cfg)
    jax.block_until_ready((out, link_loss, ent_loss))

    assert out.shape == (cfg["num_nodes"], cfg["num_classes"])
    assert jnp.isfinite(out).all()
    assert jnp.isfinite(link_loss) and jnp.isfinite(ent_loss)
    print("KERNEL_OK")
</pallas_src>

<mosaic_0001>
module attributes {stable_mosaic.version = 11 : i64} {
  func.func @_fused_diffpool_kernel(%arg0: memref<16x8xf32, #tpu.memory_space<vmem>>, %arg1: memref<16x16xf32, #tpu.memory_space<vmem>>, %arg2: memref<17x128xf32, #tpu.memory_space<vmem>>, %arg3: memref<8x32xbf16, #tpu.memory_space<vmem>>, %arg4: memref<32x32xbf16, #tpu.memory_space<vmem>>, %arg5: memref<32x8xbf16, #tpu.memory_space<vmem>>, %arg6: memref<8x32xbf16, #tpu.memory_space<vmem>>, %arg7: memref<32x32xbf16, #tpu.memory_space<vmem>>, %arg8: memref<32x32xbf16, #tpu.memory_space<vmem>>, %arg9: memref<32x32xbf16, #tpu.memory_space<vmem>>, %arg10: memref<32x32xbf16, #tpu.memory_space<vmem>>, %arg11: memref<32x4xbf16, #tpu.memory_space<vmem>>, %arg12: memref<32x32xbf16, #tpu.memory_space<vmem>>, %arg13: memref<32x32xbf16, #tpu.memory_space<vmem>>, %arg14: memref<32x32xbf16, #tpu.memory_space<vmem>>, %arg15: memref<32x32xbf16, #tpu.memory_space<vmem>>, %arg16: memref<32x32xbf16, #tpu.memory_space<vmem>>, %arg17: memref<32x32xbf16, #tpu.memory_space<vmem>>, %arg18: memref<32x32xbf16, #tpu.memory_space<vmem>>, %arg19: memref<32x128xbf16, #tpu.memory_space<vmem>>, %arg20: memref<16x128xf32, #tpu.memory_space<vmem>>, %arg21: memref<2xf32, #tpu.memory_space<smem>>) attributes {dimension_semantics = [], scalar_prefetch = 0 : i64, scratch_operands = 0 : i64, tpu.core_type = #tpu.core_type<tc>} {
    %c0 = arith.constant 0 : index
    %c0_0 = arith.constant 0 : index
    %0 = vector.load %arg0[%c0, %c0_0] : memref<16x8xf32, #tpu.memory_space<vmem>>, vector<16x8xf32>
    %c0_1 = arith.constant 0 : index
    %c0_2 = arith.constant 0 : index
    %1 = vector.load %arg1[%c0_1, %c0_2] : memref<16x16xf32, #tpu.memory_space<vmem>>, vector<16x16xf32>
    %cst = arith.constant 0.000000e+00 : f32
    %2 = vector.broadcast %cst : f32 to vector<1x1xf32>
    %cst_3 = arith.constant 0.000000e+00 : f32
    %3 = vector.broadcast %cst_3 : f32 to vector<1x1xf32>
    %cst_4 = arith.constant dense<0.000000e+00> : vector<16xf32>
    %4 = vector.multi_reduction <add>, %1, %cst_4 [1] : vector<16x16xf32> to vector<16xf32>
    %5 = vector.shape_cast %4 : vector<16xf32> to vector<16x1xf32>
    %cst_5 = arith.constant 1.000000e+00 : f32
    %6 = vector.broadcast %cst_5 : f32 to vector<16x1xf32>
    %7 = arith.addf %5, %6 : vector<16x1xf32>
    %8 = math.rsqrt %7 : vector<16x1xf32>
    %9 = arith.truncf %1 : vector<16x16xf32> to vector<16x16xbf16>
    %c0_6 = arith.constant 0 : index
    %c0_7 = arith.constant 0 : index
    %10 = vector.load %arg3[%c0_6, %c0_7] : memref<8x32xbf16, #tpu.memory_space<vmem>>, vector<8x32xbf16>
    %11 = arith.truncf %0 : vector<16x8xf32> to vector<16x8xbf16>
    %cst_8 = arith.constant dense<0.000000e+00> : vector<16x32xf32>
    %12 = tpu.matmul %11, %10, %cst_8 {dimension_numbers = #tpu.dot_dimension_numbers<[1], [0], [0], [1], [0, 0, 1, 1], [], []>} : vector<16x8xbf16>, vector<8x32xbf16>, vector<16x32xf32> -> vector<16x32xf32>
    %13 = vector.broadcast %8 : vector<16x1xf32> to vector<16x32xf32>
    %14 = arith.mulf %13, %12 : vector<16x32xf32>
    %15 = arith.truncf %14 : vector<16x32xf32> to vector<16x32xbf16>
    %cst_9 = arith.constant dense<0.000000e+00> : vector<16x32xf32>
    %16 = tpu.matmul %9, %15, %cst_9 {dimension_numbers = #tpu.dot_dimension_numbers<[1], [0], [0], [1], [0, 0, 1, 1], [], []>} : vector<16x16xbf16>, vector<16x32xbf16>, vector<16x32xf32> -> vector<16x32xf32>
    %17 = arith.addf %16, %14 : vector<16x32xf32>
    %18 = vector.broadcast %8 : vector<16x1xf32> to vector<16x32xf32>
    %19 = arith.mulf %18, %17 : vector<16x32xf32>
    %c0_10 = arith.constant 0 : index
    %c0_11 = arith.constant 0 : index
    %20 = vector.load %arg2[%c0_10, %c0_11] : memref<17x128xf32, #tpu.memory_space<vmem>>, vector<1x32xf32>
    %21 = vector.broadcast %20 : vector<1x32xf32> to vector<16x32xf32>
    %22 = arith.addf %19, %21 : vector<16x32xf32>
    %cst_12 = arith.constant 0.000000e+00 : f32
    %23 = vector.broadcast %cst_12 : f32 to vector<16x32xf32>
    %24 = arith.maximumf %22, %23 : vector<16x32xf32>
    %c0_13 = arith.constant 0 : index
    %c0_14 = arith.constant 0 : index
    %25 = vector.load %arg4[%c0_13, %c0_14] : memref<32x32xbf16, #tpu.memory_space<vmem>>, vector<32x32xbf16>
    %26 = arith.truncf %24 : vector<16x32xf32> to vector<16x32xbf16>
    %cst_15 = arith.constant dense<0.000000e+00> : vector<16x32xf32>
    %27 = tpu.matmul %26, %25, %cst_15 {dimension_numbers = #tpu.dot_dimension_numbers<[1], [0], [0], [1], [0, 0, 1, 1], [], []>} : vector<16x32xbf16>, vector<32x32xbf16>, vector<16x32xf32> -> vector<16x32xf32>
    %28 = vector.broadcast %8 : vector<16x1xf32> to vector<16x32xf32>
    %29 = arith.mulf %28, %27 : vector<16x32xf32>
    %30 = arith.truncf %29 : vector<16x32xf32> to vector<16x32xbf16>
    %cst_16 = arith.constant dense<0.000000e+00> : vector<16x32xf32>
    %31 = tpu.matmul %9, %30, %cst_16 {dimension_numbers = #tpu.dot_dimension_numbers<[1], [0], [0], [1], [0, 0, 1, 1], [], []>} : vector<16x16xbf16>, vector<16x32xbf16>, vector<16x32xf32> -> vector<16x32xf32>
    %32 = arith.addf %31, %29 : vector<16x32xf32>
    %33 = vector.broadcast %8 : vector<16x1xf32> to vector<16x32xf32>
    %34 = arith.mulf %33, %32 : vector<16x32xf32>
    %c1 = arith.constant 1 : index
    %c0_17 = arith.constant 0 : index
    %35 = vector.load %arg2[%c1, %c0_17] : memref<17x128xf32, #tpu.memory_space<vmem>>, vector<1x32xf32>
    %36 = vector.broadcast %35 : vector<1x32xf32> to vector<16x32xf32>
    %37 = arith.addf %34, %36 : vector<16x32xf32>
    %cst_18 = arith.constant 0.000000e+00 : f32
    %38 = vector.broadcast %cst_18 : f32 to vector<16x32xf32>
    %39 = arith.maximumf %37, %38 : vector<16x32xf32>
    %c0_19 = arith.constant 0 : index
    %c0_20 = arith.constant 0 : index
    %40 = vector.load %arg5[%c0_19, %c0_20] : memref<32x8xbf16, #tpu.memory_space<vmem>>, vector<32x8xbf16>
    %41 = arith.truncf %39 : vector<16x32xf32> to vector<16x32xbf16>
    %cst_21 = arith.constant dense<0.000000e+00> : vector<16x8xf32>
    %42 = tpu.matmul %41, %40, %cst_21 {dimension_numbers = #tpu.dot_dimension_numbers<[1], [0], [0], [1], [0, 0, 1, 1], [], []>} : vector<16x32xbf16>, vector<32x8xbf16>, vector<16x8xf32> -> vector<16x8xf32>
    %43 = vector.broadcast %8 : vector<16x1xf32> to vector<16x8xf32>
    %44 = arith.mulf %43, %42 : vector<16x8xf32>
    %45 = arith.truncf %44 : vector<16x8xf32> to vector<16x8xbf16>
    %cst_22 = arith.constant dense<0.000000e+00> : vector<16x8xf32>
    %46 = tpu.matmul %9, %45, %cst_22 {dimension_numbers = #tpu.dot_dimension_numbers<[1], [0], [0], [1], [0, 0, 1, 1], [], []>} : vector<16x16xbf16>, vector<16x8xbf16>, vector<16x8xf32> -> vector<16x8xf32>
    %47 = arith.addf %46, %44 : vector<16x8xf32>
    %48 = vector.broadcast %8 : vector<16x1xf32> to vector<16x8xf32>
    %49 = arith.mulf %48, %47 : vector<16x8xf32>
    %c2 = arith.constant 2 : index
    %c0_23 = arith.constant 0 : index
    %50 = vector.load %arg2[%c2, %c0_23] : memref<17x128xf32, #tpu.memory_space<vmem>>, vector<1x8xf32>
    %51 = vector.broadcast %50 : vector<1x8xf32> to vector<16x8xf32>
    %52 = arith.addf %49, %51 : vector<16x8xf32>
    %cst_24 = arith.constant 0.000000e+00 : f32
    %53 = vector.broadcast %cst_24 : f32 to vector<16x8xf32>
    %54 = arith.maximumf %52, %53 : vector<16x8xf32>
    %c0_25 = arith.constant 0 : index
    %c0_26 = arith.constant 0 : index
    %55 = vector.load %arg6[%c0_25, %c0_26] : memref<8x32xbf16, #tpu.memory_space<vmem>>, vector<8x32xbf16>
    %56 = arith.truncf %0 : vector<16x8xf32> to vector<16x8xbf16>
    %cst_27 = arith.constant dense<0.000000e+00> : vector<16x32xf32>
    %57 = tpu.matmul %56, %55, %cst_27 {dimension_numbers = #tpu.dot_dimension_numbers<[1], [0], [0], [1], [0, 0, 1, 1], [], []>} : vector<16x8xbf16>, vector<8x32xbf16>, vector<16x32xf32> -> vector<16x32xf32>
    %58 = vector.broadcast %8 : vector<16x1xf32> to vector<16x32xf32>
    %59 = arith.mulf %58, %57 : vector<16x32xf32>
    %60 = arith.truncf %59 : vector<16x32xf32> to vector<16x32xbf16>
    %cst_28 = arith.constant dense<0.000000e+00> : vector<16x32xf32>
    %61 = tpu.matmul %9, %60, %cst_28 {dimension_numbers = #tpu.dot_dimension_numbers<[1], [0], [0], [1], [0, 0, 1, 1], [], []>} : vector<16x16xbf16>, vector<16x32xbf16>, vector<16x32xf32> -> vector<16x32xf32>
    %62 = arith.addf %61, %59 : vector<16x32xf32>
    %63 = vector.broadcast %8 : vector<16x1xf32> to vector<16x32xf32>
    %64 = arith.mulf %63, %62 : vector<16x32xf32>
    %c3 = arith.constant 3 : index
    %c0_29 = arith.constant 0 : index
    %65 = vector.load %arg2[%c3, %c0_29] : memref<17x128xf32, #tpu.memory_space<vmem>>, vector<1x32xf32>
    %66 = vector.broadcast %65 : vector<1x32xf32> to vector<16x32xf32>
    %67 = arith.addf %64, %66 : vector<16x32xf32>
    %cst_30 = arith.constant 0.000000e+00 : f32
    %68 = vector.broadcast %cst_30 : f32 to vector<16x32xf32>
    %69 = arith.maximumf %67, %68 : vector<16x32xf32>
    %c0_31 = arith.constant 0 : index
    %c0_32 = arith.constant 0 : index
    %70 = vector.load %arg7[%c0_31, %c0_32] : memref<32x32xbf16, #tpu.memory_space<vmem>>, vector<32x32xbf16>
    %71 = arith.truncf %69 : vector<16x32xf32> to vector<16x32xbf16>
    %cst_33 = arith.constant dense<0.000000e+00> : vector<16x32xf32>
    %72 = tpu.matmul %71, %70, %cst_33 {dimension_numbers = #tpu.dot_dimension_numbers<[1], [0], [0], [1], [0, 0, 1, 1], [], []>} : vector<16x32xbf16>, vector<32x32xbf16>, vector<16x32xf32> -> vector<16x32xf32>
    %73 = vector.broadcast %8 : vector<16x1xf32> to vector<16x32xf32>
    %74 = arith.mulf %73, %72 : vector<16x32xf32>
    %75 = arith.truncf %74 : vector<16x32xf32> to vector<16x32xbf16>
    %cst_34 = arith.constant dense<0.000000e+00> : vector<16x32xf32>
    %76 = tpu.matmul %9, %75, %cst_34 {dimension_numbers = #tpu.dot_dimension_numbers<[1], [0], [0], [1], [0, 0, 1, 1], [], []>} : vector<16x16xbf16>, vector<16x32xbf16>, vector<16x32xf32> -> vector<16x32xf32>
    %77 = arith.addf %76, %74 : vector<16x32xf32>
    %78 = vector.broadcast %8 : vector<16x1xf32> to vector<16x32xf32>
    %79 = arith.mulf %78, %77 : vector<16x32xf32>
    %c4 = arith.constant 4 : index
    %c0_35 = arith.constant 0 : index
    %80 = vector.load %arg2[%c4, %c0_35] : memref<17x128xf32, #tpu.memory_space<vmem>>, vector<1x32xf32>
    %81 = vector.broadcast %80 : vector<1x32xf32> to vector<16x32xf32>
    %82 = arith.addf %79, %81 : vector<16x32xf32>
    %cst_36 = arith.constant 0.000000e+00 : f32
    %83 = vector.broadcast %cst_36 : f32 to vector<16x32xf32>
    %84 = arith.maximumf %82, %83 : vector<16x32xf32>
    %c0_37 = arith.constant 0 : index
    %c0_38 = arith.constant 0 : index
    %85 = vector.load %arg8[%c0_37, %c0_38] : memref<32x32xbf16, #tpu.memory_space<vmem>>, vector<32x32xbf16>
    %86 = arith.truncf %84 : vector<16x32xf32> to vector<16x32xbf16>
    %cst_39 = arith.constant dense<0.000000e+00> : vector<16x32xf32>
    %87 = tpu.matmul %86, %85, %cst_39 {dimension_numbers = #tpu.dot_dimension_numbers<[1], [0], [0], [1], [0, 0, 1, 1], [], []>} : vector<16x32xbf16>, vector<32x32xbf16>, vector<16x32xf32> -> vector<16x32xf32>
    %88 = vector.broadcast %8 : vector<16x1xf32> to vector<16x32xf32>
    %89 = arith.mulf %88, %87 : vector<16x32xf32>
    %90 = arith.truncf %89 : vector<16x32xf32> to vector<16x32xbf16>
    %cst_40 = arith.constant dense<0.000000e+00> : vector<16x32xf32>
    %91 = tpu.matmul %9, %90, %cst_40 {dimension_numbers = #tpu.dot_dimension_numbers<[1], [0], [0], [1], [0, 0, 1, 1], [], []>} : vector<16x16xbf16>, vector<16x32xbf16>, vector<16x32xf32> -> vector<16x32xf32>
    %92 = arith.addf %91, %89 : vector<16x32xf32>
    %93 = vector.broadcast %8 : vector<16x1xf32> to vector<16x32xf32>
    %94 = arith.mulf %93, %92 : vector<16x32xf32>
    %c5 = arith.constant 5 : index
    %c0_41 = arith.constant 0 : index
    %95 = vector.load %arg2[%c5, %c0_41] : memref<17x128xf32, #tpu.memory_space<vmem>>, vector<1x32xf32>
    %96 = vector.broadcast %95 : vector<1x32xf32> to vector<16x32xf32>
    %97 = arith.addf %94, %96 : vector<16x32xf32>
    %cst_42 = arith.constant 0.000000e+00 : f32
    %98 = vector.broadcast %cst_42 : f32 to vector<16x32xf32>
    %99 = arith.maximumf %97, %98 : vector<16x32xf32>
    %cst_43 = arith.constant dense<0xFF800000> : vector<16xf32>
    %100 = vector.multi_reduction <maximumf>, %54, %cst_43 [1] : vector<16x8xf32> to vector<16xf32>
    %101 = vector.shape_cast %100 : vector<16xf32> to vector<16x1xf32>
    %102 = vector.broadcast %101 : vector<16x1xf32> to vector<16x8xf32>
    %103 = arith.subf %54, %102 : vector<16x8xf32>
    %104 = math.exp %103 : vector<16x8xf32>
    %cst_44 = arith.constant dense<0.000000e+00> : vector<16xf32>
    %105 = vector.multi_reduction <add>, %104, %cst_44 [1] : vector<16x8xf32> to vector<16xf32>
    %106 = vector.shape_cast %105 : vector<16xf32> to vector<16x1xf32>
    %107 = tpu.reciprocal %106 {approx = true} : vector<16x1xf32> -> vector<16x1xf32>
    %108 = vector.broadcast %107 : vector<16x1xf32> to vector<16x8xf32>
    %109 = arith.mulf %104, %108 : vector<16x8xf32>
    %110 = vector.broadcast %101 : vector<16x1xf32> to vector<16x8xf32>
    %111 = arith.subf %54, %110 : vector<16x8xf32>
    %112 = math.log %106 : vector<16x1xf32>
    %113 = vector.broadcast %112 : vector<16x1xf32> to vector<16x8xf32>
    %114 = arith.subf %111, %113 : vector<16x8xf32>
    %cst_45 = arith.constant 0.000000e+00 : f32
    %115 = vector.broadcast %cst_45 : f32 to vector<16x8xf32>
    %116 = arith.subf %115, %109 : vector<16x8xf32>
    %117 = arith.mulf %116, %114 : vector<16x8xf32>
    %118 = vector.shape_cast %117 : vector<16x8xf32> to vector<1x16x8xf32>
    %cst_46 = arith.constant dense<0.000000e+00> : vector<1xf32>
    %119 = vector.multi_reduction <add>, %118, %cst_46 [1, 2] : vector<1x16x8xf32> to vector<1xf32>
    %120 = vector.shape_cast %119 : vector<1xf32> to vector<1x1x1xf32>
    %121 = vector.extract %120[0, 0, 0] : f32 from vector<1x1x1xf32>
    %122 = vector.broadcast %121 : f32 to vector<1x1xf32>
    %cst_47 = arith.constant 1.600000e+01 : f32
    %123 = vector.broadcast %cst_47 : f32 to vector<1x1xf32>
    %124 = arith.divf %122, %123 : vector<1x1xf32>
    %125 = arith.addf %3, %124 : vector<1x1xf32>
    %126 = arith.truncf %109 : vector<16x8xf32> to vector<16x8xbf16>
    %cst_48 = arith.constant dense<0.000000e+00> : vector<16x8xf32>
    %127 = tpu.matmul %9, %126, %cst_48 {dimension_numbers = #tpu.dot_dimension_numbers<[1], [0], [0], [1], [0, 0, 1, 1], [], []>} : vector<16x16xbf16>, vector<16x8xbf16>, vector<16x8xf32> -> vector<16x8xf32>
    %128 = arith.truncf %109 : vector<16x8xf32> to vector<16x8xbf16>
    %129 = arith.truncf %127 : vector<16x8xf32> to vector<16x8xbf16>
    %cst_49 = arith.constant dense<0.000000e+00> : vector<8x8xf32>
    %130 = tpu.matmul %128, %129, %cst_49 {dimension_numbers = #tpu.dot_dimension_numbers<[0], [0], [1], [1], [0, 1, 1, 1], [], []>} : vector<16x8xbf16>, vector<16x8xbf16>, vector<8x8xf32> -> vector<8x8xf32>
    %131 = arith.truncf %109 : vector<16x8xf32> to vector<16x8xbf16>
    %132 = arith.truncf %99 : vector<16x32xf32> to vector<16x32xbf16>
    %cst_50 = arith.constant dense<0.000000e+00> : vector<8x32xf32>
    %133 = tpu.matmul %131, %132, %cst_50 {dimension_numbers = #tpu.dot_dimension_numbers<[0], [0], [1], [1], [0, 1, 1, 1], [], []>} : vector<16x8xbf16>, vector<16x32xbf16>, vector<8x32xf32> -> vector<8x32xf32>
    %134 = arith.truncf %109 : vector<16x8xf32> to vector<16x8xbf16>
    %135 = arith.truncf %109 : vector<16x8xf32> to vector<16x8xbf16>
    %cst_51 = arith.constant dense<0.000000e+00> : vector<8x8xf32>
    %136 = tpu.matmul %134, %135, %cst_51 {dimension_numbers = #tpu.dot_dimension_numbers<[0], [0], [1], [1], [0, 1, 1, 1], [], []>} : vector<16x8xbf16>, vector<16x8xbf16>, vector<8x8xf32> -> vector<8x8xf32>
    %137 = arith.mulf %109, %127 : vector<16x8xf32>
    %138 = vector.shape_cast %137 : vector<16x8xf32> to vector<1x16x8xf32>
    %cst_52 = arith.constant dense<0.000000e+00> : vector<1xf32>
    %139 = vector.multi_reduction <add>, %138, %cst_52 [1, 2] : vector<1x16x8xf32> to vector<1xf32>
    %140 = vector.shape_cast %139 : vector<1xf32> to vector<1x1x1xf32>
    %141 = vector.extract %140[0, 0, 0] : f32 from vector<1x1x1xf32>
    %142 = vector.broadcast %141 : f32 to vector<1x1xf32>
    %143 = arith.mulf %1, %1 : vector<16x16xf32>
    %144 = vector.shape_cast %143 : vector<16x16xf32> to vector<1x16x16xf32>
    %cst_53 = arith.constant dense<0.000000e+00> : vector<1xf32>
    %145 = vector.multi_reduction <add>, %144, %cst_53 [1, 2] : vector<1x16x16xf32> to vector<1xf32>
    %146 = vector.shape_cast %145 : vector<1xf32> to vector<1x1x1xf32>
    %147 = vector.extract %146[0, 0, 0] : f32 from vector<1x1x1xf32>
    %148 = vector.broadcast %147 : f32 to vector<1x1xf32>
    %149 = arith.mulf %136, %136 : vector<8x8xf32>
    %150 = vector.shape_cast %149 : vector<8x8xf32> to vector<1x8x8xf32>
    %cst_54 = arith.constant dense<0.000000e+00> : vector<1xf32>
    %151 = vector.multi_reduction <add>, %150, %cst_54 [1, 2] : vector<1x8x8xf32> to vector<1xf32>
    %152 = vector.shape_cast %151 : vector<1xf32> to vector<1x1x1xf32>
    %153 = vector.extract %152[0, 0, 0] : f32 from vector<1x1x1xf32>
    %154 = vector.broadcast %153 : f32 to vector<1x1xf32>
    %155 = arith.addf %148, %154 : vector<1x1xf32>
    %cst_55 = arith.constant 2.000000e+00 : f32
    %156 = vector.broadcast %cst_55 : f32 to vector<1x1xf32>
    %157 = arith.mulf %156, %142 : vector<1x1xf32>
    %158 = arith.subf %155, %157 : vector<1x1xf32>
    %cst_56 = arith.constant 0.000000e+00 : f32
    %159 = vector.broadcast %cst_56 : f32 to vector<1x1xf32>
    %160 = arith.maximumf %158, %159 : vector<1x1xf32>
    %161 = math.sqrt %160 : vector<1x1xf32>
    %cst_57 = arith.constant 2.560000e+02 : f32
    %162 = vector.broadcast %cst_57 : f32 to vector<1x1xf32>
    %163 = arith.divf %161, %162 : vector<1x1xf32>
    %164 = arith.addf %2, %163 : vector<1x1xf32>
    %cst_58 = arith.constant dense<0.000000e+00> : vector<8xf32>
    %165 = vector.multi_reduction <add>, %130, %cst_58 [1] : vector<8x8xf32> to vector<8xf32>
    %166 = vector.shape_cast %165 : vector<8xf32> to vector<8x1xf32>
    %cst_59 = arith.constant 1.000000e+00 : f32
    %167 = vector.broadcast %cst_59 : f32 to vector<8x1xf32>
    %168 = arith.addf %166, %167 : vector<8x1xf32>
    %169 = math.rsqrt %168 : vector<8x1xf32>
    %170 = arith.truncf %130 : vector<8x8xf32> to vector<8x8xbf16>
    %c0_60 = arith.constant 0 : index
    %c0_61 = arith.constant 0 : index
    %171 = vector.load %arg9[%c0_60, %c0_61] : memref<32x32xbf16, #tpu.memory_space<vmem>>, vector<32x32xbf16>
    %172 = arith.truncf %133 : vector<8x32xf32> to vector<8x32xbf16>
    %cst_62 = arith.constant dense<0.000000e+00> : vector<8x32xf32>
    %173 = tpu.matmul %172, %171, %cst_62 {dimension_numbers = #tpu.dot_dimension_numbers<[1], [0], [0], [1], [0, 0, 1, 1], [], []>} : vector<8x32xbf16>, vector<32x32xbf16>, vector<8x32xf32> -> vector<8x32xf32>
    %174 = vector.broadcast %169 : vector<8x1xf32> to vector<8x32xf32>
    %175 = arith.mulf %174, %173 : vector<8x32xf32>
    %176 = arith.truncf %175 : vector<8x32xf32> to vector<8x32xbf16>
    %cst_63 = arith.constant dense<0.000000e+00> : vector<8x32xf32>
    %177 = tpu.matmul %170, %176, %cst_63 {dimension_numbers = #tpu.dot_dimension_numbers<[1], [0], [0], [1], [0, 0, 1, 1], [], []>} : vector<8x8xbf16>, vector<8x32xbf16>, vector<8x32xf32> -> vector<8x32xf32>
    %178 = arith.addf %177, %175 : vector<8x32xf32>
    %179 = vector.broadcast %169 : vector<8x1xf32> to vector<8x32xf32>
    %180 = arith.mulf %179, %178 : vector<8x32xf32>
    %c6 = arith.constant 6 : index
    %c0_64 = arith.constant 0 : index
    %181 = vector.load %arg2[%c6, %c0_64] : memref<17x128xf32, #tpu.memory_space<vmem>>, vector<1x32xf32>
    %182 = vector.broadcast %181 : vector<1x32xf32> to vector<8x32xf32>
    %183 = arith.addf %180, %182 : vector<8x32xf32>
    %cst_65 = arith.constant 0.000000e+00 : f32
    %184 = vector.broadcast %cst_65 : f32 to vector<8x32xf32>
    %185 = arith.maximumf %183, %184 : vector<8x32xf32>
    %c0_66 = arith.constant 0 : index
    %c0_67 = arith.constant 0 : index
    %186 = vector.load %arg10[%c0_66, %c0_67] : memref<32x32xbf16, #tpu.memory_space<vmem>>, vector<32x32xbf16>
    %187 = arith.truncf %185 : vector<8x32xf32> to vector<8x32xbf16>
    %cst_68 = arith.constant dense<0.000000e+00> : vector<8x32xf32>
    %188 = tpu.matmul %187, %186, %cst_68 {dimension_numbers = #tpu.dot_dimension_numbers<[1], [0], [0], [1], [0, 0, 1, 1], [], []>} : vector<8x32xbf16>, vector<32x32xbf16>, vector<8x32xf32> -> vector<8x32xf32>
    %189 = vector.broadcast %169 : vector<8x1xf32> to vector<8x32xf32>
    %190 = arith.mulf %189, %188 : vector<8x32xf32>
    %191 = arith.truncf %190 : vector<8x32xf32> to vector<8x32xbf16>
    %cst_69 = arith.constant dense<0.000000e+00> : vector<8x32xf32>
    %192 = tpu.matmul %170, %191, %cst_69 {dimension_numbers = #tpu.dot_dimension_numbers<[1], [0], [0], [1], [0, 0, 1, 1], [], []>} : vector<8x8xbf16>, vector<8x32xbf16>, vector<8x32xf32> -> vector<8x32xf32>
    %193 = arith.addf %192, %190 : vector<8x32xf32>
    %194 = vector.broadcast %169 : vector<8x1xf32> to vector<8x32xf32>
    %195 = arith.mulf %194, %193 : vector<8x32xf32>
    %c7 = arith.constant 7 : index
    %c0_70 = arith.constant 0 : index
    %196 = vector.load %arg2[%c7, %c0_70] : memref<17x128xf32, #tpu.memory_space<vmem>>, vector<1x32xf32>
    %197 = vector.broadcast %196 : vector<1x32xf32> to vector<8x32xf32>
    %198 = arith.addf %195, %197 : vector<8x32xf32>
    %cst_71 = arith.constant 0.000000e+00 : f32
    %199 = vector.broadcast %cst_71 : f32 to vector<8x32xf32>
    %200 = arith.maximumf %198, %199 : vector<8x32xf32>
    %c0_72 = arith.constant 0 : index
    %c0_73 = arith.constant 0 : index
    %201 = vector.load %arg11[%c0_72, %c0_73] : memref<32x4xbf16, #tpu.memory_space<vmem>>, vector<32x4xbf16>
    %202 = arith.truncf %200 : vector<8x32xf32> to vector<8x32xbf16>
    %cst_74 = arith.constant dense<0.000000e+00> : vector<8x4xf32>
    %203 = tpu.matmul %202, %201, %cst_74 {dimension_numbers = #tpu.dot_dimension_numbers<[1], [0], [0], [1], [0, 0, 1, 1], [], []>} : vector<8x32xbf16>, vector<32x4xbf16>, vector<8x4xf32> -> vector<8x4xf32>
    %204 = vector.broadcast %169 : vector<8x1xf32> to vector<8x4xf32>
    %205 = arith.mulf %204, %203 : vector<8x4xf32>
    %206 = arith.truncf %205 : vector<8x4xf32> to vector<8x4xbf16>
    %cst_75 = arith.constant dense<0.000000e+00> : vector<8x4xf32>
    %207 = tpu.matmul %170, %206, %cst_75 {dimension_numbers = #tpu.dot_dimension_numbers<[1], [0], [0], [1], [0, 0, 1, 1], [], []>} : vector<8x8xbf16>, vector<8x4xbf16>, vector<8x4xf32> -> vector<8x4xf32>
    %208 = arith.addf %207, %205 : vector<8x4xf32>
    %209 = vector.broadcast %169 : vector<8x1xf32> to vector<8x4xf32>
    %210 = arith.mulf %209, %208 : vector<8x4xf32>
    %c8 = arith.constant 8 : index
    %c0_76 = arith.constant 0 : index
    %211 = vector.load %arg2[%c8, %c0_76] : memref<17x128xf32, #tpu.memory_space<vmem>>, vector<1x4xf32>
    %212 = vector.broadcast %211 : vector<1x4xf32> to vector<8x4xf32>
    %213 = arith.addf %210, %212 : vector<8x4xf32>
    %cst_77 = arith.constant 0.000000e+00 : f32
    %214 = vector.broadcast %cst_77 : f32 to vector<8x4xf32>
    %215 = arith.maximumf %213, %214 : vector<8x4xf32>
    %c0_78 = arith.constant 0 : index
    %c0_79 = arith.constant 0 : index
    %216 = vector.load %arg12[%c0_78, %c0_79] : memref<32x32xbf16, #tpu.memory_space<vmem>>, vector<32x32xbf16>
    %217 = arith.truncf %133 : vector<8x32xf32> to vector<8x32xbf16>
    %cst_80 = arith.constant dense<0.000000e+00> : vector<8x32xf32>
    %218 = tpu.matmul %217, %216, %cst_80 {dimension_numbers = #tpu.dot_dimension_numbers<[1], [0], [0], [1], [0, 0, 1, 1], [], []>} : vector<8x32xbf16>, vector<32x32xbf16>, vector<8x32xf32> -> vector<8x32xf32>
    %219 = vector.broadcast %169 : vector<8x1xf32> to vector<8x32xf32>
    %220 = arith.mulf %219, %218 : vector<8x32xf32>
    %221 = arith.truncf %220 : vector<8x32xf32> to vector<8x32xbf16>
    %cst_81 = arith.constant dense<0.000000e+00> : vector<8x32xf32>
    %222 = tpu.matmul %170, %221, %cst_81 {dimension_numbers = #tpu.dot_dimension_numbers<[1], [0], [0], [1], [0, 0, 1, 1], [], []>} : vector<8x8xbf16>, vector<8x32xbf16>, vector<8x32xf32> -> vector<8x32xf32>
    %223 = arith.addf %222, %220 : vector<8x32xf32>
    %224 = vector.broadcast %169 : vector<8x1xf32> to vector<8x32xf32>
    %225 = arith.mulf %224, %223 : vector<8x32xf32>
    %c9 = arith.constant 9 : index
    %c0_82 = arith.constant 0 : index
    %226 = vector.load %arg2[%c9, %c0_82] : memref<17x128xf32, #tpu.memory_space<vmem>>, vector<1x32xf32>
    %227 = vector.broadcast %226 : vector<1x32xf32> to vector<8x32xf32>
    %228 = arith.addf %225, %227 : vector<8x32xf32>
    %cst_83 = arith.constant 0.000000e+00 : f32
    %229 = vector.broadcast %cst_83 : f32 to vector<8x32xf32>
    %230 = arith.maximumf %228, %229 : vector<8x32xf32>
    %c0_84 = arith.constant 0 : index
    %c0_85 = arith.constant 0 : index
    %231 = vector.load %arg13[%c0_84, %c0_85] : memref<32x32xbf16, #tpu.memory_space<vmem>>, vector<32x32xbf16>
    %232 = arith.truncf %230 : vector<8x32xf32> to vector<8x32xbf16>
    %cst_86 = arith.constant dense<0.000000e+00> : vector<8x32xf32>
    %233 = tpu.matmul %232, %231, %cst_86 {dimension_numbers = #tpu.dot_dimension_numbers<[1], [0], [0], [1], [0, 0, 1, 1], [], []>} : vector<8x32xbf16>, vector<32x32xbf16>, vector<8x32xf32> -> vector<8x32xf32>
    %234 = vector.broadcast %169 : vector<8x1xf32> to vector<8x32xf32>
    %235 = arith.mulf %234, %233 : vector<8x32xf32>
    %236 = arith.truncf %235 : vector<8x32xf32> to vector<8x32xbf16>
    %cst_87 = arith.constant dense<0.000000e+00> : vector<8x32xf32>
    %237 = tpu.matmul %170, %236, %cst_87 {dimension_numbers = #tpu.dot_dimension_numbers<[1], [0], [0], [1], [0, 0, 1, 1], [], []>} : vector<8x8xbf16>, vector<8x32xbf16>, vector<8x32xf32> -> vector<8x32xf32>
    %238 = arith.addf %237, %235 : vector<8x32xf32>
    %239 = vector.broadcast %169 : vector<8x1xf32> to vector<8x32xf32>
    %240 = arith.mulf %239, %238 : vector<8x32xf32>
    %c10 = arith.constant 10 : index
    %c0_88 = arith.constant 0 : index
    %241 = vector.load %arg2[%c10, %c0_88] : memref<17x128xf32, #tpu.memory_space<vmem>>, vector<1x32xf32>
    %242 = vector.broadcast %241 : vector<1x32xf32> to vector<8x32xf32>
    %243 = arith.addf %240, %242 : vector<8x32xf32>
    %cst_89 = arith.constant 0.000000e+00 : f32
    %244 = vector.broadcast %cst_89 : f32 to vector<8x32xf32>
    %245 = arith.maximumf %243, %244 : vector<8x32xf32>
    %c0_90 = arith.constant 0 : index
    %c0_91 = arith.constant 0 : index
    %246 = vector.load %arg14[%c0_90, %c0_91] : memref<32x32xbf16, #tpu.memory_space<vmem>>, vector<32x32xbf16>
    %247 = arith.truncf %245 : vector<8x32xf32> to vector<8x32xbf16>
    %cst_92 = arith.constant dense<0.000000e+00> : vector<8x32xf32>
    %248 = tpu.matmul %247, %246, %cst_92 {dimension_numbers = #tpu.dot_dimension_numbers<[1], [0], [0], [1], [0, 0, 1, 1], [], []>} : vector<8x32xbf16>, vector<32x32xbf16>, vector<8x32xf32> -> vector<8x32xf32>
    %249 = vector.broadcast %169 : vector<8x1xf32> to vector<8x32xf32>
    %250 = arith.mulf %249, %248 : vector<8x32xf32>
    %251 = arith.truncf %250 : vector<8x32xf32> to vector<8x32xbf16>
    %cst_93 = arith.constant dense<0.000000e+00> : vector<8x32xf32>
    %252 = tpu.matmul %170, %251, %cst_93 {dimension_numbers = #tpu.dot_dimension_numbers<[1], [0], [0], [1], [0, 0, 1, 1], [], []>} : vector<8x8xbf16>, vector<8x32xbf16>, vector<8x32xf32> -> vector<8x32xf32>
    %253 = arith.addf %252, %250 : vector<8x32xf32>
    %254 = vector.broadcast %169 : vector<8x1xf32> to vector<8x32xf32>
    %255 = arith.mulf %254, %253 : vector<8x32xf32>
    %c11 = arith.constant 11 : index
    %c0_94 = arith.constant 0 : index
    %256 = vector.load %arg2[%c11, %c0_94] : memref<17x128xf32, #tpu.memory_space<vmem>>, vector<1x32xf32>
    %257 = vector.broadcast %256 : vector<1x32xf32> to vector<8x32xf32>
    %258 = arith.addf %255, %257 : vector<8x32xf32>
    %cst_95 = arith.constant 0.000000e+00 : f32
    %259 = vector.broadcast %cst_95 : f32 to vector<8x32xf32>
    %260 = arith.maximumf %258, %259 : vector<8x32xf32>
    %cst_96 = arith.constant dense<0xFF800000> : vector<8xf32>
    %261 = vector.multi_reduction <maximumf>, %215, %cst_96 [1] : vector<8x4xf32> to vector<8xf32>
    %262 = vector.shape_cast %261 : vector<8xf32> to vector<8x1xf32>
    %263 = vector.broadcast %262 : vector<8x1xf32> to vector<8x4xf32>
    %264 = arith.subf %215, %263 : vector<8x4xf32>
    %265 = math.exp %264 : vector<8x4xf32>
    %cst_97 = arith.constant dense<0.000000e+00> : vector<8xf32>
    %266 = vector.multi_reduction <add>, %265, %cst_97 [1] : vector<8x4xf32> to vector<8xf32>
    %267 = vector.shape_cast %266 : vector<8xf32> to vector<8x1xf32>
    %268 = tpu.reciprocal %267 {approx = true} : vector<8x1xf32> -> vector<8x1xf32>
    %269 = vector.broadcast %268 : vector<8x1xf32> to vector<8x4xf32>
    %270 = arith.mulf %265, %269 : vector<8x4xf32>
    %271 = vector.broadcast %262 : vector<8x1xf32> to vector<8x4xf32>
    %272 = arith.subf %215, %271 : vector<8x4xf32>
    %273 = math.log %267 : vector<8x1xf32>
    %274 = vector.broadcast %273 : vector<8x1xf32> to vector<8x4xf32>
    %275 = arith.subf %272, %274 : vector<8x4xf32>
    %cst_98 = arith.constant 0.000000e+00 : f32
    %276 = vector.broadcast %cst_98 : f32 to vector<8x4xf32>
    %277 = arith.subf %276, %270 : vector<8x4xf32>
    %278 = arith.mulf %277, %275 : vector<8x4xf32>
    %279 = vector.shape_cast %278 : vector<8x4xf32> to vector<1x8x4xf32>
    %cst_99 = arith.constant dense<0.000000e+00> : vector<1xf32>
    %280 = vector.multi_reduction <add>, %279, %cst_99 [1, 2] : vector<1x8x4xf32> to vector<1xf32>
    %281 = vector.shape_cast %280 : vector<1xf32> to vector<1x1x1xf32>
    %282 = vector.extract %281[0, 0, 0] : f32 from vector<1x1x1xf32>
    %283 = vector.broadcast %282 : f32 to vector<1x1xf32>
    %cst_100 = arith.constant 8.000000e+00 : f32
    %284 = vector.broadcast %cst_100 : f32 to vector<1x1xf32>
    %285 = arith.divf %283, %284 : vector<1x1xf32>
    %286 = arith.addf %125, %285 : vector<1x1xf32>
    %287 = arith.truncf %270 : vector<8x4xf32> to vector<8x4xbf16>
    %cst_101 = arith.constant dense<0.000000e+00> : vector<8x4xf32>
    %288 = tpu.matmul %170, %287, %cst_101 {dimension_numbers = #tpu.dot_dimension_numbers<[1], [0], [0], [1], [0, 0, 1, 1], [], []>} : vector<8x8xbf16>, vector<8x4xbf16>, vector<8x4xf32> -> vector<8x4xf32>
    %289 = arith.truncf %270 : vector<8x4xf32> to vector<8x4xbf16>
    %290 = arith.truncf %288 : vector<8x4xf32> to vector<8x4xbf16>
    %cst_102 = arith.constant dense<0.000000e+00> : vector<4x4xf32>
    %291 = tpu.matmul %289, %290, %cst_102 {dimension_numbers = #tpu.dot_dimension_numbers<[0], [0], [1], [1], [0, 1, 1, 1], [], []>} : vector<8x4xbf16>, vector<8x4xbf16>, vector<4x4xf32> -> vector<4x4xf32>
    %292 = arith.truncf %270 : vector<8x4xf32> to vector<8x4xbf16>
    %293 = arith.truncf %260 : vector<8x32xf32> to vector<8x32xbf16>
    %cst_103 = arith.constant dense<0.000000e+00> : vector<4x32xf32>
    %294 = tpu.matmul %292, %293, %cst_103 {dimension_numbers = #tpu.dot_dimension_numbers<[0], [0], [1], [1], [0, 1, 1, 1], [], []>} : vector<8x4xbf16>, vector<8x32xbf16>, vector<4x32xf32> -> vector<4x32xf32>
    %295 = arith.truncf %270 : vector<8x4xf32> to vector<8x4xbf16>
    %296 = arith.truncf %270 : vector<8x4xf32> to vector<8x4xbf16>
    %cst_104 = arith.constant dense<0.000000e+00> : vector<4x4xf32>
    %297 = tpu.matmul %295, %296, %cst_104 {dimension_numbers = #tpu.dot_dimension_numbers<[0], [0], [1], [1], [0, 1, 1, 1], [], []>} : vector<8x4xbf16>, vector<8x4xbf16>, vector<4x4xf32> -> vector<4x4xf32>
    %298 = arith.mulf %270, %288 : vector<8x4xf32>
    %299 = vector.shape_cast %298 : vector<8x4xf32> to vector<1x8x4xf32>
    %cst_105 = arith.constant dense<0.000000e+00> : vector<1xf32>
    %300 = vector.multi_reduction <add>, %299, %cst_105 [1, 2] : vector<1x8x4xf32> to vector<1xf32>
    %301 = vector.shape_cast %300 : vector<1xf32> to vector<1x1x1xf32>
    %302 = vector.extract %301[0, 0, 0] : f32 from vector<1x1x1xf32>
    %303 = vector.broadcast %302 : f32 to vector<1x1xf32>
    %304 = arith.mulf %130, %130 : vector<8x8xf32>
    %305 = vector.shape_cast %304 : vector<8x8xf32> to vector<1x8x8xf32>
    %cst_106 = arith.constant dense<0.000000e+00> : vector<1xf32>
    %306 = vector.multi_reduction <add>, %305, %cst_106 [1, 2] : vector<1x8x8xf32> to vector<1xf32>
    %307 = vector.shape_cast %306 : vector<1xf32> to vector<1x1x1xf32>
    %308 = vector.extract %307[0, 0, 0] : f32 from vector<1x1x1xf32>
    %309 = vector.broadcast %308 : f32 to vector<1x1xf32>
    %310 = arith.mulf %297, %297 : vector<4x4xf32>
    %311 = vector.shape_cast %310 : vector<4x4xf32> to vector<1x4x4xf32>
    %cst_107 = arith.constant dense<0.000000e+00> : vector<1xf32>
    %312 = vector.multi_reduction <add>, %311, %cst_107 [1, 2] : vector<1x4x4xf32> to vector<1xf32>
    %313 = vector.shape_cast %312 : vector<1xf32> to vector<1x1x1xf32>
    %314 = vector.extract %313[0, 0, 0] : f32 from vector<1x1x1xf32>
    %315 = vector.broadcast %314 : f32 to vector<1x1xf32>
    %316 = arith.addf %309, %315 : vector<1x1xf32>
    %cst_108 = arith.constant 2.000000e+00 : f32
    %317 = vector.broadcast %cst_108 : f32 to vector<1x1xf32>
    %318 = arith.mulf %317, %303 : vector<1x1xf32>
    %319 = arith.subf %316, %318 : vector<1x1xf32>
    %cst_109 = arith.constant 0.000000e+00 : f32
    %320 = vector.broadcast %cst_109 : f32 to vector<1x1xf32>
    %321 = arith.maximumf %319, %320 : vector<1x1xf32>
    %322 = math.sqrt %321 : vector<1x1xf32>
    %cst_110 = arith.constant 6.400000e+01 : f32
    %323 = vector.broadcast %cst_110 : f32 to vector<1x1xf32>
    %324 = arith.divf %322, %323 : vector<1x1xf32>
    %325 = arith.addf %164, %324 : vector<1x1xf32>
    %cst_111 = arith.constant dense<0.000000e+00> : vector<4xf32>
    %326 = vector.multi_reduction <add>, %291, %cst_111 [1] : vector<4x4xf32> to vector<4xf32>
    %327 = vector.shape_cast %326 : vector<4xf32> to vector<4x1xf32>
    %cst_112 = arith.constant 1.000000e+00 : f32
    %328 = vector.broadcast %cst_112 : f32 to vector<4x1xf32>
    %329 = arith.addf %327, %328 : vector<4x1xf32>
    %330 = math.rsqrt %329 : vector<4x1xf32>
    %331 = arith.truncf %291 : vector<4x4xf32> to vector<4x4xbf16>
    %c0_113 = arith.constant 0 : index
    %c0_114 = arith.constant 0 : index
    %332 = vector.load %arg15[%c0_113, %c0_114] : memref<32x32xbf16, #tpu.memory_space<vmem>>, vector<32x32xbf16>
    %333 = arith.truncf %294 : vector<4x32xf32> to vector<4x32xbf16>
    %cst_115 = arith.constant dense<0.000000e+00> : vector<4x32xf32>
    %334 = tpu.matmul %333, %332, %cst_115 {dimension_numbers = #tpu.dot_dimension_numbers<[1], [0], [0], [1], [0, 0, 1, 1], [], []>} : vector<4x32xbf16>, vector<32x32xbf16>, vector<4x32xf32> -> vector<4x32xf32>
    %335 = vector.broadcast %330 : vector<4x1xf32> to vector<4x32xf32>
    %336 = arith.mulf %335, %334 : vector<4x32xf32>
    %337 = arith.truncf %336 : vector<4x32xf32> to vector<4x32xbf16>
    %cst_116 = arith.constant dense<0.000000e+00> : vector<4x32xf32>
    %338 = tpu.matmul %331, %337, %cst_116 {dimension_numbers = #tpu.dot_dimension_numbers<[1], [0], [0], [1], [0, 0, 1, 1], [], []>} : vector<4x4xbf16>, vector<4x32xbf16>, vector<4x32xf32> -> vector<4x32xf32>
    %339 = arith.addf %338, %336 : vector<4x32xf32>
    %340 = vector.broadcast %330 : vector<4x1xf32> to vector<4x32xf32>
    %341 = arith.mulf %340, %339 : vector<4x32xf32>
    %c12 = arith.constant 12 : index
    %c0_117 = arith.constant 0 : index
    %342 = vector.load %arg2[%c12, %c0_117] : memref<17x128xf32, #tpu.memory_space<vmem>>, vector<1x32xf32>
    %343 = vector.broadcast %342 : vector<1x32xf32> to vector<4x32xf32>
    %344 = arith.addf %341, %343 : vector<4x32xf32>
    %cst_118 = arith.constant 0.000000e+00 : f32
    %345 = vector.broadcast %cst_118 : f32 to vector<4x32xf32>
    %346 = arith.maximumf %344, %345 : vector<4x32xf32>
    %c0_119 = arith.constant 0 : index
    %c0_120 = arith.constant 0 : index
    %347 = vector.load %arg16[%c0_119, %c0_120] : memref<32x32xbf16, #tpu.memory_space<vmem>>, vector<32x32xbf16>
    %348 = arith.truncf %346 : vector<4x32xf32> to vector<4x32xbf16>
    %cst_121 = arith.constant dense<0.000000e+00> : vector<4x32xf32>
    %349 = tpu.matmul %348, %347, %cst_121 {dimension_numbers = #tpu.dot_dimension_numbers<[1], [0], [0], [1], [0, 0, 1, 1], [], []>} : vector<4x32xbf16>, vector<32x32xbf16>, vector<4x32xf32> -> vector<4x32xf32>
    %350 = vector.broadcast %330 : vector<4x1xf32> to vector<4x32xf32>
    %351 = arith.mulf %350, %349 : vector<4x32xf32>
    %352 = arith.truncf %351 : vector<4x32xf32> to vector<4x32xbf16>
    %cst_122 = arith.constant dense<0.000000e+00> : vector<4x32xf32>
    %353 = tpu.matmul %331, %352, %cst_122 {dimension_numbers = #tpu.dot_dimension_numbers<[1], [0], [0], [1], [0, 0, 1, 1], [], []>} : vector<4x4xbf16>, vector<4x32xbf16>, vector<4x32xf32> -> vector<4x32xf32>
    %354 = arith.addf %353, %351 : vector<4x32xf32>
    %355 = vector.broadcast %330 : vector<4x1xf32> to vector<4x32xf32>
    %356 = arith.mulf %355, %354 : vector<4x32xf32>
    %c13 = arith.constant 13 : index
    %c0_123 = arith.constant 0 : index
    %357 = vector.load %arg2[%c13, %c0_123] : memref<17x128xf32, #tpu.memory_space<vmem>>, vector<1x32xf32>
    %358 = vector.broadcast %357 : vector<1x32xf32> to vector<4x32xf32>
    %359 = arith.addf %356, %358 : vector<4x32xf32>
    %cst_124 = arith.constant 0.000000e+00 : f32
    %360 = vector.broadcast %cst_124 : f32 to vector<4x32xf32>
    %361 = arith.maximumf %359, %360 : vector<4x32xf32>
    %c0_125 = arith.constant 0 : index
    %c0_126 = arith.constant 0 : index
    %362 = vector.load %arg17[%c0_125, %c0_126] : memref<32x32xbf16, #tpu.memory_space<vmem>>, vector<32x32xbf16>
    %363 = arith.truncf %361 : vector<4x32xf32> to vector<4x32xbf16>
    %cst_127 = arith.constant dense<0.000000e+00> : vector<4x32xf32>
    %364 = tpu.matmul %363, %362, %cst_127 {dimension_numbers = #tpu.dot_dimension_numbers<[1], [0], [0], [1], [0, 0, 1, 1], [], []>} : vector<4x32xbf16>, vector<32x32xbf16>, vector<4x32xf32> -> vector<4x32xf32>
    %365 = vector.broadcast %330 : vector<4x1xf32> to vector<4x32xf32>
    %366 = arith.mulf %365, %364 : vector<4x32xf32>
    %367 = arith.truncf %366 : vector<4x32xf32> to vector<4x32xbf16>
    %cst_128 = arith.constant dense<0.000000e+00> : vector<4x32xf32>
    %368 = tpu.matmul %331, %367, %cst_128 {dimension_numbers = #tpu.dot_dimension_numbers<[1], [0], [0], [1], [0, 0, 1, 1], [], []>} : vector<4x4xbf16>, vector<4x32xbf16>, vector<4x32xf32> -> vector<4x32xf32>
    %369 = arith.addf %368, %366 : vector<4x32xf32>
    %370 = vector.broadcast %330 : vector<4x1xf32> to vector<4x32xf32>
    %371 = arith.mulf %370, %369 : vector<4x32xf32>
    %c14 = arith.constant 14 : index
    %c0_129 = arith.constant 0 : index
    %372 = vector.load %arg2[%c14, %c0_129] : memref<17x128xf32, #tpu.memory_space<vmem>>, vector<1x32xf32>
    %373 = vector.broadcast %372 : vector<1x32xf32> to vector<4x32xf32>
    %374 = arith.addf %371, %373 : vector<4x32xf32>
    %cst_130 = arith.constant 0.000000e+00 : f32
    %375 = vector.broadcast %cst_130 : f32 to vector<4x32xf32>
    %376 = arith.maximumf %374, %375 : vector<4x32xf32>
    %377 = arith.truncf %270 : vector<8x4xf32> to vector<8x4xbf16>
    %378 = arith.truncf %376 : vector<4x32xf32> to vector<4x32xbf16>
    %cst_131 = arith.constant dense<0.000000e+00> : vector<8x32xf32>
    %379 = tpu.matmul %377, %378, %cst_131 {dimension_numbers = #tpu.dot_dimension_numbers<[1], [0], [0], [1], [0, 0, 1, 1], [], []>} : vector<8x4xbf16>, vector<4x32xbf16>, vector<8x32xf32> -> vector<8x32xf32>
    %380 = arith.truncf %109 : vector<16x8xf32> to vector<16x8xbf16>
    %381 = arith.truncf %379 : vector<8x32xf32> to vector<8x32xbf16>
    %cst_132 = arith.constant dense<0.000000e+00> : vector<16x32xf32>
    %382 = tpu.matmul %380, %381, %cst_132 {dimension_numbers = #tpu.dot_dimension_numbers<[1], [0], [0], [1], [0, 0, 1, 1], [], []>} : vector<16x8xbf16>, vector<8x32xbf16>, vector<16x32xf32> -> vector<16x32xf32>
    %c0_133 = arith.constant 0 : index
    %c0_134 = arith.constant 0 : index
    %383 = vector.load %arg18[%c0_133, %c0_134] : memref<32x32xbf16, #tpu.memory_space<vmem>>, vector<32x32xbf16>
    %384 = arith.truncf %382 : vector<16x32xf32> to vector<16x32xbf16>
    %cst_135 = arith.constant dense<0.000000e+00> : vector<16x32xf32>
    %385 = tpu.matmul %384, %383, %cst_135 {dimension_numbers = #tpu.dot_dimension_numbers<[1], [0], [0], [1], [0, 0, 1, 1], [], []>} : vector<16x32xbf16>, vector<32x32xbf16>, vector<16x32xf32> -> vector<16x32xf32>
    %c15 = arith.constant 15 : index
    %c0_136 = arith.constant 0 : index
    %386 = vector.load %arg2[%c15, %c0_136] : memref<17x128xf32, #tpu.memory_space<vmem>>, vector<1x32xf32>
    %387 = vector.broadcast %386 : vector<1x32xf32> to vector<16x32xf32>
    %388 = arith.addf %385, %387 : vector<16x32xf32>
    %cst_137 = arith.constant 0.000000e+00 : f32
    %389 = vector.broadcast %cst_137 : f32 to vector<16x32xf32>
    %390 = arith.maximumf %388, %389 : vector<16x32xf32>
    %c0_138 = arith.constant 0 : index
    %c0_139 = arith.constant 0 : index
    %391 = vector.load %arg19[%c0_138, %c0_139] : memref<32x128xbf16, #tpu.memory_space<vmem>>, vector<32x128xbf16>
    %392 = arith.truncf %390 : vector<16x32xf32> to vector<16x32xbf16>
    %cst_140 = arith.constant dense<0.000000e+00> : vector<16x128xf32>
    %393 = tpu.matmul %392, %391, %cst_140 {dimension_numbers = #tpu.dot_dimension_numbers<[1], [0], [0], [1], [0, 0, 1, 1], [], []>} : vector<16x32xbf16>, vector<32x128xbf16>, vector<16x128xf32> -> vector<16x128xf32>
    %c16 = arith.constant 16 : index
    %c0_141 = arith.constant 0 : index
    %394 = vector.load %arg2[%c16, %c0_141] : memref<17x128xf32, #tpu.memory_space<vmem>>, vector<1x128xf32>
    %395 = vector.broadcast %394 : vector<1x128xf32> to vector<16x128xf32>
    %396 = arith.addf %393, %395 : vector<16x128xf32>
    %c0_142 = arith.constant 0 : index
    %c0_143 = arith.constant 0 : index
    %397 = vector.load %arg20[%c0_142, %c0_143] : memref<16x128xf32, #tpu.memory_space<vmem>>, vector<16x128xf32>
    tpu.vector_store %arg20[%c0_142, %c0_143], %396 {strides = array<i32>} : memref<16x128xf32, #tpu.memory_space<vmem>>, vector<16x128xf32>,
    %398 = vector.shape_cast %325 : vector<1x1xf32> to vector<1x1x1xf32>
    %cst_144 = arith.constant dense<0.000000e+00> : vector<1xf32>
    %399 = vector.multi_reduction <add>, %398, %cst_144 [1, 2] : vector<1x1x1xf32> to vector<1xf32>
    %400 = vector.shape_cast %399 : vector<1xf32> to vector<1x1x1xf32>
    %401 = vector.extract %400[0, 0, 0] : f32 from vector<1x1x1xf32>
    %c0_145 = arith.constant 0 : index
    %402 = memref.load %arg21[%c0_145] : memref<2xf32, #tpu.memory_space<smem>>
    memref.store %401, %arg21[%c0_145] : memref<2xf32, #tpu.memory_space<smem>>
    %403 = vector.shape_cast %286 : vector<1x1xf32> to vector<1x1x1xf32>
    %cst_146 = arith.constant dense<0.000000e+00> : vector<1xf32>
    %404 = vector.multi_reduction <add>, %403, %cst_146 [1, 2] : vector<1x1x1xf32> to vector<1xf32>
    %405 = vector.shape_cast %404 : vector<1xf32> to vector<1x1x1xf32>
    %406 = vector.extract %405[0, 0, 0] : f32 from vector<1x1x1xf32>
    %c1_147 = arith.constant 1 : index
    %407 = memref.load %arg21[%c1_147] : memref<2xf32, #tpu.memory_space<smem>>
    memref.store %406, %arg21[%c1_147] : memref<2xf32, #tpu.memory_space<smem>>
    return
  }
}

</mosaic_0001>

<llo_original>
// kernel: tpu_custom_call.1
$region0: #{tpu_custom_call.1}
  #allocation0 [shape = 'u32[]', space=smem, size = 0x4, offset = 0x4, fixed_abs, tag = 'smem constant byte address 0x4 - core index']
  #allocation1 [shape = 'u32[144,128]{1,0:T(1,128)}', space=vmem, size = 0x12000, scoped, tag = 'internal scratch']
  %s0 = inlined_call_operand.hbm [shape: f32[16,8], index: 0, kind: input, shape index: {}]
  %s1 = inlined_call_operand.hbm [shape: f32[16,16], index: 1, kind: input, shape index: {}]
  %s2 = inlined_call_operand.hbm [shape: f32[17,128], index: 2, kind: input, shape index: {}]
  %s3 = inlined_call_operand.hbm [shape: bf16[8,32], index: 3, kind: input, shape index: {}]
  %s4 = inlined_call_operand.hbm [shape: bf16[32,32], index: 4, kind: input, shape index: {}]
  %s5 = inlined_call_operand.hbm [shape: bf16[32,8], index: 5, kind: input, shape index: {}]
  %s6 = inlined_call_operand.hbm [shape: bf16[8,32], index: 6, kind: input, shape index: {}]
  %s7 = inlined_call_operand.hbm [shape: bf16[32,32], index: 7, kind: input, shape index: {}]
  %s8 = inlined_call_operand.hbm [shape: bf16[32,32], index: 8, kind: input, shape index: {}]
  %s9 = inlined_call_operand.hbm [shape: bf16[32,32], index: 9, kind: input, shape index: {}]
  %s10 = inlined_call_operand.hbm [shape: bf16[32,32], index: 10, kind: input, shape index: {}]
  %s11 = inlined_call_operand.hbm [shape: bf16[32,4], index: 11, kind: input, shape index: {}]
  %s12 = inlined_call_operand.hbm [shape: bf16[32,32], index: 12, kind: input, shape index: {}]
  %s13 = inlined_call_operand.hbm [shape: bf16[32,32], index: 13, kind: input, shape index: {}]
  %s14 = inlined_call_operand.hbm [shape: bf16[32,32], index: 14, kind: input, shape index: {}]
  %s15 = inlined_call_operand.hbm [shape: bf16[32,32], index: 15, kind: input, shape index: {}]
  %s16 = inlined_call_operand.hbm [shape: bf16[32,32], index: 16, kind: input, shape index: {}]
  %s17 = inlined_call_operand.hbm [shape: bf16[32,32], index: 17, kind: input, shape index: {}]
  %s18 = inlined_call_operand.hbm [shape: bf16[32,32], index: 18, kind: input, shape index: {}]
  %s19 = inlined_call_operand.hbm [shape: bf16[32,128], index: 19, kind: input, shape index: {}]
  %s20 = inlined_call_operand.hbm [shape: f32[16,128], index: 20, kind: output, shape index: {0}]
  %s21 = inlined_call_operand.hbm [shape: f32[2], index: 21, kind: output, shape index: {1}]
  %22 = xla_tuple %s20, %s21
  %s23 = sld [smem:[#allocation0]]
  $region178: #{tpu_custom_call.1} parent=0
    _
  %s25 = ssub.s32 1, %s23
  %s26 = scalar_select 0, %s25, %s23
  $region1: #{tpu_custom_call.1} parent=0
    #allocation2 [shape = 'u8[8192]{0}', space=vmem, size = 0x2000, scoped, tag = 'input window, operand 0, single buffered']
    #allocation3 [shape = 's32[1]{0}', space=sflag, size = 0x4, scoped, tag = 'scoped memory for tpu_custom_call.1']
    #allocation4 [shape = 's32[1]{0}', space=sflag, size = 0x4, scoped, tag = 'scoped memory for tpu_custom_call.1']
    #allocation5 [shape = 's32[1]{0}', space=sflag, size = 0x4, scoped, tag = 'scoped memory for tpu_custom_call.1']
    #allocation6 [shape = 'u8[8192]{0}', space=vmem, size = 0x2000, scoped, tag = 'input window, operand 1, single buffered']
    #allocation7 [shape = 's32[1]{0}', space=sflag, size = 0x4, scoped, tag = 'scoped memory for tpu_custom_call.1']
    #allocation8 [shape = 'u8[12288]{0}', space=vmem, size = 0x3000, scoped, tag = 'input window, operand 2, single buffered']
    #allocation9 [shape = 'u8[2048]{0}', space=vmem, size = 0x800, scoped, tag = 'input window, operand 3, single buffered']
    #allocation10 [shape = 's32[1]{0}', space=sflag, size = 0x4, scoped, tag = 'scoped memory for tpu_custom_call.1']
    #allocation11 [shape = 'u8[8192]{0}', space=vmem, size = 0x2000, scoped, tag = 'input window, operand 4, single buffered']
    #allocation12 [shape = 'u8[8192]{0}', space=vmem, size = 0x2000, scoped, tag = 'input window, operand 5, single buffered']
    #allocation13 [shape = 's32[1]{0}', space=sflag, size = 0x4, scoped, tag = 'scoped memory for tpu_custom_call.1']
    #allocation14 [shape = 'u8[2048]{0}', space=vmem, size = 0x800, scoped, tag = 'input window, operand 6, single buffered']
    #allocation15 [shape = 'u8[8192]{0}', space=vmem, size = 0x2000, scoped, tag = 'input window, operand 7, single buffered']
    #allocation16 [shape = 's32[1]{0}', space=sflag, size = 0x4, scoped, tag = 'scoped memory for tpu_custom_call.1']
    #allocation17 [shape = 'u8[8192]{0}', space=vmem, size = 0x2000, scoped, tag = 'input window, operand 8, single buffered']
    #allocation18 [shape = 'u8[8192]{0}', space=vmem, size = 0x2000, scoped, tag = 'input window, operand 9, single buffered']
    #allocation19 [shape = 's32[1]{0}', space=sflag, size = 0x4, scoped, tag = 'scoped memory for tpu_custom_call.1']
    #allocation20 [shape = 'u8[8192]{0}', space=vmem, size = 0x2000, scoped, tag = 'input window, operand 10, single buffered']
    #allocation21 [shape = 'u8[8192]{0}', space=vmem, size = 0x2000, scoped, tag = 'input window, operand 11, single buffered']
    #allocation22 [shape = 's32[1]{0}', space=sflag, size = 0x4, scoped, tag = 'scoped memory for tpu_custom_call.1']
    #allocation23 [shape = 'u8[8192]{0}', space=vmem, size = 0x2000, scoped, tag = 'input window, operand 12, single buffered']
    #allocation24 [shape = 'u8[8192]{0}', space=vmem, size = 0x2000, scoped, tag = 'input window, operand 13, single buffered']
    #allocation25 [shape = 's32[1]{0}', space=sflag, size = 0x4, scoped, tag = 'scoped memory for tpu_custom_call.1']
    #allocation26 [shape = 'u8[8192]{0}', space=vmem, size = 0x2000, scoped, tag = 'input window, operand 14, single buffered']
    #allocation27 [shape = 'u8[8192]{0}', space=vmem, size = 0x2000, scoped, tag = 'input window, operand 15, single buffered']
    #allocation28 [shape = 's32[1]{0}', space=sflag, size = 0x4, scoped, tag = 'scoped memory for tpu_custom_call.1']
    #allocation29 [shape = 'u8[8192]{0}', space=vmem, size = 0x2000, scoped, tag = 'input window, operand 16, single buffered']
    #allocation30 [shape = 'u8[8192]{0}', space=vmem, size = 0x2000, scoped, tag = 'input window, operand 17, single buffered']
    #allocation31 [shape = 's32[1]{0}', space=sflag, size = 0x4, scoped, tag = 'scoped memory for tpu_custom_call.1']
    #allocation32 [shape = 'u8[8192]{0}', space=vmem, size = 0x2000, scoped, tag = 'input window, operand 18, single buffered']
    #allocation33 [shape = 'u8[8192]{0}', space=vmem, size = 0x2000, scoped, tag = 'input window, operand 19, single buffered']
    #allocation34 [shape = 's32[1]{0}', space=sflag, size = 0x4, scoped, tag = 'scoped memory for tpu_custom_call.1']
    #allocation35 [shape = 'u8[8192]{0}', space=vmem, size = 0x2000, scoped, tag = 'output window, operand 0, single buffered']
    #allocation36 [shape = 'u8[512]{0}', space=smem, size = 0x200, scoped, tag = 'output window, operand 1, single buffered']
    %27 = vsyncpa [#allocation3], 0
    %28 = vsyncpa [#allocation7], 0
    %29 = vsyncpa [#allocation10], 0
    %30 = vsyncpa [#allocation13], 0
    %31 = vsyncpa [#allocation16], 0
    %32 = vsyncpa [#allocation19], 0
    %33 = vsyncpa [#allocation22], 0
    %34 = vsyncpa [#allocation25], 0
    %35 = vsyncpa [#allocation28], 0
    %36 = vsyncpa [#allocation31], 0
    %37 = vsyncpa [#allocation34], 0
    %38 = vsyncpa [#allocation4], 0
    %39 = vsyncpa [#allocation5], 0
    // Predicated region
    $region2: #{tpu_custom_call.1} parent=1 // pred_check
      _
    $region3: #{tpu_custom_call.1} parent=1 // pred_check_branch
      %41 = sbr.rel (0) target = $region5
    $region4: #{tpu_custom_call.1} parent=1 // pred_region
      %s43 = ssub.s32 256, 256
      %44 = vsyncadd [#allocation3], %s43
      %s45 = sshll.u32 [#allocation2], 4
      %s46 = int_to_ptr.vmem [resolvable:$true] %s45
      %51 = dma.hbm_to_vmem [thread:$0]  %s0, 256, %s46, [#allocation3], 128, 128, 8
    $region5: #{tpu_custom_call.1} parent=1 // pred_fallthru
      _
    // Predicated region
    $region6: #{tpu_custom_call.1} parent=1 // pred_check
      _
    $region7: #{tpu_custom_call.1} parent=1 // pred_check_branch
      %53 = sbr.rel (0) target = $region9
    $region8: #{tpu_custom_call.1} parent=1 // pred_region
      %s55 = ssub.s32 256, 256
      %56 = vsyncadd [#allocation7], %s55
      %s57 = sshll.u32 [#allocation6], 4
      %s58 = int_to_ptr.vmem [resolvable:$true] %s57
      %63 = dma.hbm_to_vmem [thread:$0]  %s1, 256, %s58, [#allocation7], 128, 128, 8
    $region9: #{tpu_custom_call.1} parent=1 // pred_fallthru
      _
    // Predicated region
    $region10: #{tpu_custom_call.1} parent=1 // pred_check
      _
    $region11: #{tpu_custom_call.1} parent=1 // pred_check_branch
      %65 = sbr.rel (0) target = $region13
    $region12: #{tpu_custom_call.1} parent=1 // pred_region
      %s67 = ssub.s32 384, 384
      %68 = vsyncadd [#allocation7], %s67
      %s69 = sshll.u32 [#allocation8], 4
      %s70 = int_to_ptr.vmem [resolvable:$true] %s69
      %75 = dma.hbm_to_vmem [thread:$0]  %s2, 384, %s70, [#allocation7], 128, 128, 8
    $region13: #{tpu_custom_call.1} parent=1 // pred_fallthru
      _
    // Predicated region
    $region14: #{tpu_custom_call.1} parent=1 // pred_check
      _
    $region15: #{tpu_custom_call.1} parent=1 // pred_check_branch
      %77 = sbr.rel (0) target = $region17
    $region16: #{tpu_custom_call.1} parent=1 // pred_region
      %s79 = ssub.s32 64, 64
      %80 = vsyncadd [#allocation10], %s79
      %s82 = sshll.u32 [#allocation9], 4
      %s83 = int_to_ptr.vmem [resolvable:$true] %s82
      %85 = dma.hbm_to_vmem [thread:$0]  %s3, 64, %s83, [#allocation10]
    $region17: #{tpu_custom_call.1} parent=1 // pred_fallthru
      _
    // Predicated region
    $region18: #{tpu_custom_call.1} parent=1 // pred_check
      _
    $region19: #{tpu_custom_call.1} parent=1 // pred_check_branch
      %87 = sbr.rel (0) target = $region21
    $region20: #{tpu_custom_call.1} parent=1 // pred_region
      %s89 = ssub.s32 256, 256
      %90 = vsyncadd [#allocation10], %s89
      %s91 = sshll.u32 [#allocation11], 4
      %s92 = int_to_ptr.vmem [resolvable:$true] %s91
      %97 = dma.hbm_to_vmem [thread:$0]  %s4, 256, %s92, [#allocation10], 64, 64, 4
    $region21: #{tpu_custom_call.1} parent=1 // pred_fallthru
      _
    // Predicated region
    $region22: #{tpu_custom_call.1} parent=1 // pred_check
      _
    $region23: #{tpu_custom_call.1} parent=1 // pred_check_branch
      %99 = sbr.rel (0) target = $region25
    $region24: #{tpu_custom_call.1} parent=1 // pred_region
      %s101 = ssub.s32 256, 256
      %102 = vsyncadd [#allocation13], %s101
      %s103 = sshll.u32 [#allocation12], 4
      %s104 = int_to_ptr.vmem [resolvable:$true] %s103
      %109 = dma.hbm_to_vmem [thread:$0]  %s5, 256, %s104, [#allocation13], 64, 64, 4
    $region25: #{tpu_custom_call.1} parent=1 // pred_fallthru
      _
    // Predicated region
    $region26: #{tpu_custom_call.1} parent=1 // pred_check
      _
    $region27: #{tpu_custom_call.1} parent=1 // pred_check_branch
      %111 = sbr.rel (0) target = $region29
    $region28: #{tpu_custom_call.1} parent=1 // pred_region
      %s113 = ssub.s32 64, 64
      %114 = vsyncadd [#allocation13], %s113
      %s116 = sshll.u32 [#allocation14], 4
      %s117 = int_to_ptr.vmem [resolvable:$true] %s116
      %119 = dma.hbm_to_vmem [thread:$0]  %s6, 64, %s117, [#allocation13]
    $region29: #{tpu_custom_call.1} parent=1 // pred_fallthru
      _
    // Predicated region
    $region30: #{tpu_custom_call.1} parent=1 // pred_check
      _
    $region31: #{tpu_custom_call.1} parent=1 // pred_check_branch
      %121 = sbr.rel (0) target = $region33
    $region32: #{tpu_custom_call.1} parent=1 // pred_region
      %s123 = ssub.s32 256, 256
      %124 = vsyncadd [#allocation16], %s123
      %s125 = sshll.u32 [#allocation15], 4
      %s126 = int_to_ptr.vmem [resolvable:$true] %s125
      %131 = dma.hbm_to_vmem [thread:$0]  %s7, 256, %s126, [#allocation16], 64, 64, 4
    $region33: #{tpu_custom_call.1} parent=1 // pred_fallthru
      _
    // Predicated region
    $region34: #{tpu_custom_call.1} parent=1 // pred_check
      _
    $region35: #{tpu_custom_call.1} parent=1 // pred_check_branch
      %133 = sbr.rel (0) target = $region37
    $region36: #{tpu_custom_call.1} parent=1 // pred_region
      %s135 = ssub.s32 256, 256
      %136 = vsyncadd [#allocation16], %s135
      %s137 = sshll.u32 [#allocation17], 4
      %s138 = int_to_ptr.vmem [resolvable:$true] %s137
      %143 = dma.hbm_to_vmem [thread:$0]  %s8, 256, %s138, [#allocation16], 64, 64, 4
    $region37: #{tpu_custom_call.1} parent=1 // pred_fallthru
      _
    // Predicated region
    $region38: #{tpu_custom_call.1} parent=1 // pred_check
      _
    $region39: #{tpu_custom_call.1} parent=1 // pred_check_branch
      %145 = sbr.rel (0) target = $region41
    $region40: #{tpu_custom_call.1} parent=1 // pred_region
      %s147 = ssub.s32 256, 256
      %148 = vsyncadd [#allocation19], %s147
      %s149 = sshll.u32 [#allocation18], 4
      %s150 = int_to_ptr.vmem [resolvable:$true] %s149
      %155 = dma.hbm_to_vmem [thread:$0]  %s9, 256, %s150, [#allocation19], 64, 64, 4
    $region41: #{tpu_custom_call.1} parent=1 // pred_fallthru
      _
    // Predicated region
    $region42: #{tpu_custom_call.1} parent=1 // pred_check
      _
    $region43: #{tpu_custom_call.1} parent=1 // pred_check_branch
      %157 = sbr.rel (0) target = $region45
    $region44: #{tpu_custom_call.1} parent=1 // pred_region
      %s159 = ssub.s32 256, 256
      %160 = vsyncadd [#allocation19], %s159
      %s161 = sshll.u32 [#allocation20], 4
      %s162 = int_to_ptr.vmem [resolvable:$true] %s161
      %167 = dma.hbm_to_vmem [thread:$0]  %s10, 256, %s162, [#allocation19], 64, 64, 4
    $region45: #{tpu_custom_call.1} parent=1 // pred_fallthru
      _
    // Predicated region
    $region46: #{tpu_custom_call.1} parent=1 // pred_check
      _
    $region47: #{tpu_custom_call.1} parent=1 // pred_check_branch
      %169 = sbr.rel (0) target = $region49
    $region48: #{tpu_custom_call.1} parent=1 // pred_region
      %s171 = ssub.s32 256, 256
      %172 = vsyncadd [#allocation22], %s171
      %s173 = sshll.u32 [#allocation21], 4
      %s174 = int_to_ptr.vmem [resolvable:$true] %s173
      %179 = dma.hbm_to_vmem [thread:$0]  %s11, 256, %s174, [#allocation22], 64, 64, 4
    $region49: #{tpu_custom_call.1} parent=1 // pred_fallthru
      _
    // Predicated region
    $region50: #{tpu_custom_call.1} parent=1 // pred_check
      _
    $region51: #{tpu_custom_call.1} parent=1 // pred_check_branch
      %181 = sbr.rel (0) target = $region53
    $region52: #{tpu_custom_call.1} parent=1 // pred_region
      %s183 = ssub.s32 256, 256
      %184 = vsyncadd [#allocation22], %s183
      %s185 = sshll.u32 [#allocation23], 4
      %s186 = int_to_ptr.vmem [resolvable:$true] %s185
      %191 = dma.hbm_to_vmem [thread:$0]  %s12, 256, %s186, [#allocation22], 64, 64, 4
    $region53: #{tpu_custom_call.1} parent=1 // pred_fallthru
      _
    // Predicated region
    $region54: #{tpu_custom_call.1} parent=1 // pred_check
      _
    $region55: #{tpu_custom_call.1} parent=1 // pred_check_branch
      %193 = sbr.rel (0) target = $region57
    $region56: #{tpu_custom_call.1} parent=1 // pred_region
      %s195 = ssub.s32 256, 256
      %196 = vsyncadd [#allocation25], %s195
      %s197 = sshll.u32 [#allocation24], 4
      %s198 = int_to_ptr.vmem [resolvable:$true] %s197
      %203 = dma.hbm_to_vmem [thread:$0]  %s13, 256, %s198, [#allocation25], 64, 64, 4
    $region57: #{tpu_custom_call.1} parent=1 // pred_fallthru
      _
    // Predicated region
    $region58: #{tpu_custom_call.1} parent=1 // pred_check
      _
    $region59: #{tpu_custom_call.1} parent=1 // pred_check_branch
      %205 = sbr.rel (0) target = $region61
    $region60: #{tpu_custom_call.1} parent=1 // pred_region
      %s207 = ssub.s32 256, 256
      %208 = vsyncadd [#allocation25], %s207
      %s209 = sshll.u32 [#allocation26], 4
      %s210 = int_to_ptr.vmem [resolvable:$true] %s209
      %215 = dma.hbm_to_vmem [thread:$0]  %s14, 256, %s210, [#allocation25], 64, 64, 4
    $region61: #{tpu_custom_call.1} parent=1 // pred_fallthru
      _
    // Predicated region
    $region62: #{tpu_custom_call.1} parent=1 // pred_check
      _
    $region63: #{tpu_custom_call.1} parent=1 // pred_check_branch
      %217 = sbr.rel (0) target = $region65
    $region64: #{tpu_custom_call.1} parent=1 // pred_region
      %s219 = ssub.s32 256, 256
      %220 = vsyncadd [#allocation28], %s219
      %s221 = sshll.u32 [#allocation27], 4
      %s222 = int_to_ptr.vmem [resolvable:$true] %s221
      %227 = dma.hbm_to_vmem [thread:$0]  %s15, 256, %s222, [#allocation28], 64, 64, 4
    $region65: #{tpu_custom_call.1} parent=1 // pred_fallthru
      _
    // Predicated region
    $region66: #{tpu_custom_call.1} parent=1 // pred_check
      _
    $region67: #{tpu_custom_call.1} parent=1 // pred_check_branch
      %229 = sbr.rel (0) target = $region69
    $region68: #{tpu_custom_call.1} parent=1 // pred_region
      %s231 = ssub.s32 256, 256
      %232 = vsyncadd [#allocation28], %s231
      %s233 = sshll.u32 [#allocation29], 4
      %s234 = int_to_ptr.vmem [resolvable:$true] %s233
      %239 = dma.hbm_to_vmem [thread:$0]  %s16, 256, %s234, [#allocation28], 64, 64, 4
    $region69: #{tpu_custom_call.1} parent=1 // pred_fallthru
      _
    // Predicated region
    $region70: #{tpu_custom_call.1} parent=1 // pred_check
      _
    $region71: #{tpu_custom_call.1} parent=1 // pred_check_branch
      %241 = sbr.rel (0) target = $region73
    $region72: #{tpu_custom_call.1} parent=1 // pred_region
      %s243 = ssub.s32 256, 256
      %244 = vsyncadd [#allocation31], %s243
      %s245 = sshll.u32 [#allocation30], 4
      %s246 = int_to_ptr.vmem [resolvable:$true] %s245
      %251 = dma.hbm_to_vmem [thread:$0]  %s17, 256, %s246, [#allocation31], 64, 64, 4
    $region73: #{tpu_custom_call.1} parent=1 // pred_fallthru
      _
    // Predicated region
    $region74: #{tpu_custom_call.1} parent=1 // pred_check
      _
    $region75: #{tpu_custom_call.1} parent=1 // pred_check_branch
      %253 = sbr.rel (0) target = $region77
    $region76: #{tpu_custom_call.1} parent=1 // pred_region
      %s255 = ssub.s32 256, 256
      %256 = vsyncadd [#allocation31], %s255
      %s257 = sshll.u32 [#allocation32], 4
      %s258 = int_to_ptr.vmem [resolvable:$true] %s257
      %263 = dma.hbm_to_vmem [thread:$0]  %s18, 256, %s258, [#allocation31], 64, 64, 4
    $region77: #{tpu_custom_call.1} parent=1 // pred_fallthru
      _
    // Predicated region
    $region78: #{tpu_custom_call.1} parent=1 // pred_check
      _
    $region79: #{tpu_custom_call.1} parent=1 // pred_check_branch
      %265 = sbr.rel (0) target = $region81
    $region80: #{tpu_custom_call.1} parent=1 // pred_region
      %s267 = ssub.s32 256, 256
      %268 = vsyncadd [#allocation34], %s267
      %s269 = sshll.u32 [#allocation33], 4
      %s270 = int_to_ptr.vmem [resolvable:$true] %s269
      %275 = dma.hbm_to_vmem [thread:$0]  %s19, 256, %s270, [#allocation34], 64, 64, 4
    $region81: #{tpu_custom_call.1} parent=1 // pred_fallthru
      _
    // Predicated region
    $region82: #{tpu_custom_call.1} parent=1 // pred_check
      _
    $region83: #{tpu_custom_call.1} parent=1 // pred_check_branch
      %277 = sbr.rel (0) target = $region85
    $region84: #{tpu_custom_call.1} parent=1 // pred_region
      %278 = dma.done [#allocation3], 256
    $region85: #{tpu_custom_call.1} parent=1 // pred_fallthru
      _
    // Predicated region
    $region86: #{tpu_custom_call.1} parent=1 // pred_check
      _
    $region87: #{tpu_custom_call.1} parent=1 // pred_check_branch
      %280 = sbr.rel (0) target = $region89
    $region88: #{tpu_custom_call.1} parent=1 // pred_region
      %281 = dma.done [#allocation7], 256
    $region89: #{tpu_custom_call.1} parent=1 // pred_fallthru
      _
    // Predicated region
    $region90: #{tpu_custom_call.1} parent=1 // pred_check
      _
    $region91: #{tpu_custom_call.1} parent=1 // pred_check_branch
      %283 = sbr.rel (0) target = $region93
    $region92: #{tpu_custom_call.1} parent=1 // pred_region
      %284 = dma.done [#allocation7], 384
    $region93: #{tpu_custom_call.1} parent=1 // pred_fallthru
      _
    // Predicated region
    $region94: #{tpu_custom_call.1} parent=1 // pred_check
      _
    $region95: #{tpu_custom_call.1} parent=1 // pred_check_branch
      %286 = sbr.rel (0) target = $region97
    $region96: #{tpu_custom_call.1} parent=1 // pred_region
      %287 = dma.done [#allocation10], 64
    $region97: #{tpu_custom_call.1} parent=1 // pred_fallthru
      _
    // Predicated region
    $region98: #{tpu_custom_call.1} parent=1 // pred_check
      _
    $region99: #{tpu_custom_call.1} parent=1 // pred_check_branch
      %289 = sbr.rel (0) target = $region101
    $region100: #{tpu_custom_call.1} parent=1 // pred_region
      %290 = dma.done [#allocation10], 256
    $region101: #{tpu_custom_call.1} parent=1 // pred_fallthru
      _
    // Predicated region
    $region102: #{tpu_custom_call.1} parent=1 // pred_check
      _
    $region103: #{tpu_custom_call.1} parent=1 // pred_check_branch
      %292 = sbr.rel (0) target = $region105
    $region104: #{tpu_custom_call.1} parent=1 // pred_region
      %293 = dma.done [#allocation13], 256
    $region105: #{tpu_custom_call.1} parent=1 // pred_fallthru
      _
    // Predicated region
    $region106: #{tpu_custom_call.1} parent=1 // pred_check
      _
    $region107: #{tpu_custom_call.1} parent=1 // pred_check_branch
      %295 = sbr.rel (0) target = $region109
    $region108: #{tpu_custom_call.1} parent=1 // pred_region
      %296 = dma.done [#allocation13], 64
    $region109: #{tpu_custom_call.1} parent=1 // pred_fallthru
      _
    // Predicated region
    $region110: #{tpu_custom_call.1} parent=1 // pred_check
      _
    $region111: #{tpu_custom_call.1} parent=1 // pred_check_branch
      %298 = sbr.rel (0) target = $region113
    $region112: #{tpu_custom_call.1} parent=1 // pred_region
      %299 = dma.done [#allocation16], 256
    $region113: #{tpu_custom_call.1} parent=1 // pred_fallthru
      _
    // Predicated region
    $region114: #{tpu_custom_call.1} parent=1 // pred_check
      _
    $region115: #{tpu_custom_call.1} parent=1 // pred_check_branch
      %301 = sbr.rel (0) target = $region117
    $region116: #{tpu_custom_call.1} parent=1 // pred_region
      %302 = dma.done [#allocation16], 256
    $region117: #{tpu_custom_call.1} parent=1 // pred_fallthru
      _
    // Predicated region
    $region118: #{tpu_custom_call.1} parent=1 // pred_check
      _
    $region119: #{tpu_custom_call.1} parent=1 // pred_check_branch
      %304 = sbr.rel (0) target = $region121
    $region120: #{tpu_custom_call.1} parent=1 // pred_region
      %305 = dma.done [#allocation19], 256
    $region121: #{tpu_custom_call.1} parent=1 // pred_fallthru
      _
    // Predicated region
    $region122: #{tpu_custom_call.1} parent=1 // pred_check
      _
    $region123: #{tpu_custom_call.1} parent=1 // pred_check_branch
      %307 = sbr.rel (0) target = $region125
    $region124: #{tpu_custom_call.1} parent=1 // pred_region
      %308 = dma.done [#allocation19], 256
    $region125: #{tpu_custom_call.1} parent=1 // pred_fallthru
      _
    // Predicated region
    $region126: #{tpu_custom_call.1} parent=1 // pred_check
      _
    $region127: #{tpu_custom_call.1} parent=1 // pred_check_branch
      %310 = sbr.rel (0) target = $region129
    $region128: #{tpu_custom_call.1} parent=1 // pred_region
      %311 = dma.done [#allocation22], 256
    $region129: #{tpu_custom_call.1} parent=1 // pred_fallthru
      _
    // Predicated region
    $region130: #{tpu_custom_call.1} parent=1 // pred_check
      _
    $region131: #{tpu_custom_call.1} parent=1 // pred_check_branch
      %313 = sbr.rel (0) target = $region133
    $region132: #{tpu_custom_call.1} parent=1 // pred_region
      %314 = dma.done [#allocation22], 256
    $region133: #{tpu_custom_call.1} parent=1 // pred_fallthru
      _
    // Predicated region
    $region134: #{tpu_custom_call.1} parent=1 // pred_check
      _
    $region135: #{tpu_custom_call.1} parent=1 // pred_check_branch
      %316 = sbr.rel (0) target = $region137
    $region136: #{tpu_custom_call.1} parent=1 // pred_region
      %317 = dma.done [#allocation25], 256
    $region137: #{tpu_custom_call.1} parent=1 // pred_fallthru
      _
    // Predicated region
    $region138: #{tpu_custom_call.1} parent=1 // pred_check
      _
    $region139: #{tpu_custom_call.1} parent=1 // pred_check_branch
      %319 = sbr.rel (0) target = $region141
    $region140: #{tpu_custom_call.1} parent=1 // pred_region
      %320 = dma.done [#allocation25], 256
    $region141: #{tpu_custom_call.1} parent=1 // pred_fallthru
      _
    // Predicated region
    $region142: #{tpu_custom_call.1} parent=1 // pred_check
      _
    $region143: #{tpu_custom_call.1} parent=1 // pred_check_branch
      %322 = sbr.rel (0) target = $region145
    $region144: #{tpu_custom_call.1} parent=1 // pred_region
      %323 = dma.done [#allocation28], 256
    $region145: #{tpu_custom_call.1} parent=1 // pred_fallthru
      _
    // Predicated region
    $region146: #{tpu_custom_call.1} parent=1 // pred_check
      _
    $region147: #{tpu_custom_call.1} parent=1 // pred_check_branch
      %325 = sbr.rel (0) target = $region149
    $region148: #{tpu_custom_call.1} parent=1 // pred_region
      %326 = dma.done [#allocation28], 256
    $region149: #{tpu_custom_call.1} parent=1 // pred_fallthru
      _
    // Predicated region
    $region150: #{tpu_custom_call.1} parent=1 // pred_check
      _
    $region151: #{tpu_custom_call.1} parent=1 // pred_check_branch
      %328 = sbr.rel (0) target = $region153
    $region152: #{tpu_custom_call.1} parent=1 // pred_region
      %329 = dma.done [#allocation31], 256
    $region153: #{tpu_custom_call.1} parent=1 // pred_fallthru
      _
    // Predicated region
    $region154: #{tpu_custom_call.1} parent=1 // pred_check
      _
    $region155: #{tpu_custom_call.1} parent=1 // pred_check_branch
      %331 = sbr.rel (0) target = $region157
    $region156: #{tpu_custom_call.1} parent=1 // pred_region
      %332 = dma.done [#allocation31], 256
    $region157: #{tpu_custom_call.1} parent=1 // pred_fallthru
      _
    // Predicated region
    $region158: #{tpu_custom_call.1} parent=1 // pred_check
      _
    $region159: #{tpu_custom_call.1} parent=1 // pred_check_branch
      %334 = sbr.rel (0) target = $region161
    $region160: #{tpu_custom_call.1} parent=1 // pred_region
      %335 = dma.done [#allocation34], 256
    $region161: #{tpu_custom_call.1} parent=1 // pred_fallthru
      _
    %v337 = vld [vmem:[#allocation2] sm:$0xff]
    %v338 = vld [vmem:[#allocation2 + $0x8] sm:$0xff]
    %v339 = vld [vmem:[#allocation6] sm:$0xff]
    %v340 = vld [vmem:[#allocation6 + $0x8] sm:$0xff]
    %vm341 = vcmask 130048
    %v342 = vsel %vm341, %v339, 0.0
    %343 = vadd.xlane.f32.xlu0 %v342
    %v344 = vpop.xlane.xlu0 %343
    %v345 = vsel %vm341, %v340, 0.0
    %346 = vadd.xlane.f32.xlu0 %v345
    %v347 = vpop.xlane.xlu0 %346
    %v348 = vadd.f32 %v344, 1.0
    %v349 = vadd.f32 %v347, 1.0
    %v350 = vrsqrt.pop %v348
    %v351 = vrsqrt.pop %v349
    %v352 = vpack.c.bf16 %v340, %v339
    %v353 = vld [vmem:[#allocation9] sm:$0xf]
    %v354 = vpack.c.bf16 %v338, %v337
    %vm355 = vcmask 64512
    %v357 = vsel %vm355, %v354, 0
    %vm359 = vcmask 1043456
    %v361 = vsel %vm359, %v353, 0
    %363 = vmatprep.subr.bf16.mxu0 0
    %364 = vmatpush1.bf16.msra.mxu0 %v361
    %365 = vmatprep.subr.bf16.mxu0 0
    %366 = vmatpush1.bf16.msra.mxu0 0
    %367 = vmatprep.subr.bf16.mxu0 0
    %368 = vmatpush1.bf16.msra.mxu0 0
    %369 = vmatprep.subr.bf16.mxu0 0
    %370 = vmatpush1.bf16.msra.mxu0 0
    %371 = vmatprep.subr.bf16.mxu0 0
    %372 = vmatpush1.bf16.msra.mxu0 0
    %373 = vmatprep.subr.bf16.mxu0 0
    %374 = vmatpush1.bf16.msra.mxu0 0
    %375 = vmatprep.subr.bf16.mxu0 0
    %376 = vmatpush1.bf16.msra.mxu0 0
    %377 = vmatprep.subr.bf16.mxu0 0
    %378 = vmatpush1.bf16.msra.mxu0 0
    %379 = vmatprep.subr.bf16.mxu0 0
    %380 = vmatpush1.bf16.msra.mxu0 0
    %381 = vmatprep.subr.bf16.mxu0 0
    %382 = vmatpush1.bf16.msra.mxu0 0
    %383 = vmatprep.subr.bf16.mxu0 0
    %384 = vmatpush1.bf16.msra.mxu0 0
    %385 = vmatprep.subr.bf16.mxu0 0
    %386 = vmatpush1.bf16.msra.mxu0 0
    %387 = vmatprep.subr.bf16.mxu0 0
    %388 = vmatpush1.bf16.msra.mxu0 0
    %389 = vmatprep.subr.bf16.mxu0 0
    %390 = vmatpush1.bf16.msra.mxu0 0
    %391 = vmatprep.subr.bf16.mxu0 0
    %392 = vmatpush1.bf16.msra.mxu0 0
    %393 = vmatprep.subr.bf16.mxu0 0
    %394 = vmatpush1.bf16.msra.mxu0 0
    %395 = vmatprep.mubr.bf16.mxu0 0
    %396 = vmatmul.mubr.bf16.gmra.mrb[0].mxu0 %v357
    %v397 = vpop.f32.mrb[0].mxu0
    %v398 = vadd.f32 0.0, %v397
    %v399 = vpop.f32.mrb[0].mxu0
    %v400 = vpop.f32.mrb[0].mxu0
    %v401 = vadd.f32 0.0, %v400
    %v402 = vpop.f32.mrb[0].mxu0
    %403 = vdwg.mxu0
    %v404 = vmul.f32 %v350, %v398
    %v405 = vmul.f32 %v351, %v401
    %v406 = vpack.c.bf16 %v405, %v404
    %v408 = vsel %vm341, %v352, 0
    %410 = vmatprep.subr.bf16.mxu0 0
    %411 = vmatpush1.bf16.msra.mxu0 %v406
    %412 = vmatprep.subr.bf16.mxu0 0
    %413 = vmatpush1.bf16.msra.mxu0 0
    %414 = vmatprep.subr.bf16.mxu0 0
    %415 = vmatpush1.bf16.msra.mxu0 0
    %416 = vmatprep.subr.bf16.mxu0 0
    %417 = vmatpush1.bf16.msra.mxu0 0
    %418 = vmatprep.subr.bf16.mxu0 0
    %419 = vmatpush1.bf16.msra.mxu0 0
    %420 = vmatprep.subr.bf16.mxu0 0
    %421 = vmatpush1.bf16.msra.mxu0 0
    %422 = vmatprep.subr.bf16.mxu0 0
    %423 = vmatpush1.bf16.msra.mxu0 0
    %424 = vmatprep.subr.bf16.mxu0 0
    %425 = vmatpush1.bf16.msra.mxu0 0
    %426 = vmatprep.subr.bf16.mxu0 0
    %427 = vmatpush1.bf16.msra.mxu0 0
    %428 = vmatprep.subr.bf16.mxu0 0
    %429 = vmatpush1.bf16.msra.mxu0 0
    %430 = vmatprep.subr.bf16.mxu0 0
    %431 = vmatpush1.bf16.msra.mxu0 0
    %432 = vmatprep.subr.bf16.mxu0 0
    %433 = vmatpush1.bf16.msra.mxu0 0
    %434 = vmatprep.subr.bf16.mxu0 0
    %435 = vmatpush1.bf16.msra.mxu0 0
    %436 = vmatprep.subr.bf16.mxu0 0
    %437 = vmatpush1.bf16.msra.mxu0 0
    %438 = vmatprep.subr.bf16.mxu0 0
    %439 = vmatpush1.bf16.msra.mxu0 0
    %440 = vmatprep.subr.bf16.mxu0 0
    %441 = vmatpush1.bf16.msra.mxu0 0
    %442 = vmatprep.mubr.bf16.mxu0 0
    %443 = vmatmul.mubr.bf16.gmra.mrb[0].mxu0 %v408
    %v444 = vpop.f32.mrb[0].mxu0
    %v445 = vadd.f32 %v404, %v444
    %v446 = vpop.f32.mrb[0].mxu0
    %v447 = vpop.f32.mrb[0].mxu0
    %v448 = vadd.f32 %v405, %v447
    %v449 = vpop.f32.mrb[0].mxu0
    %450 = vdwg.mxu0
    %v451 = vmul.f32 %v350, %v445
    %v452 = vmul.f32 %v351, %v448
    %v453 = vld [vmem:[#allocation8] sm:$0x1]
    %v454 = vlaneseq
    %v455 = vshrl.u32 %v454, 7
    %v456 = vsub.s32 0, %v455
    %v457 = vrot.slane %v453, %v456
    %v458 = vadd.f32 %v451, %v457
    %v459 = vadd.f32 %v452, %v457
    %v460 = vmax.f32 %v458, 0.0
    %v461 = vmax.f32 %v459, 0.0
    %v462 = vld [vmem:[#allocation11] sm:$0xf]
    %v463 = vld [vmem:[#allocation11 + $0x4] sm:$0xf]
    %v464 = vld [vmem:[#allocation11 + $0x8] sm:$0xf]
    %v465 = vld [vmem:[#allocation11 + $0xc] sm:$0xf]
    %v466 = vpack.c.bf16 %v461, %v460
    %v471 = vunpack.c.l.b16 %v462
    %v472 = vunpack.c.l.b16 %v463
    %v473 = vunpack.c.l.b16 %v464
    %v474 = vunpack.c.l.b16 %v465
    %v475 = vpack.c.b16 %v472, %v471
    %v476 = vpack.c.b16 %v474, %v473
    %vm479 = vcmask 261120
    %v481 = vsel %vm479, %v466, 0
    %483 = vmatprep.subr.bf16.mxu0 0
    %484 = vmatpush1.bf16.msra.mxu0 %v475
    %485 = vmatprep.subr.bf16.mxu0 0
    %486 = vmatpush1.bf16.msra.mxu0 %v476
    %487 = vmatprep.subr.bf16.mxu0 0
    %488 = vmatpush1.bf16.msra.mxu0 0
    %489 = vmatprep.subr.bf16.mxu0 0
    %490 = vmatpush1.bf16.msra.mxu0 0
    %491 = vmatprep.subr.bf16.mxu0 0
    %492 = vmatpush1.bf16.msra.mxu0 0
    %493 = vmatprep.subr.bf16.mxu0 0
    %494 = vmatpush1.bf16.msra.mxu0 0
    %495 = vmatprep.subr.bf16.mxu0 0
    %496 = vmatpush1.bf16.msra.mxu0 0
    %497 = vmatprep.subr.bf16.mxu0 0
    %498 = vmatpush1.bf16.msra.mxu0 0
    %499 = vmatprep.subr.bf16.mxu0 0
    %500 = vmatpush1.bf16.msra.mxu0 0
    %501 = vmatprep.subr.bf16.mxu0 0
    %502 = vmatpush1.bf16.msra.mxu0 0
    %503 = vmatprep.subr.bf16.mxu0 0
    %504 = vmatpush1.bf16.msra.mxu0 0
    %505 = vmatprep.subr.bf16.mxu0 0
    %506 = vmatpush1.bf16.msra.mxu0 0
    %507 = vmatprep.subr.bf16.mxu0 0
    %508 = vmatpush1.bf16.msra.mxu0 0
    %509 = vmatprep.subr.bf16.mxu0 0
    %510 = vmatpush1.bf16.msra.mxu0 0
    %511 = vmatprep.subr.bf16.mxu0 0
    %512 = vmatpush1.bf16.msra.mxu0 0
    %513 = vmatprep.subr.bf16.mxu0 0
    %514 = vmatpush1.bf16.msra.mxu0 0
    %515 = vmatprep.mubr.bf16.mxu0 0
    %516 = vmatmul.mubr.bf16.gmra.mrb[0].mxu0 %v481
    %v517 = vpop.f32.mrb[0].mxu0
    %v518 = vadd.f32 0.0, %v517
    %v519 = vpop.f32.mrb[0].mxu0
    %v520 = vpop.f32.mrb[0].mxu0
    %v521 = vadd.f32 0.0, %v520
    %v522 = vpop.f32.mrb[0].mxu0
    %523 = vdwg.mxu0
    %v524 = vmul.f32 %v350, %v518
    %v525 = vmul.f32 %v351, %v521
    %v526 = vpack.c.bf16 %v525, %v524
    %527 = vmatprep.subr.bf16.mxu0 0
    %528 = vmatpush1.bf16.msra.mxu0 %v526
    %529 = vmatprep.subr.bf16.mxu0 0
    %530 = vmatpush1.bf16.msra.mxu0 0
    %531 = vmatprep.subr.bf16.mxu0 0
    %532 = vmatpush1.bf16.msra.mxu0 0
    %533 = vmatprep.subr.bf16.mxu0 0
    %534 = vmatpush1.bf16.msra.mxu0 0
    %535 = vmatprep.subr.bf16.mxu0 0
    %536 = vmatpush1.bf16.msra.mxu0 0
    %537 = vmatprep.subr.bf16.mxu0 0
    %538 = vmatpush1.bf16.msra.mxu0 0
    %539 = vmatprep.subr.bf16.mxu0 0
    %540 = vmatpush1.bf16.msra.mxu0 0
    %541 = vmatprep.subr.bf16.mxu0 0
    %542 = vmatpush1.bf16.msra.mxu0 0
    %543 = vmatprep.subr.bf16.mxu0 0
    %544 = vmatpush1.bf16.msra.mxu0 0
    %545 = vmatprep.subr.bf16.mxu0 0
    %546 = vmatpush1.bf16.msra.mxu0 0
    %547 = vmatprep.subr.bf16.mxu0 0
    %548 = vmatpush1.bf16.msra.mxu0 0
    %549 = vmatprep.subr.bf16.mxu0 0
    %550 = vmatpush1.bf16.msra.mxu0 0
    %551 = vmatprep.subr.bf16.mxu0 0
    %552 = vmatpush1.bf16.msra.mxu0 0
    %553 = vmatprep.subr.bf16.mxu0 0
    %554 = vmatpush1.bf16.msra.mxu0 0
    %555 = vmatprep.subr.bf16.mxu0 0
    %556 = vmatpush1.bf16.msra.mxu0 0
    %557 = vmatprep.subr.bf16.mxu0 0
    %558 = vmatpush1.bf16.msra.mxu0 0
    %559 = vmatprep.mubr.bf16.mxu0 0
    %560 = vmatmul.mubr.bf16.gmra.mrb[0].mxu0 %v408
    %v561 = vpop.f32.mrb[0].mxu0
    %v562 = vadd.f32 %v524, %v561
    %v563 = vpop.f32.mrb[0].mxu0
    %v564 = vpop.f32.mrb[0].mxu0
    %v565 = vadd.f32 %v525, %v564
    %v566 = vpop.f32.mrb[0].mxu0
    %567 = vdwg.mxu0
    %v568 = vmul.f32 %v350, %v562
    %v569 = vmul.f32 %v351, %v565
    %v570 = vld [vmem:[#allocation8 + $0x1] sm:$0x1]
    %v571 = vlaneseq
    %v572 = vshrl.u32 %v571, 7
    %v573 = vsub.s32 0, %v572
    %v574 = vrot.slane %v570, %v573
    %v575 = vadd.f32 %v568, %v574
    %v576 = vadd.f32 %v569, %v574
    %v577 = vmax.f32 %v575, 0.0
    %v578 = vmax.f32 %v576, 0.0
    %v579 = vld [vmem:[#allocation12] sm:$0xf]
    %v580 = vld [vmem:[#allocation12 + $0x4] sm:$0xf]
    %v581 = vld [vmem:[#allocation12 + $0x8] sm:$0xf]
    %v582 = vld [vmem:[#allocation12 + $0xc] sm:$0xf]
    %v583 = vpack.c.bf16 %v578, %v577
    %v588 = vunpack.c.l.b16 %v579
    %v589 = vunpack.c.l.b16 %v580
    %v590 = vunpack.c.l.b16 %v581
    %v591 = vunpack.c.l.b16 %v582
    %v592 = vpack.c.b16 %v589, %v588
    %v593 = vpack.c.b16 %v591, %v590
    %v597 = vsel %vm479, %v583, 0
    %599 = vmatprep.subr.bf16.mxu0 0
    %600 = vmatpush1.bf16.msra.mxu0 %v592
    %601 = vmatprep.subr.bf16.mxu0 0
    %602 = vmatpush1.bf16.msra.mxu0 %v593
    %603 = vmatprep.subr.bf16.mxu0 0
    %604 = vmatpush1.bf16.msra.mxu0 0
    %605 = vmatprep.subr.bf16.mxu0 0
    %606 = vmatpush1.bf16.msra.mxu0 0
    %607 = vmatprep.subr.bf16.mxu0 0
    %608 = vmatpush1.bf16.msra.mxu0 0
    %609 = vmatprep.subr.bf16.mxu0 0
    %610 = vmatpush1.bf16.msra.mxu0 0
    %611 = vmatprep.subr.bf16.mxu0 0
    %612 = vmatpush1.bf16.msra.mxu0 0
    %613 = vmatprep.subr.bf16.mxu0 0
    %614 = vmatpush1.bf16.msra.mxu0 0
    %615 = vmatprep.subr.bf16.mxu0 0
    %616 = vmatpush1.bf16.msra.mxu0 0
    %617 = vmatprep.subr.bf16.mxu0 0
    %618 = vmatpush1.bf16.msra.mxu0 0
    %619 = vmatprep.subr.bf16.mxu0 0
    %620 = vmatpush1.bf16.msra.mxu0 0
    %621 = vmatprep.subr.bf16.mxu0 0
    %622 = vmatpush1.bf16.msra.mxu0 0
    %623 = vmatprep.subr.bf16.mxu0 0
    %624 = vmatpush1.bf16.msra.mxu0 0
    %625 = vmatprep.subr.bf16.mxu0 0
    %626 = vmatpush1.bf16.msra.mxu0 0
    %627 = vmatprep.subr.bf16.mxu0 0
    %628 = vmatpush1.bf16.msra.mxu0 0
    %629 = vmatprep.subr.bf16.mxu0 0
    %630 = vmatpush1.bf16.msra.mxu0 0
    %631 = vmatprep.mubr.bf16.mxu0 0
    %632 = vmatmul.mubr.bf16.gmra.mrb[0].mxu0 %v597
    %v633 = vpop.f32.mrb[0].mxu0
    %v634 = vadd.f32 0.0, %v633
    %v635 = vpop.f32.mrb[0].mxu0
    %v636 = vpop.f32.mrb[0].mxu0
    %v637 = vadd.f32 0.0, %v636
    %v638 = vpop.f32.mrb[0].mxu0
    %639 = vdwg.mxu0
    %v640 = vmul.f32 %v350, %v634
    %v641 = vmul.f32 %v351, %v637
    %v642 = vpack.c.bf16 %v641, %v640
    %643 = vmatprep.subr.bf16.mxu0 0
    %644 = vmatpush1.bf16.msra.mxu0 %v642
    %645 = vmatprep.subr.bf16.mxu0 0
    %646 = vmatpush1.bf16.msra.mxu0 0
    %647 = vmatprep.subr.bf16.mxu0 0
    %648 = vmatpush1.bf16.msra.mxu0 0
    %649 = vmatprep.subr.bf16.mxu0 0
    %650 = vmatpush1.bf16.msra.mxu0 0
    %651 = vmatprep.subr.bf16.mxu0 0
    %652 = vmatpush1.bf16.msra.mxu0 0
    %653 = vmatprep.subr.bf16.mxu0 0
    %654 = vmatpush1.bf16.msra.mxu0 0
    %655 = vmatprep.subr.bf16.mxu0 0
    %656 = vmatpush1.bf16.msra.mxu0 0
    %657 = vmatprep.subr.bf16.mxu0 0
    %658 = vmatpush1.bf16.msra.mxu0 0
    %659 = vmatprep.subr.bf16.mxu0 0
    %660 = vmatpush1.bf16.msra.mxu0 0
    %661 = vmatprep.subr.bf16.mxu0 0
    %662 = vmatpush1.bf16.msra.mxu0 0
    %663 = vmatprep.subr.bf16.mxu0 0
    %664 = vmatpush1.bf16.msra.mxu0 0
    %665 = vmatprep.subr.bf16.mxu0 0
    %666 = vmatpush1.bf16.msra.mxu0 0
    %667 = vmatprep.subr.bf16.mxu0 0
    %668 = vmatpush1.bf16.msra.mxu0 0
    %669 = vmatprep.subr.bf16.mxu0 0
    %670 = vmatpush1.bf16.msra.mxu0 0
    %671 = vmatprep.subr.bf16.mxu0 0
    %672 = vmatpush1.bf16.msra.mxu0 0
    %673 = vmatprep.subr.bf16.mxu0 0
    %674 = vmatpush1.bf16.msra.mxu0 0
    %675 = vmatprep.mubr.bf16.mxu0 0
    %676 = vmatmul.mubr.bf16.gmra.mrb[0].mxu0 %v408
    %v677 = vpop.f32.mrb[0].mxu0
    %v678 = vadd.f32 %v640, %v677
    %v679 = vpop.f32.mrb[0].mxu0
    %v680 = vpop.f32.mrb[0].mxu0
    %v681 = vadd.f32 %v641, %v680
    %v682 = vpop.f32.mrb[0].mxu0
    %683 = vdwg.mxu0
    %v684 = vmul.f32 %v350, %v678
    %v685 = vmul.f32 %v351, %v681
    %v686 = vld [vmem:[#allocation8 + $0x2] sm:$0x1]
    %v687 = vlaneseq
    %v688 = vshrl.u32 %v687, 7
    %v689 = vsub.s32 0, %v688
    %v690 = vrot.slane %v686, %v689
    %v691 = vadd.f32 %v684, %v690
    %v692 = vadd.f32 %v685, %v690
    %v693 = vmax.f32 %v691, 0.0
    %v694 = vmax.f32 %v692, 0.0
    %v695 = vld [vmem:[#allocation14] sm:$0xf]
    %v697 = vsel %vm359, %v695, 0
    %699 = vmatprep.subr.bf16.mxu0 0
    %700 = vmatpush1.bf16.msra.mxu0 %v697
    %701 = vmatprep.subr.bf16.mxu0 0
    %702 = vmatpush1.bf16.msra.mxu0 0
    %703 = vmatprep.subr.bf16.mxu0 0
    %704 = vmatpush1.bf16.msra.mxu0 0
    %705 = vmatprep.subr.bf16.mxu0 0
    %706 = vmatpush1.bf16.msra.mxu0 0
    %707 = vmatprep.subr.bf16.mxu0 0
    %708 = vmatpush1.bf16.msra.mxu0 0
    %709 = vmatprep.subr.bf16.mxu0 0
    %710 = vmatpush1.bf16.msra.mxu0 0
    %711 = vmatprep.subr.bf16.mxu0 0
    %712 = vmatpush1.bf16.msra.mxu0 0
    %713 = vmatprep.subr.bf16.mxu0 0
    %714 = vmatpush1.bf16.msra.mxu0 0
    %715 = vmatprep.subr.bf16.mxu0 0
    %716 = vmatpush1.bf16.msra.mxu0 0
    %717 = vmatprep.subr.bf16.mxu0 0
    %718 = vmatpush1.bf16.msra.mxu0 0
    %719 = vmatprep.subr.bf16.mxu0 0
    %720 = vmatpush1.bf16.msra.mxu0 0
    %721 = vmatprep.subr.bf16.mxu0 0
    %722 = vmatpush1.bf16.msra.mxu0 0
    %723 = vmatprep.subr.bf16.mxu0 0
    %724 = vmatpush1.bf16.msra.mxu0 0
    %725 = vmatprep.subr.bf16.mxu0 0
    %726 = vmatpush1.bf16.msra.mxu0 0
    %727 = vmatprep.subr.bf16.mxu0 0
    %728 = vmatpush1.bf16.msra.mxu0 0
    %729 = vmatprep.subr.bf16.mxu0 0
    %730 = vmatpush1.bf16.msra.mxu0 0
    %731 = vmatprep.mubr.bf16.mxu0 0
    %732 = vmatmul.mubr.bf16.gmra.mrb[0].mxu0 %v357
    %v733 = vpop.f32.mrb[0].mxu0
    %v734 = vadd.f32 0.0, %v733
    %v735 = vpop.f32.mrb[0].mxu0
    %v736 = vpop.f32.mrb[0].mxu0
    %v737 = vadd.f32 0.0, %v736
    %v738 = vpop.f32.mrb[0].mxu0
    %739 = vdwg.mxu0
    %v740 = vmul.f32 %v350, %v734
    %v741 = vmul.f32 %v351, %v737
    %v742 = vpack.c.bf16 %v741, %v740
    %743 = vmatprep.subr.bf16.mxu0 0
    %744 = vmatpush1.bf16.msra.mxu0 %v742
    %745 = vmatprep.subr.bf16.mxu0 0
    %746 = vmatpush1.bf16.msra.mxu0 0
    %747 = vmatprep.subr.bf16.mxu0 0
    %748 = vmatpush1.bf16.msra.mxu0 0
    %749 = vmatprep.subr.bf16.mxu0 0
    %750 = vmatpush1.bf16.msra.mxu0 0
    %751 = vmatprep.subr.bf16.mxu0 0
    %752 = vmatpush1.bf16.msra.mxu0 0
    %753 = vmatprep.subr.bf16.mxu0 0
    %754 = vmatpush1.bf16.msra.mxu0 0
    %755 = vmatprep.subr.bf16.mxu0 0
    %756 = vmatpush1.bf16.msra.mxu0 0
    %757 = vmatprep.subr.bf16.mxu0 0
    %758 = vmatpush1.bf16.msra.mxu0 0
    %759 = vmatprep.subr.bf16.mxu0 0
    %760 = vmatpush1.bf16.msra.mxu0 0
    %761 = vmatprep.subr.bf16.mxu0 0
    %762 = vmatpush1.bf16.msra.mxu0 0
    %763 = vmatprep.subr.bf16.mxu0 0
    %764 = vmatpush1.bf16.msra.mxu0 0
    %765 = vmatprep.subr.bf16.mxu0 0
    %766 = vmatpush1.bf16.msra.mxu0 0
    %767 = vmatprep.subr.bf16.mxu0 0
    %768 = vmatpush1.bf16.msra.mxu0 0
    %769 = vmatprep.subr.bf16.mxu0 0
    %770 = vmatpush1.bf16.msra.mxu0 0
    %771 = vmatprep.subr.bf16.mxu0 0
    %772 = vmatpush1.bf16.msra.mxu0 0
    %773 = vmatprep.subr.bf16.mxu0 0
    %774 = vmatpush1.bf16.msra.mxu0 0
    %775 = vmatprep.mubr.bf16.mxu0 0
    %776 = vmatmul.mubr.bf16.gmra.mrb[0].mxu0 %v408
    %v777 = vpop.f32.mrb[0].mxu0
    %v778 = vadd.f32 %v740, %v777
    %v779 = vpop.f32.mrb[0].mxu0
    %v780 = vpop.f32.mrb[0].mxu0
    %v781 = vadd.f32 %v741, %v780
    %v782 = vpop.f32.mrb[0].mxu0
    %783 = vdwg.mxu0
    %v784 = vmul.f32 %v350, %v778
    %v785 = vmul.f32 %v351, %v781
    %v786 = vld [vmem:[#allocation8 + $0x3] sm:$0x1]
    %v787 = vlaneseq
    %v788 = vshrl.u32 %v787, 7
    %v789 = vsub.s32 0, %v788
    %v790 = vrot.slane %v786, %v789
    %v791 = vadd.f32 %v784, %v790
    %v792 = vadd.f32 %v785, %v790
    %v793 = vmax.f32 %v791, 0.0
    %v794 = vmax.f32 %v792, 0.0
    %v795 = vld [vmem:[#allocation15] sm:$0xf]
    %v796 = vld [vmem:[#allocation15 + $0x4] sm:$0xf]
    %v797 = vld [vmem:[#allocation15 + $0x8] sm:$0xf]
    %v798 = vld [vmem:[#allocation15 + $0xc] sm:$0xf]
    %v799 = vpack.c.bf16 %v794, %v793
    %v804 = vunpack.c.l.b16 %v795
    %v805 = vunpack.c.l.b16 %v796
    %v806 = vunpack.c.l.b16 %v797
    %v807 = vunpack.c.l.b16 %v798
    %v808 = vpack.c.b16 %v805, %v804
    %v809 = vpack.c.b16 %v807, %v806
    %v813 = vsel %vm479, %v799, 0
    %815 = vmatprep.subr.bf16.mxu0 0
    %816 = vmatpush1.bf16.msra.mxu0 %v808
    %817 = vmatprep.subr.bf16.mxu0 0
    %818 = vmatpush1.bf16.msra.mxu0 %v809
    %819 = vmatprep.subr.bf16.mxu0 0
    %820 = vmatpush1.bf16.msra.mxu0 0
    %821 = vmatprep.subr.bf16.mxu0 0
    %822 = vmatpush1.bf16.msra.mxu0 0
    %823 = vmatprep.subr.bf16.mxu0 0
    %824 = vmatpush1.bf16.msra.mxu0 0
    %825 = vmatprep.subr.bf16.mxu0 0
    %826 = vmatpush1.bf16.msra.mxu0 0
    %827 = vmatprep.subr.bf16.mxu0 0
    %828 = vmatpush1.bf16.msra.mxu0 0
    %829 = vmatprep.subr.bf16.mxu0 0
    %830 = vmatpush1.bf16.msra.mxu0 0
    %831 = vmatprep.subr.bf16.mxu0 0
    %832 = vmatpush1.bf16.msra.mxu0 0
    %833 = vmatprep.subr.bf16.mxu0 0
    %834 = vmatpush1.bf16.msra.mxu0 0
    %835 = vmatprep.subr.bf16.mxu0 0
    %836 = vmatpush1.bf16.msra.mxu0 0
    %837 = vmatprep.subr.bf16.mxu0 0
    %838 = vmatpush1.bf16.msra.mxu0 0
    %839 = vmatprep.subr.bf16.mxu0 0
    %840 = vmatpush1.bf16.msra.mxu0 0
    %841 = vmatprep.subr.bf16.mxu0 0
    %842 = vmatpush1.bf16.msra.mxu0 0
    %843 = vmatprep.subr.bf16.mxu0 0
    %844 = vmatpush1.bf16.msra.mxu0 0
    %845 = vmatprep.subr.bf16.mxu0 0
    %846 = vmatpush1.bf16.msra.mxu0 0
    %847 = vmatprep.mubr.bf16.mxu0 0
    %848 = vmatmul.mubr.bf16.gmra.mrb[0].mxu0 %v813
    %v849 = vpop.f32.mrb[0].mxu0
    %v850 = vadd.f32 0.0, %v849
    %v851 = vpop.f32.mrb[0].mxu0
    %v852 = vpop.f32.mrb[0].mxu0
    %v853 = vadd.f32 0.0, %v852
    %v854 = vpop.f32.mrb[0].mxu0
    %855 = vdwg.mxu0
    %v856 = vmul.f32 %v350, %v850
    %v857 = vmul.f32 %v351, %v853
    %v858 = vpack.c.bf16 %v857, %v856
    %859 = vmatprep.subr.bf16.mxu0 0
    %860 = vmatpush1.bf16.msra.mxu0 %v858
    %861 = vmatprep.subr.bf16.mxu0 0
    %862 = vmatpush1.bf16.msra.mxu0 0
    %863 = vmatprep.subr.bf16.mxu0 0
    %864 = vmatpush1.bf16.msra.mxu0 0
    %865 = vmatprep.subr.bf16.mxu0 0
    %866 = vmatpush1.bf16.msra.mxu0 0
    %867 = vmatprep.subr.bf16.mxu0 0
    %868 = vmatpush1.bf16.msra.mxu0 0
    %869 = vmatprep.subr.bf16.mxu0 0
    %870 = vmatpush1.bf16.msra.mxu0 0
    %871 = vmatprep.subr.bf16.mxu0 0
    %872 = vmatpush1.bf16.msra.mxu0 0
    %873 = vmatprep.subr.bf16.mxu0 0
    %874 = vmatpush1.bf16.msra.mxu0 0
    %875 = vmatprep.subr.bf16.mxu0 0
    %876 = vmatpush1.bf16.msra.mxu0 0
    %877 = vmatprep.subr.bf16.mxu0 0
    %878 = vmatpush1.bf16.msra.mxu0 0
    %879 = vmatprep.subr.bf16.mxu0 0
    %880 = vmatpush1.bf16.msra.mxu0 0
    %881 = vmatprep.subr.bf16.mxu0 0
    %882 = vmatpush1.bf16.msra.mxu0 0
    %883 = vmatprep.subr.bf16.mxu0 0
    %884 = vmatpush1.bf16.msra.mxu0 0
    %885 = vmatprep.subr.bf16.mxu0 0
    %886 = vmatpush1.bf16.msra.mxu0 0
    %887 = vmatprep.subr.bf16.mxu0 0
    %888 = vmatpush1.bf16.msra.mxu0 0
    %889 = vmatprep.subr.bf16.mxu0 0
    %890 = vmatpush1.bf16.msra.mxu0 0
    %891 = vmatprep.mubr.bf16.mxu0 0
    %892 = vmatmul.mubr.bf16.gmra.mrb[0].mxu0 %v408
    %v893 = vpop.f32.mrb[0].mxu0
    %v894 = vadd.f32 %v856, %v893
    %v895 = vpop.f32.mrb[0].mxu0
    %v896 = vpop.f32.mrb[0].mxu0
    %v897 = vadd.f32 %v857, %v896
    %v898 = vpop.f32.mrb[0].mxu0
    %899 = vdwg.mxu0
    %v900 = vmul.f32 %v350, %v894
    %v901 = vmul.f32 %v351, %v897
    %v902 = vld [vmem:[#allocation8 + $0x4] sm:$0x1]
    %v903 = vlaneseq
    %v904 = vshrl.u32 %v903, 7
    %v905 = vsub.s32 0, %v904
    %v906 = vrot.slane %v902, %v905
    %v907 = vadd.f32 %v900, %v906
    %v908 = vadd.f32 %v901, %v906
    %v909 = vmax.f32 %v907, 0.0
    %v910 = vmax.f32 %v908, 0.0
    %v911 = vld [vmem:[#allocation17] sm:$0xf]
    %v912 = vld [vmem:[#allocation17 + $0x4] sm:$0xf]
    %v913 = vld [vmem:[#allocation17 + $0x8] sm:$0xf]
    %v914 = vld [vmem:[#allocation17 + $0xc] sm:$0xf]
    %v915 = vpack.c.bf16 %v910, %v909
    %v920 = vunpack.c.l.b16 %v911
    %v921 = vunpack.c.l.b16 %v912
    %v922 = vunpack.c.l.b16 %v913
    %v923 = vunpack.c.l.b16 %v914
    %v924 = vpack.c.b16 %v921, %v920
    %v925 = vpack.c.b16 %v923, %v922
    %v929 = vsel %vm479, %v915, 0
    %931 = vmatprep.subr.bf16.mxu0 0
    %932 = vmatpush1.bf16.msra.mxu0 %v924
    %933 = vmatprep.subr.bf16.mxu0 0
    %934 = vmatpush1.bf16.msra.mxu0 %v925
    %935 = vmatprep.subr.bf16.mxu0 0
    %936 = vmatpush1.bf16.msra.mxu0 0
    %937 = vmatprep.subr.bf16.mxu0 0
    %938 = vmatpush1.bf16.msra.mxu0 0
    %939 = vmatprep.subr.bf16.mxu0 0
    %940 = vmatpush1.bf16.msra.mxu0 0
    %941 = vmatprep.subr.bf16.mxu0 0
    %942 = vmatpush1.bf16.msra.mxu0 0
    %943 = vmatprep.subr.bf16.mxu0 0
    %944 = vmatpush1.bf16.msra.mxu0 0
    %945 = vmatprep.subr.bf16.mxu0 0
    %946 = vmatpush1.bf16.msra.mxu0 0
    %947 = vmatprep.subr.bf16.mxu0 0
    %948 = vmatpush1.bf16.msra.mxu0 0
    %949 = vmatprep.subr.bf16.mxu0 0
    %950 = vmatpush1.bf16.msra.mxu0 0
    %951 = vmatprep.subr.bf16.mxu0 0
    %952 = vmatpush1.bf16.msra.mxu0 0
    %953 = vmatprep.subr.bf16.mxu0 0
    %954 = vmatpush1.bf16.msra.mxu0 0
    %955 = vmatprep.subr.bf16.mxu0 0
    %956 = vmatpush1.bf16.msra.mxu0 0
    %957 = vmatprep.subr.bf16.mxu0 0
    %958 = vmatpush1.bf16.msra.mxu0 0
    %959 = vmatprep.subr.bf16.mxu0 0
    %960 = vmatpush1.bf16.msra.mxu0 0
    %961 = vmatprep.subr.bf16.mxu0 0
    %962 = vmatpush1.bf16.msra.mxu0 0
    %963 = vmatprep.mubr.bf16.mxu0 0
    %964 = vmatmul.mubr.bf16.gmra.mrb[0].mxu0 %v929
    %v965 = vpop.f32.mrb[0].mxu0
    %v966 = vadd.f32 0.0, %v965
    %v967 = vpop.f32.mrb[0].mxu0
    %v968 = vpop.f32.mrb[0].mxu0
    %v969 = vadd.f32 0.0, %v968
    %v970 = vpop.f32.mrb[0].mxu0
    %971 = vdwg.mxu0
    %v972 = vmul.f32 %v350, %v966
    %v973 = vmul.f32 %v351, %v969
    %v974 = vpack.c.bf16 %v973, %v972
    %975 = vmatprep.subr.bf16.mxu0 0
    %976 = vmatpush1.bf16.msra.mxu0 %v974
    %977 = vmatprep.subr.bf16.mxu0 0
    %978 = vmatpush1.bf16.msra.mxu0 0
    %979 = vmatprep.subr.bf16.mxu0 0
    %980 = vmatpush1.bf16.msra.mxu0 0
    %981 = vmatprep.subr.bf16.mxu0 0
    %982 = vmatpush1.bf16.msra.mxu0 0
    %983 = vmatprep.subr.bf16.mxu0 0
    %984 = vmatpush1.bf16.msra.mxu0 0
    %985 = vmatprep.subr.bf16.mxu0 0
    %986 = vmatpush1.bf16.msra.mxu0 0
    %987 = vmatprep.subr.bf16.mxu0 0
    %988 = vmatpush1.bf16.msra.mxu0 0
    %989 = vmatprep.subr.bf16.mxu0 0
    %990 = vmatpush1.bf16.msra.mxu0 0
    %991 = vmatprep.subr.bf16.mxu0 0
    %992 = vmatpush1.bf16.msra.mxu0 0
    %993 = vmatprep.subr.bf16.mxu0 0
    %994 = vmatpush1.bf16.msra.mxu0 0
    %995 = vmatprep.subr.bf16.mxu0 0
    %996 = vmatpush1.bf16.msra.mxu0 0
    %997 = vmatprep.subr.bf16.mxu0 0
    %998 = vmatpush1.bf16.msra.mxu0 0
    %999 = vmatprep.subr.bf16.mxu0 0
    %1000 = vmatpush1.bf16.msra.mxu0 0
    %1001 = vmatprep.subr.bf16.mxu0 0
    %1002 = vmatpush1.bf16.msra.mxu0 0
    %1003 = vmatprep.subr.bf16.mxu0 0
    %1004 = vmatpush1.bf16.msra.mxu0 0
    %1005 = vmatprep.subr.bf16.mxu0 0
    %1006 = vmatpush1.bf16.msra.mxu0 0
    %1007 = vmatprep.mubr.bf16.mxu0 0
    %1008 = vmatmul.mubr.bf16.gmra.mrb[0].mxu0 %v408
    %v1009 = vpop.f32.mrb[0].mxu0
    %v1010 = vadd.f32 %v972, %v1009
    %v1011 = vpop.f32.mrb[0].mxu0
    %v1012 = vpop.f32.mrb[0].mxu0
    %v1013 = vadd.f32 %v973, %v1012
    %v1014 = vpop.f32.mrb[0].mxu0
    %1015 = vdwg.mxu0
    %v1016 = vmul.f32 %v350, %v1010
    %v1017 = vmul.f32 %v351, %v1013
    %v1018 = vld [vmem:[#allocation8 + $0x5] sm:$0x1]
    %v1019 = vlaneseq
    %v1020 = vshrl.u32 %v1019, 7
    %v1021 = vsub.s32 0, %v1020
    %v1022 = vrot.slane %v1018, %v1021
    %v1023 = vadd.f32 %v1016, %v1022
    %v1024 = vadd.f32 %v1017, %v1022
    %v1025 = vmax.f32 %v1023, 0.0
    %v1026 = vmax.f32 %v1024, 0.0
    %v1027 = vsel %vm355, %v693, -inf
    %1028 = vmax.xlane.f32.xlu0 %v1027
    %v1029 = vpop.xlane.xlu0 %1028
    %v1030 = vsel %vm355, %v694, -inf
    %1031 = vmax.xlane.f32.xlu0 %v1030
    %v1032 = vpop.xlane.xlu0 %1031
    %v1033 = vsub.f32 %v693, %v1029
    %v1034 = vsub.f32 %v694, %v1032
    %v1035 = vmul.f32 %v1033, 1.442695
    %v1036 = vpow.pop %v1035
    %v1037 = vmul.f32 %v1034, 1.442695
    %v1038 = vpow.pop %v1037
    %v1039 = vsel %vm355, %v1036, 0.0
    %1040 = vadd.xlane.f32.xlu0 %v1039
    %v1041 = vpop.xlane.xlu0 %1040
    %v1042 = vsel %vm355, %v1038, 0.0
    %1043 = vadd.xlane.f32.xlu0 %v1042
    %v1044 = vpop.xlane.xlu0 %1043
    %v1045 = vrcp.pop %v1041
    %v1046 = vrcp.pop %v1044
    %v1047 = vmul.f32 %v1036, %v1045
    %v1048 = vmul.f32 %v1038, %v1046
    %v1049 = vlog2.pop %v1041
    %v1050 = vmul.f32 %v1049, 0.6931472
    %v1051 = vlog2.pop %v1044
    %v1052 = vmul.f32 %v1051, 0.6931472
    %v1053 = vsub.f32 %v1033, %v1050
    %v1054 = vsub.f32 %v1034, %v1052
    %v1055 = vsub.f32 0.0, %v1047
    %v1056 = vsub.f32 0.0, %v1048
    %v1057 = vmul.f32 %v1055, %v1053
    %v1058 = vmul.f32 %v1056, %v1054
    %v1059 = vsel %vm355, %v1057, 0.0
    %v1060 = vsel %vm355, %v1058, 0.0
    %v1061 = vadd.f32 %v1059, %v1060
    %1062 = vadd.xlane.f32.xlu0 %v1061
    %v1063 = vpop.xlane.xlu0 %1062
    %v1064 = vrot.slane %v1063, 4
    %v1065 = vadd.f32 %v1063, %v1064
    %v1066 = vrot.slane %v1065, 2
    %v1067 = vadd.f32 %v1065, %v1066
    %v1068 = vrot.slane %v1067, 1
    %v1069 = vadd.f32 %v1067, %v1068
    %s1070 = vtos %v1069
    %v1071 = vstv %s1070
    %v1072 = vrcp.pop 16.0
    %v1073 = vmul.f32 %v1071, %v1072
    %v1074 = vadd.f32 %v1073, 0.0
    %v1075 = vpack.c.bf16 %v1048, %v1047
    %1076 = vmatprep.subr.bf16.mxu0 0
    %1077 = vmatpush1.bf16.msra.mxu0 %v1075
    %1078 = vmatprep.subr.bf16.mxu0 0
    %1079 = vmatpush1.bf16.msra.mxu0 0
    %1080 = vmatprep.subr.bf16.mxu0 0
    %1081 = vmatpush1.bf16.msra.mxu0 0
    %1082 = vmatprep.subr.bf16.mxu0 0
    %1083 = vmatpush1.bf16.msra.mxu0 0
    %1084 = vmatprep.subr.bf16.mxu0 0
    %1085 = vmatpush1.bf16.msra.mxu0 0
    %1086 = vmatprep.subr.bf16.mxu0 0
    %1087 = vmatpush1.bf16.msra.mxu0 0
    %1088 = vmatprep.subr.bf16.mxu0 0
    %1089 = vmatpush1.bf16.msra.mxu0 0
    %1090 = vmatprep.subr.bf16.mxu0 0
    %1091 = vmatpush1.bf16.msra.mxu0 0
    %1092 = vmatprep.subr.bf16.mxu0 0
    %1093 = vmatpush1.bf16.msra.mxu0 0
    %1094 = vmatprep.subr.bf16.mxu0 0
    %1095 = vmatpush1.bf16.msra.mxu0 0
    %1096 = vmatprep.subr.bf16.mxu0 0
    %1097 = vmatpush1.bf16.msra.mxu0 0
    %1098 = vmatprep.subr.bf16.mxu0 0
    %1099 = vmatpush1.bf16.msra.mxu0 0
    %1100 = vmatprep.subr.bf16.mxu0 0
    %1101 = vmatpush1.bf16.msra.mxu0 0
    %1102 = vmatprep.subr.bf16.mxu0 0
    %1103 = vmatpush1.bf16.msra.mxu0 0
    %1104 = vmatprep.subr.bf16.mxu0 0
    %1105 = vmatpush1.bf16.msra.mxu0 0
    %1106 = vmatprep.subr.bf16.mxu0 0
    %1107 = vmatpush1.bf16.msra.mxu0 0
    %1108 = vmatprep.mubr.bf16.mxu0 0
    %1109 = vmatmul.mubr.bf16.gmra.mrb[0].mxu0 %v408
    %v1110 = vpop.f32.mrb[0].mxu0
    %v1111 = vadd.f32 0.0, %v1110
    %v1112 = vpop.f32.mrb[0].mxu0
    %v1113 = vpop.f32.mrb[0].mxu0
    %v1114 = vadd.f32 0.0, %v1113
    %v1115 = vpop.f32.mrb[0].mxu0
    %1116 = vdwg.mxu0
    %v1117 = vpack.c.bf16 %v1114, %v1111
    %1118 = vxpose.xlu0.c.b16.start [1/8] %v1075, 128
    %1119 = vxpose.xlu0.c.b16.cont [2/8] 0, 128
    %1120 = vxpose.xlu0.c.b16.cont [3/8] 0, 128
    %1121 = vxpose.xlu0.c.b16.cont [4/8] 0, 128
    %1122 = vxpose.xlu0.c.b16.cont [5/8] 0, 128
    %1123 = vxpose.xlu0.c.b16.cont [6/8] 0, 128
    %1124 = vxpose.xlu0.c.b16.cont [7/8] 0, 128
    %1125 = vxpose.xlu0.c.b16.end [8/8] 0, 128
    %v1126 = vpop.trf.xlu0
    %v1127 = vpop.trf.xlu0
    %v1128 = vpop.trf.xlu0
    %v1129 = vpop.trf.xlu0
    %v1130 = vpop.trf.xlu0
    %v1131 = vpop.trf.xlu0
    %v1132 = vpop.trf.xlu0
    %v1133 = vpop.trf.xlu0
    %v1135 = vsel %vm341, %v1126, 0
    %1137 = vmatprep.subr.bf16.mxu0 0
    %1138 = vmatpush1.bf16.msra.mxu0 %v1117
    %1139 = vmatprep.subr.bf16.mxu0 0
    %1140 = vmatpush1.bf16.msra.mxu0 0
    %1141 = vmatprep.subr.bf16.mxu0 0
    %1142 = vmatpush1.bf16.msra.mxu0 0
    %1143 = vmatprep.subr.bf16.mxu0 0
    %1144 = vmatpush1.bf16.msra.mxu0 0
    %1145 = vmatprep.subr.bf16.mxu0 0
    %1146 = vmatpush1.bf16.msra.mxu0 0
    %1147 = vmatprep.subr.bf16.mxu0 0
    %1148 = vmatpush1.bf16.msra.mxu0 0
    %1149 = vmatprep.subr.bf16.mxu0 0
    %1150 = vmatpush1.bf16.msra.mxu0 0
    %1151 = vmatprep.subr.bf16.mxu0 0
    %1152 = vmatpush1.bf16.msra.mxu0 0
    %1153 = vmatprep.subr.bf16.mxu0 0
    %1154 = vmatpush1.bf16.msra.mxu0 0
    %1155 = vmatprep.subr.bf16.mxu0 0
    %1156 = vmatpush1.bf16.msra.mxu0 0
    %1157 = vmatprep.subr.bf16.mxu0 0
    %1158 = vmatpush1.bf16.msra.mxu0 0
    %1159 = vmatprep.subr.bf16.mxu0 0
    %1160 = vmatpush1.bf16.msra.mxu0 0
    %1161 = vmatprep.subr.bf16.mxu0 0
    %1162 = vmatpush1.bf16.msra.mxu0 0
    %1163 = vmatprep.subr.bf16.mxu0 0
    %1164 = vmatpush1.bf16.msra.mxu0 0
    %1165 = vmatprep.subr.bf16.mxu0 0
    %1166 = vmatpush1.bf16.msra.mxu0 0
    %1167 = vmatprep.subr.bf16.mxu0 0
    %1168 = vmatpush1.bf16.msra.mxu0 0
    %1169 = vmatprep.mubr.bf16.mxu0 0
    %1170 = vmatmul.mubr.bf16.gmra.mrb[0].mxu0 %v1135
    %v1171 = vpop.f32.mrb[0].mxu0
    %v1172 = vadd.f32 0.0, %v1171
    %v1173 = vpop.f32.mrb[0].mxu0
    %v1174 = vpop.f32.mrb[0].mxu0
    %v1175 = vpop.f32.mrb[0].mxu0
    %1176 = vdwg.mxu0
    %v1177 = vpack.c.bf16 %v1026, %v1025
    %1178 = vmatprep.subr.bf16.mxu0 0
    %1179 = vmatpush1.bf16.msra.mxu0 %v1177
    %1180 = vmatprep.subr.bf16.mxu0 0
    %1181 = vmatpush1.bf16.msra.mxu0 0
    %1182 = vmatprep.subr.bf16.mxu0 0
    %1183 = vmatpush1.bf16.msra.mxu0 0
    %1184 = vmatprep.subr.bf16.mxu0 0
    %1185 = vmatpush1.bf16.msra.mxu0 0
    %1186 = vmatprep.subr.bf16.mxu0 0
    %1187 = vmatpush1.bf16.msra.mxu0 0
    %1188 = vmatprep.subr.bf16.mxu0 0
    %1189 = vmatpush1.bf16.msra.mxu0 0
    %1190 = vmatprep.subr.bf16.mxu0 0
    %1191 = vmatpush1.bf16.msra.mxu0 0
    %1192 = vmatprep.subr.bf16.mxu0 0
    %1193 = vmatpush1.bf16.msra.mxu0 0
    %1194 = vmatprep.subr.bf16.mxu0 0
    %1195 = vmatpush1.bf16.msra.mxu0 0
    %1196 = vmatprep.subr.bf16.mxu0 0
    %1197 = vmatpush1.bf16.msra.mxu0 0
    %1198 = vmatprep.subr.bf16.mxu0 0
    %1199 = vmatpush1.bf16.msra.mxu0 0
    %1200 = vmatprep.subr.bf16.mxu0 0
    %1201 = vmatpush1.bf16.msra.mxu0 0
    %1202 = vmatprep.subr.bf16.mxu0 0
    %1203 = vmatpush1.bf16.msra.mxu0 0
    %1204 = vmatprep.subr.bf16.mxu0 0
    %1205 = vmatpush1.bf16.msra.mxu0 0
    %1206 = vmatprep.subr.bf16.mxu0 0
    %1207 = vmatpush1.bf16.msra.mxu0 0
    %1208 = vmatprep.subr.bf16.mxu0 0
    %1209 = vmatpush1.bf16.msra.mxu0 0
    %1210 = vmatprep.mubr.bf16.mxu0 0
    %1211 = vmatmul.mubr.bf16.gmra.mrb[0].mxu0 %v1135
    %v1212 = vpop.f32.mrb[0].mxu0
    %v1213 = vadd.f32 0.0, %v1212
    %v1214 = vpop.f32.mrb[0].mxu0
    %v1215 = vpop.f32.mrb[0].mxu0
    %v1216 = vpop.f32.mrb[0].mxu0
    %1217 = vdwg.mxu0
    %1218 = vmatprep.subr.bf16.mxu0 0
    %1219 = vmatpush1.bf16.msra.mxu0 %v1075
    %1220 = vmatprep.subr.bf16.mxu0 0
    %1221 = vmatpush1.bf16.msra.mxu0 0
    %1222 = vmatprep.subr.bf16.mxu0 0
    %1223 = vmatpush1.bf16.msra.mxu0 0
    %1224 = vmatprep.subr.bf16.mxu0 0
    %1225 = vmatpush1.bf16.msra.mxu0 0
    %1226 = vmatprep.subr.bf16.mxu0 0
    %1227 = vmatpush1.bf16.msra.mxu0 0
    %1228 = vmatprep.subr.bf16.mxu0 0
    %1229 = vmatpush1.bf16.msra.mxu0 0
    %1230 = vmatprep.subr.bf16.mxu0 0
    %1231 = vmatpush1.bf16.msra.mxu0 0
    %1232 = vmatprep.subr.bf16.mxu0 0
    %1233 = vmatpush1.bf16.msra.mxu0 0
    %1234 = vmatprep.subr.bf16.mxu0 0
    %1235 = vmatpush1.bf16.msra.mxu0 0
    %1236 = vmatprep.subr.bf16.mxu0 0
    %1237 = vmatpush1.bf16.msra.mxu0 0
    %1238 = vmatprep.subr.bf16.mxu0 0
    %1239 = vmatpush1.bf16.msra.mxu0 0
    %1240 = vmatprep.subr.bf16.mxu0 0
    %1241 = vmatpush1.bf16.msra.mxu0 0
    %1242 = vmatprep.subr.bf16.mxu0 0
    %1243 = vmatpush1.bf16.msra.mxu0 0
    %1244 = vmatprep.subr.bf16.mxu0 0
    %1245 = vmatpush1.bf16.msra.mxu0 0
    %1246 = vmatprep.subr.bf16.mxu0 0
    %1247 = vmatpush1.bf16.msra.mxu0 0
    %1248 = vmatprep.subr.bf16.mxu0 0
    %1249 = vmatpush1.bf16.msra.mxu0 0
    %1250 = vmatprep.mubr.bf16.mxu0 0
    %1251 = vmatmul.mubr.bf16.gmra.mrb[0].mxu0 %v1135
    %v1252 = vpop.f32.mrb[0].mxu0
    %v1253 = vadd.f32 0.0, %v1252
    %v1254 = vpop.f32.mrb[0].mxu0
    %v1255 = vpop.f32.mrb[0].mxu0
    %v1256 = vpop.f32.mrb[0].mxu0
    %1257 = vdwg.mxu0
    %v1258 = vmul.f32 %v1047, %v1111
    %v1259 = vmul.f32 %v1048, %v1114
    %v1260 = vsel %vm355, %v1258, 0.0
    %v1261 = vsel %vm355, %v1259, 0.0
    %v1262 = vadd.f32 %v1260, %v1261
    %1263 = vadd.xlane.f32.xlu0 %v1262
    %v1264 = vpop.xlane.xlu0 %1263
    %v1265 = vrot.slane %v1264, 4
    %v1266 = vadd.f32 %v1264, %v1265
    %v1267 = vrot.slane %v1266, 2
    %v1268 = vadd.f32 %v1266, %v1267
    %v1269 = vrot.slane %v1268, 1
    %v1270 = vadd.f32 %v1268, %v1269
    %s1271 = vtos %v1270
    %v1272 = vstv %s1271
    %v1273 = vmul.f32 %v339, %v339
    %v1274 = vmul.f32 %v340, %v340
    %v1275 = vsel %vm341, %v1273, 0.0
    %v1276 = vsel %vm341, %v1274, 0.0
    %v1277 = vadd.f32 %v1275, %v1276
    %1278 = vadd.xlane.f32.xlu0 %v1277
    %v1279 = vpop.xlane.xlu0 %1278
    %v1280 = vrot.slane %v1279, 4
    %v1281 = vadd.f32 %v1279, %v1280
    %v1282 = vrot.slane %v1281, 2
    %v1283 = vadd.f32 %v1281, %v1282
    %v1284 = vrot.slane %v1283, 1
    %v1285 = vadd.f32 %v1283, %v1284
    %s1286 = vtos %v1285
    %v1287 = vstv %s1286
    %v1288 = vmul.f32 %v1253, %v1253
    %v1289 = vsel %vm355, %v1288, 0.0
    %1290 = vadd.xlane.f32.xlu0 %v1289
    %v1291 = vpop.xlane.xlu0 %1290
    %v1292 = vrot.slane %v1291, 4
    %v1293 = vadd.f32 %v1291, %v1292
    %v1294 = vrot.slane %v1293, 2
    %v1295 = vadd.f32 %v1293, %v1294
    %v1296 = vrot.slane %v1295, 1
    %v1297 = vadd.f32 %v1295, %v1296
    %s1298 = vtos %v1297
    %v1299 = vstv %s1298
    %v1300 = vadd.f32 %v1287, %v1299
    %v1301 = vmul.f32 %v1272, 2.0
    %v1302 = vsub.f32 %v1300, %v1301
    %v1303 = vmax.f32 %v1302, 0.0
    %v1304 = vrsqrt.pop %v1303
    %v1305 = vmul.f32 %v1303, %v1304
    %vm1306 = vcmp.eq.f32.partialorder %v1303, inf
    %v1307 = vsel %vm1306, %v1303, %v1305
    %vm1308 = vcmp.eq.f32.partialorder %v1303, 0.0
    %v1309 = vand.u32 %v1303, 2147483648
    %v1310 = vsel %vm1308, %v1309, %v1307
    %v1311 = vrcp.pop 256.0
    %v1312 = vmul.f32 %v1310, %v1311
    %v1313 = vadd.f32 %v1312, 0.0
    %v1314 = vsel %vm355, %v1172, 0.0
    %1315 = vadd.xlane.f32.xlu0 %v1314
    %v1316 = vpop.xlane.xlu0 %1315
    %v1317 = vadd.f32 %v1316, 1.0
    %v1318 = vrsqrt.pop %v1317
    %v1319 = vpack.c.bf16 %v1172, %v1172
    %v1320 = vld [vmem:[#allocation18] sm:$0xf]
    %v1321 = vld [vmem:[#allocation18 + $0x4] sm:$0xf]
    %v1322 = vld [vmem:[#allocation18 + $0x8] sm:$0xf]
    %v1323 = vld [vmem:[#allocation18 + $0xc] sm:$0xf]
    %v1324 = vpack.c.bf16 %v1213, %v1213
    %v1329 = vunpack.c.l.b16 %v1320
    %v1330 = vunpack.c.l.b16 %v1321
    %v1331 = vunpack.c.l.b16 %v1322
    %v1332 = vunpack.c.l.b16 %v1323
    %v1333 = vpack.c.b16 %v1330, %v1329
    %v1334 = vpack.c.b16 %v1332, %v1331
    %v1338 = vsel %vm479, %v1324, 0
    %1340 = vmatprep.subr.bf16.mxu0 0
    %1341 = vmatpush1.bf16.msra.mxu0 %v1333
    %1342 = vmatprep.subr.bf16.mxu0 0
    %1343 = vmatpush1.bf16.msra.mxu0 %v1334
    %1344 = vmatprep.subr.bf16.mxu0 0
    %1345 = vmatpush1.bf16.msra.mxu0 0
    %1346 = vmatprep.subr.bf16.mxu0 0
    %1347 = vmatpush1.bf16.msra.mxu0 0
    %1348 = vmatprep.subr.bf16.mxu0 0
    %1349 = vmatpush1.bf16.msra.mxu0 0
    %1350 = vmatprep.subr.bf16.mxu0 0
    %1351 = vmatpush1.bf16.msra.mxu0 0
    %1352 = vmatprep.subr.bf16.mxu0 0
    %1353 = vmatpush1.bf16.msra.mxu0 0
    %1354 = vmatprep.subr.bf16.mxu0 0
    %1355 = vmatpush1.bf16.msra.mxu0 0
    %1356 = vmatprep.subr.bf16.mxu0 0
    %1357 = vmatpush1.bf16.msra.mxu0 0
    %1358 = vmatprep.subr.bf16.mxu0 0
    %1359 = vmatpush1.bf16.msra.mxu0 0
    %1360 = vmatprep.subr.bf16.mxu0 0
    %1361 = vmatpush1.bf16.msra.mxu0 0
    %1362 = vmatprep.subr.bf16.mxu0 0
    %1363 = vmatpush1.bf16.msra.mxu0 0
    %1364 = vmatprep.subr.bf16.mxu0 0
    %1365 = vmatpush1.bf16.msra.mxu0 0
    %1366 = vmatprep.subr.bf16.mxu0 0
    %1367 = vmatpush1.bf16.msra.mxu0 0
    %1368 = vmatprep.subr.bf16.mxu0 0
    %1369 = vmatpush1.bf16.msra.mxu0 0
    %1370 = vmatprep.subr.bf16.mxu0 0
    %1371 = vmatpush1.bf16.msra.mxu0 0
    %1372 = vmatprep.mubr.bf16.mxu0 0
    %1373 = vmatmul.mubr.bf16.gmra.mrb[0].mxu0 %v1338
    %v1374 = vpop.f32.mrb[0].mxu0
    %v1375 = vadd.f32 0.0, %v1374
    %v1376 = vpop.f32.mrb[0].mxu0
    %v1377 = vpop.f32.mrb[0].mxu0
    %v1378 = vpop.f32.mrb[0].mxu0
    %1379 = vdwg.mxu0
    %v1380 = vmul.f32 %v1318, %v1375
    %v1381 = vpack.c.bf16 %v1380, %v1380
    %v1383 = vsel %vm355, %v1319, 0
    %v1386 = vsel %vm359, %v1381, 0
    %1388 = vmatprep.subr.bf16.mxu0 0
    %1389 = vmatpush1.bf16.msra.mxu0 %v1386
    %1390 = vmatprep.subr.bf16.mxu0 0
    %1391 = vmatpush1.bf16.msra.mxu0 0
    %1392 = vmatprep.subr.bf16.mxu0 0
    %1393 = vmatpush1.bf16.msra.mxu0 0
    %1394 = vmatprep.subr.bf16.mxu0 0
    %1395 = vmatpush1.bf16.msra.mxu0 0
    %1396 = vmatprep.subr.bf16.mxu0 0
    %1397 = vmatpush1.bf16.msra.mxu0 0
    %1398 = vmatprep.subr.bf16.mxu0 0
    %1399 = vmatpush1.bf16.msra.mxu0 0
    %1400 = vmatprep.subr.bf16.mxu0 0
    %1401 = vmatpush1.bf16.msra.mxu0 0
    %1402 = vmatprep.subr.bf16.mxu0 0
    %1403 = vmatpush1.bf16.msra.mxu0 0
    %1404 = vmatprep.subr.bf16.mxu0 0
    %1405 = vmatpush1.bf16.msra.mxu0 0
    %1406 = vmatprep.subr.bf16.mxu0 0
    %1407 = vmatpush1.bf16.msra.mxu0 0
    %1408 = vmatprep.subr.bf16.mxu0 0
    %1409 = vmatpush1.bf16.msra.mxu0 0
    %1410 = vmatprep.subr.bf16.mxu0 0
    %1411 = vmatpush1.bf16.msra.mxu0 0
    %1412 = vmatprep.subr.bf16.mxu0 0
    %1413 = vmatpush1.bf16.msra.mxu0 0
    %1414 = vmatprep.subr.bf16.mxu0 0
    %1415 = vmatpush1.bf16.msra.mxu0 0
    %1416 = vmatprep.subr.bf16.mxu0 0
    %1417 = vmatpush1.bf16.msra.mxu0 0
    %1418 = vmatprep.subr.bf16.mxu0 0
    %1419 = vmatpush1.bf16.msra.mxu0 0
    %1420 = vmatprep.mubr.bf16.mxu0 0
    %1421 = vmatmul.mubr.bf16.gmra.mrb[0].mxu0 %v1383
    %v1422 = vpop.f32.mrb[0].mxu0
    %v1423 = vadd.f32 %v1380, %v1422
    %v1424 = vpop.f32.mrb[0].mxu0
    %v1425 = vpop.f32.mrb[0].mxu0
    %v1426 = vpop.f32.mrb[0].mxu0
    %1427 = vdwg.mxu0
    %v1428 = vmul.f32 %v1318, %v1423
    %v1429 = vld [vmem:[#allocation8 + $0x6] sm:$0x1]
    %v1430 = vlaneseq
    %v1431 = vshrl.u32 %v1430, 7
    %v1432 = vsub.s32 0, %v1431
    %v1433 = vrot.slane %v1429, %v1432
    %v1434 = vadd.f32 %v1428, %v1433
    %v1435 = vmax.f32 %v1434, 0.0
    %v1436 = vld [vmem:[#allocation20] sm:$0xf]
    %v1437 = vld [vmem:[#allocation20 + $0x4] sm:$0xf]
    %v1438 = vld [vmem:[#allocation20 + $0x8] sm:$0xf]
    %v1439 = vld [vmem:[#allocation20 + $0xc] sm:$0xf]
    %v1440 = vpack.c.bf16 %v1435, %v1435
    %v1445 = vunpack.c.l.b16 %v1436
    %v1446 = vunpack.c.l.b16 %v1437
    %v1447 = vunpack.c.l.b16 %v1438
    %v1448 = vunpack.c.l.b16 %v1439
    %v1449 = vpack.c.b16 %v1446, %v1445
    %v1450 = vpack.c.b16 %v1448, %v1447
    %v1454 = vsel %vm479, %v1440, 0
    %1456 = vmatprep.subr.bf16.mxu0 0
    %1457 = vmatpush1.bf16.msra.mxu0 %v1449
    %1458 = vmatprep.subr.bf16.mxu0 0
    %1459 = vmatpush1.bf16.msra.mxu0 %v1450
    %1460 = vmatprep.subr.bf16.mxu0 0
    %1461 = vmatpush1.bf16.msra.mxu0 0
    %1462 = vmatprep.subr.bf16.mxu0 0
    %1463 = vmatpush1.bf16.msra.mxu0 0
    %1464 = vmatprep.subr.bf16.mxu0 0
    %1465 = vmatpush1.bf16.msra.mxu0 0
    %1466 = vmatprep.subr.bf16.mxu0 0
    %1467 = vmatpush1.bf16.msra.mxu0 0
    %1468 = vmatprep.subr.bf16.mxu0 0
    %1469 = vmatpush1.bf16.msra.mxu0 0
    %1470 = vmatprep.subr.bf16.mxu0 0
    %1471 = vmatpush1.bf16.msra.mxu0 0
    %1472 = vmatprep.subr.bf16.mxu0 0
    %1473 = vmatpush1.bf16.msra.mxu0 0
    %1474 = vmatprep.subr.bf16.mxu0 0
    %1475 = vmatpush1.bf16.msra.mxu0 0
    %1476 = vmatprep.subr.bf16.mxu0 0
    %1477 = vmatpush1.bf16.msra.mxu0 0
    %1478 = vmatprep.subr.bf16.mxu0 0
    %1479 = vmatpush1.bf16.msra.mxu0 0
    %1480 = vmatprep.subr.bf16.mxu0 0
    %1481 = vmatpush1.bf16.msra.mxu0 0
    %1482 = vmatprep.subr.bf16.mxu0 0
    %1483 = vmatpush1.bf16.msra.mxu0 0
    %1484 = vmatprep.subr.bf16.mxu0 0
    %1485 = vmatpush1.bf16.msra.mxu0 0
    %1486 = vmatprep.subr.bf16.mxu0 0
    %1487 = vmatpush1.bf16.msra.mxu0 0
    %1488 = vmatprep.mubr.bf16.mxu0 0
    %1489 = vmatmul.mubr.bf16.gmra.mrb[0].mxu0 %v1454
    %v1490 = vpop.f32.mrb[0].mxu0
    %v1491 = vadd.f32 0.0, %v1490
    %v1492 = vpop.f32.mrb[0].mxu0
    %v1493 = vpop.f32.mrb[0].mxu0
    %v1494 = vpop.f32.mrb[0].mxu0
    %1495 = vdwg.mxu0
    %v1496 = vmul.f32 %v1318, %v1491
    %v1497 = vpack.c.bf16 %v1496, %v1496
    %v1499 = vsel %vm359, %v1497, 0
    %1501 = vmatprep.subr.bf16.mxu0 0
    %1502 = vmatpush1.bf16.msra.mxu0 %v1499
    %1503 = vmatprep.subr.bf16.mxu0 0
    %1504 = vmatpush1.bf16.msra.mxu0 0
    %1505 = vmatprep.subr.bf16.mxu0 0
    %1506 = vmatpush1.bf16.msra.mxu0 0
    %1507 = vmatprep.subr.bf16.mxu0 0
    %1508 = vmatpush1.bf16.msra.mxu0 0
    %1509 = vmatprep.subr.bf16.mxu0 0
    %1510 = vmatpush1.bf16.msra.mxu0 0
    %1511 = vmatprep.subr.bf16.mxu0 0
    %1512 = vmatpush1.bf16.msra.mxu0 0
    %1513 = vmatprep.subr.bf16.mxu0 0
    %1514 = vmatpush1.bf16.msra.mxu0 0
    %1515 = vmatprep.subr.bf16.mxu0 0
    %1516 = vmatpush1.bf16.msra.mxu0 0
    %1517 = vmatprep.subr.bf16.mxu0 0
    %1518 = vmatpush1.bf16.msra.mxu0 0
    %1519 = vmatprep.subr.bf16.mxu0 0
    %1520 = vmatpush1.bf16.msra.mxu0 0
    %1521 = vmatprep.subr.bf16.mxu0 0
    %1522 = vmatpush1.bf16.msra.mxu0 0
    %1523 = vmatprep.subr.bf16.mxu0 0
    %1524 = vmatpush1.bf16.msra.mxu0 0
    %1525 = vmatprep.subr.bf16.mxu0 0
    %1526 = vmatpush1.bf16.msra.mxu0 0
    %1527 = vmatprep.subr.bf16.mxu0 0
    %1528 = vmatpush1.bf16.msra.mxu0 0
    %1529 = vmatprep.subr.bf16.mxu0 0
    %1530 = vmatpush1.bf16.msra.mxu0 0
    %1531 = vmatprep.subr.bf16.mxu0 0
    %1532 = vmatpush1.bf16.msra.mxu0 0
    %1533 = vmatprep.mubr.bf16.mxu0 0
    %1534 = vmatmul.mubr.bf16.gmra.mrb[0].mxu0 %v1383
    %v1535 = vpop.f32.mrb[0].mxu0
    %v1536 = vadd.f32 %v1496, %v1535
    %v1537 = vpop.f32.mrb[0].mxu0
    %v1538 = vpop.f32.mrb[0].mxu0
    %v1539 = vpop.f32.mrb[0].mxu0
    %1540 = vdwg.mxu0
    %v1541 = vmul.f32 %v1318, %v1536
    %v1542 = vld [vmem:[#allocation8 + $0x7] sm:$0x1]
    %v1543 = vlaneseq
    %v1544 = vshrl.u32 %v1543, 7
    %v1545 = vsub.s32 0, %v1544
    %v1546 = vrot.slane %v1542, %v1545
    %v1547 = vadd.f32 %v1541, %v1546
    %v1548 = vmax.f32 %v1547, 0.0
    %v1549 = vld [vmem:[#allocation21] sm:$0xf]
    %v1550 = vld [vmem:[#allocation21 + $0x4] sm:$0xf]
    %v1551 = vld [vmem:[#allocation21 + $0x8] sm:$0xf]
    %v1552 = vld [vmem:[#allocation21 + $0xc] sm:$0xf]
    %v1553 = vpack.c.bf16 %v1548, %v1548
    %v1558 = vunpack.c.l.b16 %v1549
    %v1559 = vunpack.c.l.b16 %v1550
    %v1560 = vunpack.c.l.b16 %v1551
    %v1561 = vunpack.c.l.b16 %v1552
    %v1562 = vpack.c.b16 %v1559, %v1558
    %v1563 = vpack.c.b16 %v1561, %v1560
    %v1567 = vsel %vm479, %v1553, 0
    %1569 = vmatprep.subr.bf16.mxu0 0
    %1570 = vmatpush1.bf16.msra.mxu0 %v1562
    %1571 = vmatprep.subr.bf16.mxu0 0
    %1572 = vmatpush1.bf16.msra.mxu0 %v1563
    %1573 = vmatprep.subr.bf16.mxu0 0
    %1574 = vmatpush1.bf16.msra.mxu0 0
    %1575 = vmatprep.subr.bf16.mxu0 0
    %1576 = vmatpush1.bf16.msra.mxu0 0
    %1577 = vmatprep.subr.bf16.mxu0 0
    %1578 = vmatpush1.bf16.msra.mxu0 0
    %1579 = vmatprep.subr.bf16.mxu0 0
    %1580 = vmatpush1.bf16.msra.mxu0 0
    %1581 = vmatprep.subr.bf16.mxu0 0
    %1582 = vmatpush1.bf16.msra.mxu0 0
    %1583 = vmatprep.subr.bf16.mxu0 0
    %1584 = vmatpush1.bf16.msra.mxu0 0
    %1585 = vmatprep.subr.bf16.mxu0 0
    %1586 = vmatpush1.bf16.msra.mxu0 0
    %1587 = vmatprep.subr.bf16.mxu0 0
    %1588 = vmatpush1.bf16.msra.mxu0 0
    %1589 = vmatprep.subr.bf16.mxu0 0
    %1590 = vmatpush1.bf16.msra.mxu0 0
    %1591 = vmatprep.subr.bf16.mxu0 0
    %1592 = vmatpush1.bf16.msra.mxu0 0
    %1593 = vmatprep.subr.bf16.mxu0 0
    %1594 = vmatpush1.bf16.msra.mxu0 0
    %1595 = vmatprep.subr.bf16.mxu0 0
    %1596 = vmatpush1.bf16.msra.mxu0 0
    %1597 = vmatprep.subr.bf16.mxu0 0
    %1598 = vmatpush1.bf16.msra.mxu0 0
    %1599 = vmatprep.subr.bf16.mxu0 0
    %1600 = vmatpush1.bf16.msra.mxu0 0
    %1601 = vmatprep.mubr.bf16.mxu0 0
    %1602 = vmatmul.mubr.bf16.gmra.mrb[0].mxu0 %v1567
    %v1603 = vpop.f32.mrb[0].mxu0
    %v1604 = vadd.f32 0.0, %v1603
    %v1605 = vpop.f32.mrb[0].mxu0
    %v1606 = vpop.f32.mrb[0].mxu0
    %v1607 = vpop.f32.mrb[0].mxu0
    %1608 = vdwg.mxu0
    %v1609 = vmul.f32 %v1318, %v1604
    %v1610 = vpack.c.bf16 %v1609, %v1609
    %v1612 = vsel %vm359, %v1610, 0
    %1614 = vmatprep.subr.bf16.mxu0 0
    %1615 = vmatpush1.bf16.msra.mxu0 %v1612
    %1616 = vmatprep.subr.bf16.mxu0 0
    %1617 = vmatpush1.bf16.msra.mxu0 0
    %1618 = vmatprep.subr.bf16.mxu0 0
    %1619 = vmatpush1.bf16.msra.mxu0 0
    %1620 = vmatprep.subr.bf16.mxu0 0
    %1621 = vmatpush1.bf16.msra.mxu0 0
    %1622 = vmatprep.subr.bf16.mxu0 0
    %1623 = vmatpush1.bf16.msra.mxu0 0
    %1624 = vmatprep.subr.bf16.mxu0 0
    %1625 = vmatpush1.bf16.msra.mxu0 0
    %1626 = vmatprep.subr.bf16.mxu0 0
    %1627 = vmatpush1.bf16.msra.mxu0 0
    %1628 = vmatprep.subr.bf16.mxu0 0
    %1629 = vmatpush1.bf16.msra.mxu0 0
    %1630 = vmatprep.subr.bf16.mxu0 0
    %1631 = vmatpush1.bf16.msra.mxu0 0
    %1632 = vmatprep.subr.bf16.mxu0 0
    %1633 = vmatpush1.bf16.msra.mxu0 0
    %1634 = vmatprep.subr.bf16.mxu0 0
    %1635 = vmatpush1.bf16.msra.mxu0 0
    %1636 = vmatprep.subr.bf16.mxu0 0
    %1637 = vmatpush1.bf16.msra.mxu0 0
    %1638 = vmatprep.subr.bf16.mxu0 0
    %1639 = vmatpush1.bf16.msra.mxu0 0
    %1640 = vmatprep.subr.bf16.mxu0 0
    %1641 = vmatpush1.bf16.msra.mxu0 0
    %1642 = vmatprep.subr.bf16.mxu0 0
    %1643 = vmatpush1.bf16.msra.mxu0 0
    %1644 = vmatprep.subr.bf16.mxu0 0
    %1645 = vmatpush1.bf16.msra.mxu0 0
    %1646 = vmatprep.mubr.bf16.mxu0 0
    %1647 = vmatmul.mubr.bf16.gmra.mrb[0].mxu0 %v1383
    %v1648 = vpop.f32.mrb[0].mxu0
    %v1649 = vadd.f32 %v1609, %v1648
    %v1650 = vpop.f32.mrb[0].mxu0
    %v1651 = vpop.f32.mrb[0].mxu0
    %v1652 = vpop.f32.mrb[0].mxu0
    %1653 = vdwg.mxu0
    %v1654 = vmul.f32 %v1318, %v1649
    %v1655 = vld [vmem:[#allocation8 + $0x8] sm:$0x1]
    %v1656 = vlaneseq
    %v1657 = vshrl.u32 %v1656, 7
    %v1658 = vsub.s32 0, %v1657
    %v1659 = vrot.slane %v1655, %v1658
    %v1660 = vadd.f32 %v1654, %v1659
    %v1661 = vmax.f32 %v1660, 0.0
    %v1662 = vld [vmem:[#allocation23] sm:$0xf]
    %v1663 = vld [vmem:[#allocation23 + $0x4] sm:$0xf]
    %v1664 = vld [vmem:[#allocation23 + $0x8] sm:$0xf]
    %v1665 = vld [vmem:[#allocation23 + $0xc] sm:$0xf]
    %v1670 = vunpack.c.l.b16 %v1662
    %v1671 = vunpack.c.l.b16 %v1663
    %v1672 = vunpack.c.l.b16 %v1664
    %v1673 = vunpack.c.l.b16 %v1665
    %v1674 = vpack.c.b16 %v1671, %v1670
    %v1675 = vpack.c.b16 %v1673, %v1672
    %1678 = vmatprep.subr.bf16.mxu0 0
    %1679 = vmatpush1.bf16.msra.mxu0 %v1674
    %1680 = vmatprep.subr.bf16.mxu0 0
    %1681 = vmatpush1.bf16.msra.mxu0 %v1675
    %1682 = vmatprep.subr.bf16.mxu0 0
    %1683 = vmatpush1.bf16.msra.mxu0 0
    %1684 = vmatprep.subr.bf16.mxu0 0
    %1685 = vmatpush1.bf16.msra.mxu0 0
    %1686 = vmatprep.subr.bf16.mxu0 0
    %1687 = vmatpush1.bf16.msra.mxu0 0
    %1688 = vmatprep.subr.bf16.mxu0 0
    %1689 = vmatpush1.bf16.msra.mxu0 0
    %1690 = vmatprep.subr.bf16.mxu0 0
    %1691 = vmatpush1.bf16.msra.mxu0 0
    %1692 = vmatprep.subr.bf16.mxu0 0
    %1693 = vmatpush1.bf16.msra.mxu0 0
    %1694 = vmatprep.subr.bf16.mxu0 0
    %1695 = vmatpush1.bf16.msra.mxu0 0
    %1696 = vmatprep.subr.bf16.mxu0 0
    %1697 = vmatpush1.bf16.msra.mxu0 0
    %1698 = vmatprep.subr.bf16.mxu0 0
    %1699 = vmatpush1.bf16.msra.mxu0 0
    %1700 = vmatprep.subr.bf16.mxu0 0
    %1701 = vmatpush1.bf16.msra.mxu0 0
    %1702 = vmatprep.subr.bf16.mxu0 0
    %1703 = vmatpush1.bf16.msra.mxu0 0
    %1704 = vmatprep.subr.bf16.mxu0 0
    %1705 = vmatpush1.bf16.msra.mxu0 0
    %1706 = vmatprep.subr.bf16.mxu0 0
    %1707 = vmatpush1.bf16.msra.mxu0 0
    %1708 = vmatprep.subr.bf16.mxu0 0
    %1709 = vmatpush1.bf16.msra.mxu0 0
    %1710 = vmatprep.mubr.bf16.mxu0 0
    %1711 = vmatmul.mubr.bf16.gmra.mrb[0].mxu0 %v1338
    %v1712 = vpop.f32.mrb[0].mxu0
    %v1713 = vadd.f32 0.0, %v1712
    %v1714 = vpop.f32.mrb[0].mxu0
    %v1715 = vpop.f32.mrb[0].mxu0
    %v1716 = vpop.f32.mrb[0].mxu0
    %1717 = vdwg.mxu0
    %v1718 = vmul.f32 %v1318, %v1713
    %v1719 = vpack.c.bf16 %v1718, %v1718
    %v1721 = vsel %vm359, %v1719, 0
    %1723 = vmatprep.subr.bf16.mxu0 0
    %1724 = vmatpush1.bf16.msra.mxu0 %v1721
    %1725 = vmatprep.subr.bf16.mxu0 0
    %1726 = vmatpush1.bf16.msra.mxu0 0
    %1727 = vmatprep.subr.bf16.mxu0 0
    %1728 = vmatpush1.bf16.msra.mxu0 0
    %1729 = vmatprep.subr.bf16.mxu0 0
    %1730 = vmatpush1.bf16.msra.mxu0 0
    %1731 = vmatprep.subr.bf16.mxu0 0
    %1732 = vmatpush1.bf16.msra.mxu0 0
    %1733 = vmatprep.subr.bf16.mxu0 0
    %1734 = vmatpush1.bf16.msra.mxu0 0
    %1735 = vmatprep.subr.bf16.mxu0 0
    %1736 = vmatpush1.bf16.msra.mxu0 0
    %1737 = vmatprep.subr.bf16.mxu0 0
    %1738 = vmatpush1.bf16.msra.mxu0 0
    %1739 = vmatprep.subr.bf16.mxu0 0
    %1740 = vmatpush1.bf16.msra.mxu0 0
    %1741 = vmatprep.subr.bf16.mxu0 0
    %1742 = vmatpush1.bf16.msra.mxu0 0
    %1743 = vmatprep.subr.bf16.mxu0 0
    %1744 = vmatpush1.bf16.msra.mxu0 0
    %1745 = vmatprep.subr.bf16.mxu0 0
    %1746 = vmatpush1.bf16.msra.mxu0 0
    %1747 = vmatprep.subr.bf16.mxu0 0
    %1748 = vmatpush1.bf16.msra.mxu0 0
    %1749 = vmatprep.subr.bf16.mxu0 0
    %1750 = vmatpush1.bf16.msra.mxu0 0
    %1751 = vmatprep.subr.bf16.mxu0 0
    %1752 = vmatpush1.bf16.msra.mxu0 0
    %1753 = vmatprep.subr.bf16.mxu0 0
    %1754 = vmatpush1.bf16.msra.mxu0 0
    %1755 = vmatprep.mubr.bf16.mxu0 0
    %1756 = vmatmul.mubr.bf16.gmra.mrb[0].mxu0 %v1383
    %v1757 = vpop.f32.mrb[0].mxu0
    %v1758 = vadd.f32 %v1718, %v1757
    %v1759 = vpop.f32.mrb[0].mxu0
    %v1760 = vpop.f32.mrb[0].mxu0
    %v1761 = vpop.f32.mrb[0].mxu0
    %1762 = vdwg.mxu0
    %v1763 = vmul.f32 %v1318, %v1758
    %v1764 = vld [vmem:[#allocation8 + $0x9] sm:$0x1]
    %v1765 = vlaneseq
    %v1766 = vshrl.u32 %v1765, 7
    %v1767 = vsub.s32 0, %v1766
    %v1768 = vrot.slane %v1764, %v1767
    %v1769 = vadd.f32 %v1763, %v1768
    %v1770 = vmax.f32 %v1769, 0.0
    %v1771 = vld [vmem:[#allocation24] sm:$0xf]
    %v1772 = vld [vmem:[#allocation24 + $0x4] sm:$0xf]
    %v1773 = vld [vmem:[#allocation24 + $0x8] sm:$0xf]
    %v1774 = vld [vmem:[#allocation24 + $0xc] sm:$0xf]
    %v1775 = vpack.c.bf16 %v1770, %v1770
    %v1780 = vunpack.c.l.b16 %v1771
    %v1781 = vunpack.c.l.b16 %v1772
    %v1782 = vunpack.c.l.b16 %v1773
    %v1783 = vunpack.c.l.b16 %v1774
    %v1784 = vpack.c.b16 %v1781, %v1780
    %v1785 = vpack.c.b16 %v1783, %v1782
    %v1789 = vsel %vm479, %v1775, 0
    %1791 = vmatprep.subr.bf16.mxu0 0
    %1792 = vmatpush1.bf16.msra.mxu0 %v1784
    %1793 = vmatprep.subr.bf16.mxu0 0
    %1794 = vmatpush1.bf16.msra.mxu0 %v1785
    %1795 = vmatprep.subr.bf16.mxu0 0
    %1796 = vmatpush1.bf16.msra.mxu0 0
    %1797 = vmatprep.subr.bf16.mxu0 0
    %1798 = vmatpush1.bf16.msra.mxu0 0
    %1799 = vmatprep.subr.bf16.mxu0 0
    %1800 = vmatpush1.bf16.msra.mxu0 0
    %1801 = vmatprep.subr.bf16.mxu0 0
    %1802 = vmatpush1.bf16.msra.mxu0 0
    %1803 = vmatprep.subr.bf16.mxu0 0
    %1804 = vmatpush1.bf16.msra.mxu0 0
    %1805 = vmatprep.subr.bf16.mxu0 0
    %1806 = vmatpush1.bf16.msra.mxu0 0
    %1807 = vmatprep.subr.bf16.mxu0 0
    %1808 = vmatpush1.bf16.msra.mxu0 0
    %1809 = vmatprep.subr.bf16.mxu0 0
    %1810 = vmatpush1.bf16.msra.mxu0 0
    %1811 = vmatprep.subr.bf16.mxu0 0
    %1812 = vmatpush1.bf16.msra.mxu0 0
    %1813 = vmatprep.subr.bf16.mxu0 0
    %1814 = vmatpush1.bf16.msra.mxu0 0
    %1815 = vmatprep.subr.bf16.mxu0 0
    %1816 = vmatpush1.bf16.msra.mxu0 0
    %1817 = vmatprep.subr.bf16.mxu0 0
    %1818 = vmatpush1.bf16.msra.mxu0 0
    %1819 = vmatprep.subr.bf16.mxu0 0
    %1820 = vmatpush1.bf16.msra.mxu0 0
    %1821 = vmatprep.subr.bf16.mxu0 0
    %1822 = vmatpush1.bf16.msra.mxu0 0
    %1823 = vmatprep.mubr.bf16.mxu0 0
    %1824 = vmatmul.mubr.bf16.gmra.mrb[0].mxu0 %v1789
    %v1825 = vpop.f32.mrb[0].mxu0
    %v1826 = vadd.f32 0.0, %v1825
    %v1827 = vpop.f32.mrb[0].mxu0
    %v1828 = vpop.f32.mrb[0].mxu0
    %v1829 = vpop.f32.mrb[0].mxu0
    %1830 = vdwg.mxu0
    %v1831 = vmul.f32 %v1318, %v1826
    %v1832 = vpack.c.bf16 %v1831, %v1831
    %v1834 = vsel %vm359, %v1832, 0
    %1836 = vmatprep.subr.bf16.mxu0 0
    %1837 = vmatpush1.bf16.msra.mxu0 %v1834
    %1838 = vmatprep.subr.bf16.mxu0 0
    %1839 = vmatpush1.bf16.msra.mxu0 0
    %1840 = vmatprep.subr.bf16.mxu0 0
    %1841 = vmatpush1.bf16.msra.mxu0 0
    %1842 = vmatprep.subr.bf16.mxu0 0
    %1843 = vmatpush1.bf16.msra.mxu0 0
    %1844 = vmatprep.subr.bf16.mxu0 0
    %1845 = vmatpush1.bf16.msra.mxu0 0
    %1846 = vmatprep.subr.bf16.mxu0 0
    %1847 = vmatpush1.bf16.msra.mxu0 0
    %1848 = vmatprep.subr.bf16.mxu0 0
    %1849 = vmatpush1.bf16.msra.mxu0 0
    %1850 = vmatprep.subr.bf16.mxu0 0
    %1851 = vmatpush1.bf16.msra.mxu0 0
    %1852 = vmatprep.subr.bf16.mxu0 0
    %1853 = vmatpush1.bf16.msra.mxu0 0
    %1854 = vmatprep.subr.bf16.mxu0 0
    %1855 = vmatpush1.bf16.msra.mxu0 0
    %1856 = vmatprep.subr.bf16.mxu0 0
    %1857 = vmatpush1.bf16.msra.mxu0 0
    %1858 = vmatprep.subr.bf16.mxu0 0
    %1859 = vmatpush1.bf16.msra.mxu0 0
    %1860 = vmatprep.subr.bf16.mxu0 0
    %1861 = vmatpush1.bf16.msra.mxu0 0
    %1862 = vmatprep.subr.bf16.mxu0 0
    %1863 = vmatpush1.bf16.msra.mxu0 0
    %1864 = vmatprep.subr.bf16.mxu0 0
    %1865 = vmatpush1.bf16.msra.mxu0 0
    %1866 = vmatprep.subr.bf16.mxu0 0
    %1867 = vmatpush1.bf16.msra.mxu0 0
    %1868 = vmatprep.mubr.bf16.mxu0 0
    %1869 = vmatmul.mubr.bf16.gmra.mrb[0].mxu0 %v1383
    %v1870 = vpop.f32.mrb[0].mxu0
    %v1871 = vadd.f32 %v1831, %v1870
    %v1872 = vpop.f32.mrb[0].mxu0
    %v1873 = vpop.f32.mrb[0].mxu0
    %v1874 = vpop.f32.mrb[0].mxu0
    %1875 = vdwg.mxu0
    %v1876 = vmul.f32 %v1318, %v1871
    %v1877 = vld [vmem:[#allocation8 + $0xa] sm:$0x1]
    %v1878 = vlaneseq
    %v1879 = vshrl.u32 %v1878, 7
    %v1880 = vsub.s32 0, %v1879
    %v1881 = vrot.slane %v1877, %v1880
    %v1882 = vadd.f32 %v1876, %v1881
    %v1883 = vmax.f32 %v1882, 0.0
    %v1884 = vld [vmem:[#allocation26] sm:$0xf]
    %v1885 = vld [vmem:[#allocation26 + $0x4] sm:$0xf]
    %v1886 = vld [vmem:[#allocation26 + $0x8] sm:$0xf]
    %v1887 = vld [vmem:[#allocation26 + $0xc] sm:$0xf]
    %v1888 = vpack.c.bf16 %v1883, %v1883
    %v1893 = vunpack.c.l.b16 %v1884
    %v1894 = vunpack.c.l.b16 %v1885
    %v1895 = vunpack.c.l.b16 %v1886
    %v1896 = vunpack.c.l.b16 %v1887
    %v1897 = vpack.c.b16 %v1894, %v1893
    %v1898 = vpack.c.b16 %v1896, %v1895
    %v1902 = vsel %vm479, %v1888, 0
    %1904 = vmatprep.subr.bf16.mxu0 0
    %1905 = vmatpush1.bf16.msra.mxu0 %v1897
    %1906 = vmatprep.subr.bf16.mxu0 0
    %1907 = vmatpush1.bf16.msra.mxu0 %v1898
    %1908 = vmatprep.subr.bf16.mxu0 0
    %1909 = vmatpush1.bf16.msra.mxu0 0
    %1910 = vmatprep.subr.bf16.mxu0 0
    %1911 = vmatpush1.bf16.msra.mxu0 0
    %1912 = vmatprep.subr.bf16.mxu0 0
    %1913 = vmatpush1.bf16.msra.mxu0 0
    %1914 = vmatprep.subr.bf16.mxu0 0
    %1915 = vmatpush1.bf16.msra.mxu0 0
    %1916 = vmatprep.subr.bf16.mxu0 0
    %1917 = vmatpush1.bf16.msra.mxu0 0
    %1918 = vmatprep.subr.bf16.mxu0 0
    %1919 = vmatpush1.bf16.msra.mxu0 0
    %1920 = vmatprep.subr.bf16.mxu0 0
    %1921 = vmatpush1.bf16.msra.mxu0 0
    %1922 = vmatprep.subr.bf16.mxu0 0
    %1923 = vmatpush1.bf16.msra.mxu0 0
    %1924 = vmatprep.subr.bf16.mxu0 0
    %1925 = vmatpush1.bf16.msra.mxu0 0
    %1926 = vmatprep.subr.bf16.mxu0 0
    %1927 = vmatpush1.bf16.msra.mxu0 0
    %1928 = vmatprep.subr.bf16.mxu0 0
    %1929 = vmatpush1.bf16.msra.mxu0 0
    %1930 = vmatprep.subr.bf16.mxu0 0
    %1931 = vmatpush1.bf16.msra.mxu0 0
    %1932 = vmatprep.subr.bf16.mxu0 0
    %1933 = vmatpush1.bf16.msra.mxu0 0
    %1934 = vmatprep.subr.bf16.mxu0 0
    %1935 = vmatpush1.bf16.msra.mxu0 0
    %1936 = vmatprep.mubr.bf16.mxu0 0
    %1937 = vmatmul.mubr.bf16.gmra.mrb[0].mxu0 %v1902
    %v1938 = vpop.f32.mrb[0].mxu0
    %v1939 = vadd.f32 0.0, %v1938
    %v1940 = vpop.f32.mrb[0].mxu0
    %v1941 = vpop.f32.mrb[0].mxu0
    %v1942 = vpop.f32.mrb[0].mxu0
    %1943 = vdwg.mxu0
    %v1944 = vmul.f32 %v1318, %v1939
    %v1945 = vpack.c.bf16 %v1944, %v1944
    %v1947 = vsel %vm359, %v1945, 0
    %1949 = vmatprep.subr.bf16.mxu0 0
    %1950 = vmatpush1.bf16.msra.mxu0 %v1947
    %1951 = vmatprep.subr.bf16.mxu0 0
    %1952 = vmatpush1.bf16.msra.mxu0 0
    %1953 = vmatprep.subr.bf16.mxu0 0
    %1954 = vmatpush1.bf16.msra.mxu0 0
    %1955 = vmatprep.subr.bf16.mxu0 0
    %1956 = vmatpush1.bf16.msra.mxu0 0
    %1957 = vmatprep.subr.bf16.mxu0 0
    %1958 = vmatpush1.bf16.msra.mxu0 0
    %1959 = vmatprep.subr.bf16.mxu0 0
    %1960 = vmatpush1.bf16.msra.mxu0 0
    %1961 = vmatprep.subr.bf16.mxu0 0
    %1962 = vmatpush1.bf16.msra.mxu0 0
    %1963 = vmatprep.subr.bf16.mxu0 0
    %1964 = vmatpush1.bf16.msra.mxu0 0
    %1965 = vmatprep.subr.bf16.mxu0 0
    %1966 = vmatpush1.bf16.msra.mxu0 0
    %1967 = vmatprep.subr.bf16.mxu0 0
    %1968 = vmatpush1.bf16.msra.mxu0 0
    %1969 = vmatprep.subr.bf16.mxu0 0
    %1970 = vmatpush1.bf16.msra.mxu0 0
    %1971 = vmatprep.subr.bf16.mxu0 0
    %1972 = vmatpush1.bf16.msra.mxu0 0
    %1973 = vmatprep.subr.bf16.mxu0 0
    %1974 = vmatpush1.bf16.msra.mxu0 0
    %1975 = vmatprep.subr.bf16.mxu0 0
    %1976 = vmatpush1.bf16.msra.mxu0 0
    %1977 = vmatprep.subr.bf16.mxu0 0
    %1978 = vmatpush1.bf16.msra.mxu0 0
    %1979 = vmatprep.subr.bf16.mxu0 0
    %1980 = vmatpush1.bf16.msra.mxu0 0
    %1981 = vmatprep.mubr.bf16.mxu0 0
    %1982 = vmatmul.mubr.bf16.gmra.mrb[0].mxu0 %v1383
    %v1983 = vpop.f32.mrb[0].mxu0
    %v1984 = vadd.f32 %v1944, %v1983
    %v1985 = vpop.f32.mrb[0].mxu0
    %v1986 = vpop.f32.mrb[0].mxu0
    %v1987 = vpop.f32.mrb[0].mxu0
    %1988 = vdwg.mxu0
    %v1989 = vmul.f32 %v1318, %v1984
    %v1990 = vld [vmem:[#allocation8 + $0xb] sm:$0x1]
    %v1991 = vlaneseq
    %v1992 = vshrl.u32 %v1991, 7
    %v1993 = vsub.s32 0, %v1992
    %v1994 = vrot.slane %v1990, %v1993
    %v1995 = vadd.f32 %v1989, %v1994
    %v1996 = vmax.f32 %v1995, 0.0
    %vm1997 = vcmask 31744
    %v1998 = vsel %vm1997, %v1661, -inf
    %1999 = vmax.xlane.f32.xlu0 %v1998
    %v2000 = vpop.xlane.xlu0 %1999
    %v2001 = vsub.f32 %v1661, %v2000
    %v2002 = vmul.f32 %v2001, 1.442695
    %v2003 = vpow.pop %v2002
    %v2004 = vsel %vm1997, %v2003, 0.0
    %2005 = vadd.xlane.f32.xlu0 %v2004
    %v2006 = vpop.xlane.xlu0 %2005
    %v2007 = vrcp.pop %v2006
    %v2008 = vmul.f32 %v2003, %v2007
    %v2009 = vlog2.pop %v2006
    %v2010 = vmul.f32 %v2009, 0.6931472
    %v2011 = vsub.f32 %v2001, %v2010
    %v2012 = vsub.f32 0.0, %v2008
    %v2013 = vmul.f32 %v2012, %v2011
    %v2014 = vsel %vm1997, %v2013, 0.0
    %2015 = vadd.xlane.f32.xlu0 %v2014
    %v2016 = vpop.xlane.xlu0 %2015
    %v2017 = vrot.slane %v2016, 4
    %v2018 = vadd.f32 %v2016, %v2017
    %v2019 = vrot.slane %v2018, 2
    %v2020 = vadd.f32 %v2018, %v2019
    %v2021 = vrot.slane %v2020, 1
    %v2022 = vadd.f32 %v2020, %v2021
    %s2023 = vtos %v2022
    %v2024 = vstv %s2023
    %v2025 = vrcp.pop 8.0
    %v2026 = vmul.f32 %v2024, %v2025
    %v2027 = vadd.f32 %v1074, %v2026
    %v2028 = vpack.c.bf16 %v2008, %v2008
    %v2030 = vsel %vm359, %v2028, 0
    %2032 = vmatprep.subr.bf16.mxu0 0
    %2033 = vmatpush1.bf16.msra.mxu0 %v2030
    %2034 = vmatprep.subr.bf16.mxu0 0
    %2035 = vmatpush1.bf16.msra.mxu0 0
    %2036 = vmatprep.subr.bf16.mxu0 0
    %2037 = vmatpush1.bf16.msra.mxu0 0
    %2038 = vmatprep.subr.bf16.mxu0 0
    %2039 = vmatpush1.bf16.msra.mxu0 0
    %2040 = vmatprep.subr.bf16.mxu0 0
    %2041 = vmatpush1.bf16.msra.mxu0 0
    %2042 = vmatprep.subr.bf16.mxu0 0
    %2043 = vmatpush1.bf16.msra.mxu0 0
    %2044 = vmatprep.subr.bf16.mxu0 0
    %2045 = vmatpush1.bf16.msra.mxu0 0
    %2046 = vmatprep.subr.bf16.mxu0 0
    %2047 = vmatpush1.bf16.msra.mxu0 0
    %2048 = vmatprep.subr.bf16.mxu0 0
    %2049 = vmatpush1.bf16.msra.mxu0 0
    %2050 = vmatprep.subr.bf16.mxu0 0
    %2051 = vmatpush1.bf16.msra.mxu0 0
    %2052 = vmatprep.subr.bf16.mxu0 0
    %2053 = vmatpush1.bf16.msra.mxu0 0
    %2054 = vmatprep.subr.bf16.mxu0 0
    %2055 = vmatpush1.bf16.msra.mxu0 0
    %2056 = vmatprep.subr.bf16.mxu0 0
    %2057 = vmatpush1.bf16.msra.mxu0 0
    %2058 = vmatprep.subr.bf16.mxu0 0
    %2059 = vmatpush1.bf16.msra.mxu0 0
    %2060 = vmatprep.subr.bf16.mxu0 0
    %2061 = vmatpush1.bf16.msra.mxu0 0
    %2062 = vmatprep.subr.bf16.mxu0 0
    %2063 = vmatpush1.bf16.msra.mxu0 0
    %2064 = vmatprep.mubr.bf16.mxu0 0
    %2065 = vmatmul.mubr.bf16.gmra.mrb[0].mxu0 %v1383
    %v2066 = vpop.f32.mrb[0].mxu0
    %v2067 = vadd.f32 0.0, %v2066
    %v2068 = vpop.f32.mrb[0].mxu0
    %v2069 = vpop.f32.mrb[0].mxu0
    %v2070 = vpop.f32.mrb[0].mxu0
    %2071 = vdwg.mxu0
    %v2072 = vpack.c.bf16 %v2067, %v2067
    %2073 = vxpose.xlu0.c.b16.start [1/8] %v2028, 128
    %2074 = vxpose.xlu0.c.b16.cont [2/8] 0, 128
    %2075 = vxpose.xlu0.c.b16.cont [3/8] 0, 128
    %2076 = vxpose.xlu0.c.b16.cont [4/8] 0, 128
    %2077 = vxpose.xlu0.c.b16.cont [5/8] 0, 128
    %2078 = vxpose.xlu0.c.b16.cont [6/8] 0, 128
    %2079 = vxpose.xlu0.c.b16.cont [7/8] 0, 128
    %2080 = vxpose.xlu0.c.b16.end [8/8] 0, 128
    %v2081 = vpop.trf.xlu0
    %v2082 = vpop.trf.xlu0
    %v2083 = vpop.trf.xlu0
    %v2084 = vpop.trf.xlu0
    %v2085 = vpop.trf.xlu0
    %v2086 = vpop.trf.xlu0
    %v2087 = vpop.trf.xlu0
    %v2088 = vpop.trf.xlu0
    %v2090 = vsel %vm355, %v2081, 0
    %v2093 = vsel %vm359, %v2072, 0
    %2095 = vmatprep.subr.bf16.mxu0 0
    %2096 = vmatpush1.bf16.msra.mxu0 %v2093
    %2097 = vmatprep.subr.bf16.mxu0 0
    %2098 = vmatpush1.bf16.msra.mxu0 0
    %2099 = vmatprep.subr.bf16.mxu0 0
    %2100 = vmatpush1.bf16.msra.mxu0 0
    %2101 = vmatprep.subr.bf16.mxu0 0
    %2102 = vmatpush1.bf16.msra.mxu0 0
    %2103 = vmatprep.subr.bf16.mxu0 0
    %2104 = vmatpush1.bf16.msra.mxu0 0
    %2105 = vmatprep.subr.bf16.mxu0 0
    %2106 = vmatpush1.bf16.msra.mxu0 0
    %2107 = vmatprep.subr.bf16.mxu0 0
    %2108 = vmatpush1.bf16.msra.mxu0 0
    %2109 = vmatprep.subr.bf16.mxu0 0
    %2110 = vmatpush1.bf16.msra.mxu0 0
    %2111 = vmatprep.subr.bf16.mxu0 0
    %2112 = vmatpush1.bf16.msra.mxu0 0
    %2113 = vmatprep.subr.bf16.mxu0 0
    %2114 = vmatpush1.bf16.msra.mxu0 0
    %2115 = vmatprep.subr.bf16.mxu0 0
    %2116 = vmatpush1.bf16.msra.mxu0 0
    %2117 = vmatprep.subr.bf16.mxu0 0
    %2118 = vmatpush1.bf16.msra.mxu0 0
    %2119 = vmatprep.subr.bf16.mxu0 0
    %2120 = vmatpush1.bf16.msra.mxu0 0
    %2121 = vmatprep.subr.bf16.mxu0 0
    %2122 = vmatpush1.bf16.msra.mxu0 0
    %2123 = vmatprep.subr.bf16.mxu0 0
    %2124 = vmatpush1.bf16.msra.mxu0 0
    %2125 = vmatprep.subr.bf16.mxu0 0
    %2126 = vmatpush1.bf16.msra.mxu0 0
    %2127 = vmatprep.mubr.bf16.mxu0 0
    %2128 = vmatmul.mubr.bf16.gmra.mrb[0].mxu0 %v2090
    %v2129 = vpop.f32.mrb[0].mxu0
    %v2130 = vadd.f32 0.0, %v2129
    %v2131 = vpop.f32.mrb[0].mxu0
    %v2132 = vpop.f32.mrb[0].mxu0
    %v2133 = vpop.f32.mrb[0].mxu0
    %2134 = vdwg.mxu0
    %v2135 = vpack.c.bf16 %v1996, %v1996
    %v2137 = vsel %vm359, %v2135, 0
    %2139 = vmatprep.subr.bf16.mxu0 0
    %2140 = vmatpush1.bf16.msra.mxu0 %v2137
    %2141 = vmatprep.subr.bf16.mxu0 0
    %2142 = vmatpush1.bf16.msra.mxu0 0
    %2143 = vmatprep.subr.bf16.mxu0 0
    %2144 = vmatpush1.bf16.msra.mxu0 0
    %2145 = vmatprep.subr.bf16.mxu0 0
    %2146 = vmatpush1.bf16.msra.mxu0 0
    %2147 = vmatprep.subr.bf16.mxu0 0
    %2148 = vmatpush1.bf16.msra.mxu0 0
    %2149 = vmatprep.subr.bf16.mxu0 0
    %2150 = vmatpush1.bf16.msra.mxu0 0
    %2151 = vmatprep.subr.bf16.mxu0 0
    %2152 = vmatpush1.bf16.msra.mxu0 0
    %2153 = vmatprep.subr.bf16.mxu0 0
    %2154 = vmatpush1.bf16.msra.mxu0 0
    %2155 = vmatprep.subr.bf16.mxu0 0
    %2156 = vmatpush1.bf16.msra.mxu0 0
    %2157 = vmatprep.subr.bf16.mxu0 0
    %2158 = vmatpush1.bf16.msra.mxu0 0
    %2159 = vmatprep.subr.bf16.mxu0 0
    %2160 = vmatpush1.bf16.msra.mxu0 0
    %2161 = vmatprep.subr.bf16.mxu0 0
    %2162 = vmatpush1.bf16.msra.mxu0 0
    %2163 = vmatprep.subr.bf16.mxu0 0
    %2164 = vmatpush1.bf16.msra.mxu0 0
    %2165 = vmatprep.subr.bf16.mxu0 0
    %2166 = vmatpush1.bf16.msra.mxu0 0
    %2167 = vmatprep.subr.bf16.mxu0 0
    %2168 = vmatpush1.bf16.msra.mxu0 0
    %2169 = vmatprep.subr.bf16.mxu0 0
    %2170 = vmatpush1.bf16.msra.mxu0 0
    %2171 = vmatprep.mubr.bf16.mxu0 0
    %2172 = vmatmul.mubr.bf16.gmra.mrb[0].mxu0 %v2090
    %v2173 = vpop.f32.mrb[0].mxu0
    %v2174 = vadd.f32 0.0, %v2173
    %v2175 = vpop.f32.mrb[0].mxu0
    %v2176 = vpop.f32.mrb[0].mxu0
    %v2177 = vpop.f32.mrb[0].mxu0
    %2178 = vdwg.mxu0
    %2179 = vmatprep.subr.bf16.mxu0 0
    %2180 = vmatpush1.bf16.msra.mxu0 %v2030
    %2181 = vmatprep.subr.bf16.mxu0 0
    %2182 = vmatpush1.bf16.msra.mxu0 0
    %2183 = vmatprep.subr.bf16.mxu0 0
    %2184 = vmatpush1.bf16.msra.mxu0 0
    %2185 = vmatprep.subr.bf16.mxu0 0
    %2186 = vmatpush1.bf16.msra.mxu0 0
    %2187 = vmatprep.subr.bf16.mxu0 0
    %2188 = vmatpush1.bf16.msra.mxu0 0
    %2189 = vmatprep.subr.bf16.mxu0 0
    %2190 = vmatpush1.bf16.msra.mxu0 0
    %2191 = vmatprep.subr.bf16.mxu0 0
    %2192 = vmatpush1.bf16.msra.mxu0 0
    %2193 = vmatprep.subr.bf16.mxu0 0
    %2194 = vmatpush1.bf16.msra.mxu0 0
    %2195 = vmatprep.subr.bf16.mxu0 0
    %2196 = vmatpush1.bf16.msra.mxu0 0
    %2197 = vmatprep.subr.bf16.mxu0 0
    %2198 = vmatpush1.bf16.msra.mxu0 0
    %2199 = vmatprep.subr.bf16.mxu0 0
    %2200 = vmatpush1.bf16.msra.mxu0 0
    %2201 = vmatprep.subr.bf16.mxu0 0
    %2202 = vmatpush1.bf16.msra.mxu0 0
    %2203 = vmatprep.subr.bf16.mxu0 0
    %2204 = vmatpush1.bf16.msra.mxu0 0
    %2205 = vmatprep.subr.bf16.mxu0 0
    %2206 = vmatpush1.bf16.msra.mxu0 0
    %2207 = vmatprep.subr.bf16.mxu0 0
    %2208 = vmatpush1.bf16.msra.mxu0 0
    %2209 = vmatprep.subr.bf16.mxu0 0
    %2210 = vmatpush1.bf16.msra.mxu0 0
    %2211 = vmatprep.mubr.bf16.mxu0 0
    %2212 = vmatmul.mubr.bf16.gmra.mrb[0].mxu0 %v2090
    %v2213 = vpop.f32.mrb[0].mxu0
    %v2214 = vadd.f32 0.0, %v2213
    %v2215 = vpop.f32.mrb[0].mxu0
    %v2216 = vpop.f32.mrb[0].mxu0
    %v2217 = vpop.f32.mrb[0].mxu0
    %2218 = vdwg.mxu0
    %v2219 = vmul.f32 %v2008, %v2067
    %v2220 = vsel %vm1997, %v2219, 0.0
    %2221 = vadd.xlane.f32.xlu0 %v2220
    %v2222 = vpop.xlane.xlu0 %2221
    %v2223 = vrot.slane %v2222, 4
    %v2224 = vadd.f32 %v2222, %v2223
    %v2225 = vrot.slane %v2224, 2
    %v2226 = vadd.f32 %v2224, %v2225
    %v2227 = vrot.slane %v2226, 1
    %v2228 = vadd.f32 %v2226, %v2227
    %s2229 = vtos %v2228
    %v2230 = vstv %s2229
    %v2231 = vmul.f32 %v1172, %v1172
    %v2232 = vsel %vm355, %v2231, 0.0
    %2233 = vadd.xlane.f32.xlu0 %v2232
    %v2234 = vpop.xlane.xlu0 %2233
    %v2235 = vrot.slane %v2234, 4
    %v2236 = vadd.f32 %v2234, %v2235
    %v2237 = vrot.slane %v2236, 2
    %v2238 = vadd.f32 %v2236, %v2237
    %v2239 = vrot.slane %v2238, 1
    %v2240 = vadd.f32 %v2238, %v2239
    %s2241 = vtos %v2240
    %v2242 = vstv %s2241
    %v2243 = vmul.f32 %v2214, %v2214
    %vm2244 = vcmask 27648
    %v2245 = vsel %vm2244, %v2243, 0.0
    %2246 = vadd.xlane.f32.xlu0 %v2245
    %v2247 = vpop.xlane.xlu0 %2246
    %v2248 = vrot.slane %v2247, 4
    %v2249 = vadd.f32 %v2247, %v2248
    %v2250 = vrot.slane %v2249, 2
    %v2251 = vadd.f32 %v2249, %v2250
    %v2252 = vrot.slane %v2251, 1
    %v2253 = vadd.f32 %v2251, %v2252
    %s2254 = vtos %v2253
    %v2255 = vstv %s2254
    %v2256 = vadd.f32 %v2242, %v2255
    %v2257 = vmul.f32 %v2230, 2.0
    %v2258 = vsub.f32 %v2256, %v2257
    %v2259 = vmax.f32 %v2258, 0.0
    %v2260 = vrsqrt.pop %v2259
    %v2261 = vmul.f32 %v2259, %v2260
    %vm2262 = vcmp.eq.f32.partialorder %v2259, inf
    %v2263 = vsel %vm2262, %v2259, %v2261
    %vm2264 = vcmp.eq.f32.partialorder %v2259, 0.0
    %v2265 = vand.u32 %v2259, 2147483648
    %v2266 = vsel %vm2264, %v2265, %v2263
    %v2267 = vrcp.pop 64.0
    %v2268 = vmul.f32 %v2266, %v2267
    %v2269 = vadd.f32 %v1313, %v2268
    %v2270 = vsel %vm2244, %v2130, 0.0
    %2271 = vadd.xlane.f32.xlu0 %v2270
    %v2272 = vpop.xlane.xlu0 %2271
    %v2273 = vadd.f32 %v2272, 1.0
    %v2274 = vrsqrt.pop %v2273
    %v2275 = vpack.c.bf16 %v2130, %v2130
    %v2276 = vld [vmem:[#allocation27] sm:$0xf]
    %v2277 = vld [vmem:[#allocation27 + $0x4] sm:$0xf]
    %v2278 = vld [vmem:[#allocation27 + $0x8] sm:$0xf]
    %v2279 = vld [vmem:[#allocation27 + $0xc] sm:$0xf]
    %v2280 = vpack.c.bf16 %v2174, %v2174
    %v2285 = vunpack.c.l.b16 %v2276
    %v2286 = vunpack.c.l.b16 %v2277
    %v2287 = vunpack.c.l.b16 %v2278
    %v2288 = vunpack.c.l.b16 %v2279
    %v2289 = vpack.c.b16 %v2286, %v2285
    %v2290 = vpack.c.b16 %v2288, %v2287
    %v2294 = vsel %vm479, %v2280, 0
    %2296 = vmatprep.subr.bf16.mxu0 0
    %2297 = vmatpush1.bf16.msra.mxu0 %v2289
    %2298 = vmatprep.subr.bf16.mxu0 0
    %2299 = vmatpush1.bf16.msra.mxu0 %v2290
    %2300 = vmatprep.subr.bf16.mxu0 0
    %2301 = vmatpush1.bf16.msra.mxu0 0
    %2302 = vmatprep.subr.bf16.mxu0 0
    %2303 = vmatpush1.bf16.msra.mxu0 0
    %2304 = vmatprep.subr.bf16.mxu0 0
    %2305 = vmatpush1.bf16.msra.mxu0 0
    %2306 = vmatprep.subr.bf16.mxu0 0
    %2307 = vmatpush1.bf16.msra.mxu0 0
    %2308 = vmatprep.subr.bf16.mxu0 0
    %2309 = vmatpush1.bf16.msra.mxu0 0
    %2310 = vmatprep.subr.bf16.mxu0 0
    %2311 = vmatpush1.bf16.msra.mxu0 0
    %2312 = vmatprep.subr.bf16.mxu0 0
    %2313 = vmatpush1.bf16.msra.mxu0 0
    %2314 = vmatprep.subr.bf16.mxu0 0
    %2315 = vmatpush1.bf16.msra.mxu0 0
    %2316 = vmatprep.subr.bf16.mxu0 0
    %2317 = vmatpush1.bf16.msra.mxu0 0
    %2318 = vmatprep.subr.bf16.mxu0 0
    %2319 = vmatpush1.bf16.msra.mxu0 0
    %2320 = vmatprep.subr.bf16.mxu0 0
    %2321 = vmatpush1.bf16.msra.mxu0 0
    %2322 = vmatprep.subr.bf16.mxu0 0
    %2323 = vmatpush1.bf16.msra.mxu0 0
    %2324 = vmatprep.subr.bf16.mxu0 0
    %2325 = vmatpush1.bf16.msra.mxu0 0
    %2326 = vmatprep.subr.bf16.mxu0 0
    %2327 = vmatpush1.bf16.msra.mxu0 0
    %2328 = vmatprep.mubr.bf16.mxu0 0
    %2329 = vmatmul.mubr.bf16.gmra.mrb[0].mxu0 %v2294
    %v2330 = vpop.f32.mrb[0].mxu0
    %v2331 = vadd.f32 0.0, %v2330
    %v2332 = vpop.f32.mrb[0].mxu0
    %v2333 = vpop.f32.mrb[0].mxu0
    %v2334 = vpop.f32.mrb[0].mxu0
    %2335 = vdwg.mxu0
    %v2336 = vmul.f32 %v2274, %v2331
    %v2337 = vpack.c.bf16 %v2336, %v2336
    %v2339 = vsel %vm1997, %v2275, 0
    %vm2341 = vcmask 1041408
    %v2343 = vsel %vm2341, %v2337, 0
    %2345 = vmatprep.subr.bf16.mxu0 0
    %2346 = vmatpush1.bf16.msra.mxu0 %v2343
    %2347 = vmatprep.subr.bf16.mxu0 0
    %2348 = vmatpush1.bf16.msra.mxu0 0
    %2349 = vmatprep.subr.bf16.mxu0 0
    %2350 = vmatpush1.bf16.msra.mxu0 0
    %2351 = vmatprep.subr.bf16.mxu0 0
    %2352 = vmatpush1.bf16.msra.mxu0 0
    %2353 = vmatprep.subr.bf16.mxu0 0
    %2354 = vmatpush1.bf16.msra.mxu0 0
    %2355 = vmatprep.subr.bf16.mxu0 0
    %2356 = vmatpush1.bf16.msra.mxu0 0
    %2357 = vmatprep.subr.bf16.mxu0 0
    %2358 = vmatpush1.bf16.msra.mxu0 0
    %2359 = vmatprep.subr.bf16.mxu0 0
    %2360 = vmatpush1.bf16.msra.mxu0 0
    %2361 = vmatprep.subr.bf16.mxu0 0
    %2362 = vmatpush1.bf16.msra.mxu0 0
    %2363 = vmatprep.subr.bf16.mxu0 0
    %2364 = vmatpush1.bf16.msra.mxu0 0
    %2365 = vmatprep.subr.bf16.mxu0 0
    %2366 = vmatpush1.bf16.msra.mxu0 0
    %2367 = vmatprep.subr.bf16.mxu0 0
    %2368 = vmatpush1.bf16.msra.mxu0 0
    %2369 = vmatprep.subr.bf16.mxu0 0
    %2370 = vmatpush1.bf16.msra.mxu0 0
    %2371 = vmatprep.subr.bf16.mxu0 0
    %2372 = vmatpush1.bf16.msra.mxu0 0
    %2373 = vmatprep.subr.bf16.mxu0 0
    %2374 = vmatpush1.bf16.msra.mxu0 0
    %2375 = vmatprep.subr.bf16.mxu0 0
    %2376 = vmatpush1.bf16.msra.mxu0 0
    %2377 = vmatprep.mubr.bf16.mxu0 0
    %2378 = vmatmul.mubr.bf16.gmra.mrb[0].mxu0 %v2339
    %v2379 = vpop.f32.mrb[0].mxu0
    %v2380 = vadd.f32 %v2336, %v2379
    %v2381 = vpop.f32.mrb[0].mxu0
    %v2382 = vpop.f32.mrb[0].mxu0
    %v2383 = vpop.f32.mrb[0].mxu0
    %2384 = vdwg.mxu0
    %v2385 = vmul.f32 %v2274, %v2380
    %v2386 = vld [vmem:[#allocation8 + $0xc] sm:$0x1]
    %v2387 = vlaneseq
    %v2388 = vshrl.u32 %v2387, 7
    %v2389 = vsub.s32 0, %v2388
    %v2390 = vrot.slane %v2386, %v2389
    %v2391 = vadd.f32 %v2385, %v2390
    %v2392 = vmax.f32 %v2391, 0.0
    %v2393 = vld [vmem:[#allocation29] sm:$0xf]
    %v2394 = vld [vmem:[#allocation29 + $0x4] sm:$0xf]
    %v2395 = vld [vmem:[#allocation29 + $0x8] sm:$0xf]
    %v2396 = vld [vmem:[#allocation29 + $0xc] sm:$0xf]
    %v2397 = vpack.c.bf16 %v2392, %v2392
    %v2402 = vunpack.c.l.b16 %v2393
    %v2403 = vunpack.c.l.b16 %v2394
    %v2404 = vunpack.c.l.b16 %v2395
    %v2405 = vunpack.c.l.b16 %v2396
    %v2406 = vpack.c.b16 %v2403, %v2402
    %v2407 = vpack.c.b16 %v2405, %v2404
    %v2411 = vsel %vm479, %v2397, 0
    %2413 = vmatprep.subr.bf16.mxu0 0
    %2414 = vmatpush1.bf16.msra.mxu0 %v2406
    %2415 = vmatprep.subr.bf16.mxu0 0
    %2416 = vmatpush1.bf16.msra.mxu0 %v2407
    %2417 = vmatprep.subr.bf16.mxu0 0
    %2418 = vmatpush1.bf16.msra.mxu0 0
    %2419 = vmatprep.subr.bf16.mxu0 0
    %2420 = vmatpush1.bf16.msra.mxu0 0
    %2421 = vmatprep.subr.bf16.mxu0 0
    %2422 = vmatpush1.bf16.msra.mxu0 0
    %2423 = vmatprep.subr.bf16.mxu0 0
    %2424 = vmatpush1.bf16.msra.mxu0 0
    %2425 = vmatprep.subr.bf16.mxu0 0
    %2426 = vmatpush1.bf16.msra.mxu0 0
    %2427 = vmatprep.subr.bf16.mxu0 0
    %2428 = vmatpush1.bf16.msra.mxu0 0
    %2429 = vmatprep.subr.bf16.mxu0 0
    %2430 = vmatpush1.bf16.msra.mxu0 0
    %2431 = vmatprep.subr.bf16.mxu0 0
    %2432 = vmatpush1.bf16.msra.mxu0 0
    %2433 = vmatprep.subr.bf16.mxu0 0
    %2434 = vmatpush1.bf16.msra.mxu0 0
    %2435 = vmatprep.subr.bf16.mxu0 0
    %2436 = vmatpush1.bf16.msra.mxu0 0
    %2437 = vmatprep.subr.bf16.mxu0 0
    %2438 = vmatpush1.bf16.msra.mxu0 0
    %2439 = vmatprep.subr.bf16.mxu0 0
    %2440 = vmatpush1.bf16.msra.mxu0 0
    %2441 = vmatprep.subr.bf16.mxu0 0
    %2442 = vmatpush1.bf16.msra.mxu0 0
    %2443 = vmatprep.subr.bf16.mxu0 0
    %2444 = vmatpush1.bf16.msra.mxu0 0
    %2445 = vmatprep.mubr.bf16.mxu0 0
    %2446 = vmatmul.mubr.bf16.gmra.mrb[0].mxu0 %v2411
    %v2447 = vpop.f32.mrb[0].mxu0
    %v2448 = vadd.f32 0.0, %v2447
    %v2449 = vpop.f32.mrb[0].mxu0
    %v2450 = vpop.f32.mrb[0].mxu0
    %v2451 = vpop.f32.mrb[0].mxu0
    %2452 = vdwg.mxu0
    %v2453 = vmul.f32 %v2274, %v2448
    %v2454 = vpack.c.bf16 %v2453, %v2453
    %v2456 = vsel %vm2341, %v2454, 0
    %2458 = vmatprep.subr.bf16.mxu0 0
    %2459 = vmatpush1.bf16.msra.mxu0 %v2456
    %2460 = vmatprep.subr.bf16.mxu0 0
    %2461 = vmatpush1.bf16.msra.mxu0 0
    %2462 = vmatprep.subr.bf16.mxu0 0
    %2463 = vmatpush1.bf16.msra.mxu0 0
    %2464 = vmatprep.subr.bf16.mxu0 0
    %2465 = vmatpush1.bf16.msra.mxu0 0
    %2466 = vmatprep.subr.bf16.mxu0 0
    %2467 = vmatpush1.bf16.msra.mxu0 0
    %2468 = vmatprep.subr.bf16.mxu0 0
    %2469 = vmatpush1.bf16.msra.mxu0 0
    %2470 = vmatprep.subr.bf16.mxu0 0
    %2471 = vmatpush1.bf16.msra.mxu0 0
    %2472 = vmatprep.subr.bf16.mxu0 0
    %2473 = vmatpush1.bf16.msra.mxu0 0
    %2474 = vmatprep.subr.bf16.mxu0 0
    %2475 = vmatpush1.bf16.msra.mxu0 0
    %2476 = vmatprep.subr.bf16.mxu0 0
    %2477 = vmatpush1.bf16.msra.mxu0 0
    %2478 = vmatprep.subr.bf16.mxu0 0
    %2479 = vmatpush1.bf16.msra.mxu0 0
    %2480 = vmatprep.subr.bf16.mxu0 0
    %2481 = vmatpush1.bf16.msra.mxu0 0
    %2482 = vmatprep.subr.bf16.mxu0 0
    %2483 = vmatpush1.bf16.msra.mxu0 0
    %2484 = vmatprep.subr.bf16.mxu0 0
    %2485 = vmatpush1.bf16.msra.mxu0 0
    %2486 = vmatprep.subr.bf16.mxu0 0
    %2487 = vmatpush1.bf16.msra.mxu0 0
    %2488 = vmatprep.subr.bf16.mxu0 0
    %2489 = vmatpush1.bf16.msra.mxu0 0
    %2490 = vmatprep.mubr.bf16.mxu0 0
    %2491 = vmatmul.mubr.bf16.gmra.mrb[0].mxu0 %v2339
    %v2492 = vpop.f32.mrb[0].mxu0
    %v2493 = vadd.f32 %v2453, %v2492
    %v2494 = vpop.f32.mrb[0].mxu0
    %v2495 = vpop.f32.mrb[0].mxu0
    %v2496 = vpop.f32.mrb[0].mxu0
    %2497 = vdwg.mxu0
    %v2498 = vmul.f32 %v2274, %v2493
    %v2499 = vld [vmem:[#allocation8 + $0xd] sm:$0x1]
    %v2500 = vlaneseq
    %v2501 = vshrl.u32 %v2500, 7
    %v2502 = vsub.s32 0, %v2501
    %v2503 = vrot.slane %v2499, %v2502
    %v2504 = vadd.f32 %v2498, %v2503
    %v2505 = vmax.f32 %v2504, 0.0
    %v2506 = vld [vmem:[#allocation30] sm:$0xf]
    %v2507 = vld [vmem:[#allocation30 + $0x4] sm:$0xf]
    %v2508 = vld [vmem:[#allocation30 + $0x8] sm:$0xf]
    %v2509 = vld [vmem:[#allocation30 + $0xc] sm:$0xf]
    %v2510 = vpack.c.bf16 %v2505, %v2505
    %v2515 = vunpack.c.l.b16 %v2506
    %v2516 = vunpack.c.l.b16 %v2507
    %v2517 = vunpack.c.l.b16 %v2508
    %v2518 = vunpack.c.l.b16 %v2509
    %v2519 = vpack.c.b16 %v2516, %v2515
    %v2520 = vpack.c.b16 %v2518, %v2517
    %v2524 = vsel %vm479, %v2510, 0
    %2526 = vmatprep.subr.bf16.mxu0 0
    %2527 = vmatpush1.bf16.msra.mxu0 %v2519
    %2528 = vmatprep.subr.bf16.mxu0 0
    %2529 = vmatpush1.bf16.msra.mxu0 %v2520
    %2530 = vmatprep.subr.bf16.mxu0 0
    %2531 = vmatpush1.bf16.msra.mxu0 0
    %2532 = vmatprep.subr.bf16.mxu0 0
    %2533 = vmatpush1.bf16.msra.mxu0 0
    %2534 = vmatprep.subr.bf16.mxu0 0
    %2535 = vmatpush1.bf16.msra.mxu0 0
    %2536 = vmatprep.subr.bf16.mxu0 0
    %2537 = vmatpush1.bf16.msra.mxu0 0
    %2538 = vmatprep.subr.bf16.mxu0 0
    %2539 = vmatpush1.bf16.msra.mxu0 0
    %2540 = vmatprep.subr.bf16.mxu0 0
    %2541 = vmatpush1.bf16.msra.mxu0 0
    %2542 = vmatprep.subr.bf16.mxu0 0
    %2543 = vmatpush1.bf16.msra.mxu0 0
    %2544 = vmatprep.subr.bf16.mxu0 0
    %2545 = vmatpush1.bf16.msra.mxu0 0
    %2546 = vmatprep.subr.bf16.mxu0 0
    %2547 = vmatpush1.bf16.msra.mxu0 0
    %2548 = vmatprep.subr.bf16.mxu0 0
    %2549 = vmatpush1.bf16.msra.mxu0 0
    %2550 = vmatprep.subr.bf16.mxu0 0
    %2551 = vmatpush1.bf16.msra.mxu0 0
    %2552 = vmatprep.subr.bf16.mxu0 0
    %2553 = vmatpush1.bf16.msra.mxu0 0
    %2554 = vmatprep.subr.bf16.mxu0 0
    %2555 = vmatpush1.bf16.msra.mxu0 0
    %2556 = vmatprep.subr.bf16.mxu0 0
    %2557 = vmatpush1.bf16.msra.mxu0 0
    %2558 = vmatprep.mubr.bf16.mxu0 0
    %2559 = vmatmul.mubr.bf16.gmra.mrb[0].mxu0 %v2524
    %v2560 = vpop.f32.mrb[0].mxu0
    %v2561 = vadd.f32 0.0, %v2560
    %v2562 = vpop.f32.mrb[0].mxu0
    %v2563 = vpop.f32.mrb[0].mxu0
    %v2564 = vpop.f32.mrb[0].mxu0
    %2565 = vdwg.mxu0
    %v2566 = vmul.f32 %v2274, %v2561
    %v2567 = vpack.c.bf16 %v2566, %v2566
    %v2569 = vsel %vm2341, %v2567, 0
    %2571 = vmatprep.subr.bf16.mxu0 0
    %2572 = vmatpush1.bf16.msra.mxu0 %v2569
    %2573 = vmatprep.subr.bf16.mxu0 0
    %2574 = vmatpush1.bf16.msra.mxu0 0
    %2575 = vmatprep.subr.bf16.mxu0 0
    %2576 = vmatpush1.bf16.msra.mxu0 0
    %2577 = vmatprep.subr.bf16.mxu0 0
    %2578 = vmatpush1.bf16.msra.mxu0 0
    %2579 = vmatprep.subr.bf16.mxu0 0
    %2580 = vmatpush1.bf16.msra.mxu0 0
    %2581 = vmatprep.subr.bf16.mxu0 0
    %2582 = vmatpush1.bf16.msra.mxu0 0
    %2583 = vmatprep.subr.bf16.mxu0 0
    %2584 = vmatpush1.bf16.msra.mxu0 0
    %2585 = vmatprep.subr.bf16.mxu0 0
    %2586 = vmatpush1.bf16.msra.mxu0 0
    %2587 = vmatprep.subr.bf16.mxu0 0
    %2588 = vmatpush1.bf16.msra.mxu0 0
    %2589 = vmatprep.subr.bf16.mxu0 0
    %2590 = vmatpush1.bf16.msra.mxu0 0
    %2591 = vmatprep.subr.bf16.mxu0 0
    %2592 = vmatpush1.bf16.msra.mxu0 0
    %2593 = vmatprep.subr.bf16.mxu0 0
    %2594 = vmatpush1.bf16.msra.mxu0 0
    %2595 = vmatprep.subr.bf16.mxu0 0
    %2596 = vmatpush1.bf16.msra.mxu0 0
    %2597 = vmatprep.subr.bf16.mxu0 0
    %2598 = vmatpush1.bf16.msra.mxu0 0
    %2599 = vmatprep.subr.bf16.mxu0 0
    %2600 = vmatpush1.bf16.msra.mxu0 0
    %2601 = vmatprep.subr.bf16.mxu0 0
    %2602 = vmatpush1.bf16.msra.mxu0 0
    %2603 = vmatprep.mubr.bf16.mxu0 0
    %2604 = vmatmul.mubr.bf16.gmra.mrb[0].mxu0 %v2339
    %v2605 = vpop.f32.mrb[0].mxu0
    %v2606 = vadd.f32 %v2566, %v2605
    %v2607 = vpop.f32.mrb[0].mxu0
    %v2608 = vpop.f32.mrb[0].mxu0
    %v2609 = vpop.f32.mrb[0].mxu0
    %2610 = vdwg.mxu0
    %v2611 = vmul.f32 %v2274, %v2606
    %v2612 = vld [vmem:[#allocation8 + $0xe] sm:$0x1]
    %v2613 = vlaneseq
    %v2614 = vshrl.u32 %v2613, 7
    %v2615 = vsub.s32 0, %v2614
    %v2616 = vrot.slane %v2612, %v2615
    %v2617 = vadd.f32 %v2611, %v2616
    %v2618 = vmax.f32 %v2617, 0.0
    %v2619 = vpack.c.bf16 %v2618, %v2618
    %v2620 = vsel %vm1997, %v2028, 0
    %v2623 = vsel %vm2341, %v2619, 0
    %2625 = vmatprep.subr.bf16.mxu0 0
    %2626 = vmatpush1.bf16.msra.mxu0 %v2623
    %2627 = vmatprep.subr.bf16.mxu0 0
    %2628 = vmatpush1.bf16.msra.mxu0 0
    %2629 = vmatprep.subr.bf16.mxu0 0
    %2630 = vmatpush1.bf16.msra.mxu0 0
    %2631 = vmatprep.subr.bf16.mxu0 0
    %2632 = vmatpush1.bf16.msra.mxu0 0
    %2633 = vmatprep.subr.bf16.mxu0 0
    %2634 = vmatpush1.bf16.msra.mxu0 0
    %2635 = vmatprep.subr.bf16.mxu0 0
    %2636 = vmatpush1.bf16.msra.mxu0 0
    %2637 = vmatprep.subr.bf16.mxu0 0
    %2638 = vmatpush1.bf16.msra.mxu0 0
    %2639 = vmatprep.subr.bf16.mxu0 0
    %2640 = vmatpush1.bf16.msra.mxu0 0
    %2641 = vmatprep.subr.bf16.mxu0 0
    %2642 = vmatpush1.bf16.msra.mxu0 0
    %2643 = vmatprep.subr.bf16.mxu0 0
    %2644 = vmatpush1.bf16.msra.mxu0 0
    %2645 = vmatprep.subr.bf16.mxu0 0
    %2646 = vmatpush1.bf16.msra.mxu0 0
    %2647 = vmatprep.subr.bf16.mxu0 0
    %2648 = vmatpush1.bf16.msra.mxu0 0
    %2649 = vmatprep.subr.bf16.mxu0 0
    %2650 = vmatpush1.bf16.msra.mxu0 0
    %2651 = vmatprep.subr.bf16.mxu0 0
    %2652 = vmatpush1.bf16.msra.mxu0 0
    %2653 = vmatprep.subr.bf16.mxu0 0
    %2654 = vmatpush1.bf16.msra.mxu0 0
    %2655 = vmatprep.subr.bf16.mxu0 0
    %2656 = vmatpush1.bf16.msra.mxu0 0
    %2657 = vmatprep.mubr.bf16.mxu0 0
    %2658 = vmatmul.mubr.bf16.gmra.mrb[0].mxu0 %v2620
    %v2659 = vpop.f32.mrb[0].mxu0
    %v2660 = vadd.f32 0.0, %v2659
    %v2661 = vpop.f32.mrb[0].mxu0
    %v2662 = vpop.f32.mrb[0].mxu0
    %v2663 = vpop.f32.mrb[0].mxu0
    %2664 = vdwg.mxu0
    %v2665 = vpack.c.bf16 %v2660, %v2660
    %v2667 = vsel %vm355, %v1075, 0
    %v2670 = vsel %vm359, %v2665, 0
    %2672 = vmatprep.subr.bf16.mxu0 0
    %2673 = vmatpush1.bf16.msra.mxu0 %v2670
    %2674 = vmatprep.subr.bf16.mxu0 0
    %2675 = vmatpush1.bf16.msra.mxu0 0
    %2676 = vmatprep.subr.bf16.mxu0 0
    %2677 = vmatpush1.bf16.msra.mxu0 0
    %2678 = vmatprep.subr.bf16.mxu0 0
    %2679 = vmatpush1.bf16.msra.mxu0 0
    %2680 = vmatprep.subr.bf16.mxu0 0
    %2681 = vmatpush1.bf16.msra.mxu0 0
    %2682 = vmatprep.subr.bf16.mxu0 0
    %2683 = vmatpush1.bf16.msra.mxu0 0
    %2684 = vmatprep.subr.bf16.mxu0 0
    %2685 = vmatpush1.bf16.msra.mxu0 0
    %2686 = vmatprep.subr.bf16.mxu0 0
    %2687 = vmatpush1.bf16.msra.mxu0 0
    %2688 = vmatprep.subr.bf16.mxu0 0
    %2689 = vmatpush1.bf16.msra.mxu0 0
    %2690 = vmatprep.subr.bf16.mxu0 0
    %2691 = vmatpush1.bf16.msra.mxu0 0
    %2692 = vmatprep.subr.bf16.mxu0 0
    %2693 = vmatpush1.bf16.msra.mxu0 0
    %2694 = vmatprep.subr.bf16.mxu0 0
    %2695 = vmatpush1.bf16.msra.mxu0 0
    %2696 = vmatprep.subr.bf16.mxu0 0
    %2697 = vmatpush1.bf16.msra.mxu0 0
    %2698 = vmatprep.subr.bf16.mxu0 0
    %2699 = vmatpush1.bf16.msra.mxu0 0
    %2700 = vmatprep.subr.bf16.mxu0 0
    %2701 = vmatpush1.bf16.msra.mxu0 0
    %2702 = vmatprep.subr.bf16.mxu0 0
    %2703 = vmatpush1.bf16.msra.mxu0 0
    %2704 = vmatprep.mubr.bf16.mxu0 0
    %2705 = vmatmul.mubr.bf16.gmra.mrb[0].mxu0 %v2667
    %v2706 = vpop.f32.mrb[0].mxu0
    %v2707 = vadd.f32 0.0, %v2706
    %v2708 = vpop.f32.mrb[0].mxu0
    %v2709 = vpop.f32.mrb[0].mxu0
    %v2710 = vadd.f32 0.0, %v2709
    %v2711 = vpop.f32.mrb[0].mxu0
    %2712 = vdwg.mxu0
    %v2713 = vld [vmem:[#allocation32] sm:$0xf]
    %v2714 = vld [vmem:[#allocation32 + $0x4] sm:$0xf]
    %v2715 = vld [vmem:[#allocation32 + $0x8] sm:$0xf]
    %v2716 = vld [vmem:[#allocation32 + $0xc] sm:$0xf]
    %v2717 = vpack.c.bf16 %v2710, %v2707
    %v2718 = vld [vmem:[#allocation8 + $0xf] sm:$0x1]
    %v2719 = vlaneseq
    %v2720 = vshrl.u32 %v2719, 7
    %v2721 = vsub.s32 0, %v2720
    %v2722 = vrot.slane %v2718, %v2721
    %v2727 = vunpack.c.l.b16 %v2713
    %v2728 = vunpack.c.l.b16 %v2714
    %v2729 = vunpack.c.l.b16 %v2715
    %v2730 = vunpack.c.l.b16 %v2716
    %v2731 = vpack.c.b16 %v2728, %v2727
    %v2732 = vpack.c.b16 %v2730, %v2729
    %v2736 = vsel %vm479, %v2717, 0
    %2738 = vmatprep.subr.bf16.mxu0 0
    %2739 = vmatpush1.bf16.msra.mxu0 %v2731
    %2740 = vmatprep.subr.bf16.mxu0 0
    %2741 = vmatpush1.bf16.msra.mxu0 %v2732
    %2742 = vmatprep.subr.bf16.mxu0 0
    %2743 = vmatpush1.bf16.msra.mxu0 0
    %2744 = vmatprep.subr.bf16.mxu0 0
    %2745 = vmatpush1.bf16.msra.mxu0 0
    %2746 = vmatprep.subr.bf16.mxu0 0
    %2747 = vmatpush1.bf16.msra.mxu0 0
    %2748 = vmatprep.subr.bf16.mxu0 0
    %2749 = vmatpush1.bf16.msra.mxu0 0
    %2750 = vmatprep.subr.bf16.mxu0 0
    %2751 = vmatpush1.bf16.msra.mxu0 0
    %2752 = vmatprep.subr.bf16.mxu0 0
    %2753 = vmatpush1.bf16.msra.mxu0 0
    %2754 = vmatprep.subr.bf16.mxu0 0
    %2755 = vmatpush1.bf16.msra.mxu0 0
    %2756 = vmatprep.subr.bf16.mxu0 0
    %2757 = vmatpush1.bf16.msra.mxu0 0
    %2758 = vmatprep.subr.bf16.mxu0 0
    %2759 = vmatpush1.bf16.msra.mxu0 0
    %2760 = vmatprep.subr.bf16.mxu0 0
    %2761 = vmatpush1.bf16.msra.mxu0 0
    %2762 = vmatprep.subr.bf16.mxu0 0
    %2763 = vmatpush1.bf16.msra.mxu0 0
    %2764 = vmatprep.subr.bf16.mxu0 0
    %2765 = vmatpush1.bf16.msra.mxu0 0
    %2766 = vmatprep.subr.bf16.mxu0 0
    %2767 = vmatpush1.bf16.msra.mxu0 0
    %2768 = vmatprep.subr.bf16.mxu0 0
    %2769 = vmatpush1.bf16.msra.mxu0 0
    %2770 = vmatprep.mubr.bf16.mxu0 0
    %2771 = vmatmul.mubr.bf16.gmra.mrb[0].mxu0 %v2736
    %v2772 = vpop.f32.mrb[0].mxu0
    %v2773 = vadd.f32 %v2722, %v2772
    %v2774 = vpop.f32.mrb[0].mxu0
    %v2775 = vpop.f32.mrb[0].mxu0
    %v2776 = vadd.f32 %v2722, %v2775
    %v2777 = vpop.f32.mrb[0].mxu0
    %2778 = vdwg.mxu0
    %v2779 = vmax.f32 %v2773, 0.0
    %v2780 = vmax.f32 %v2776, 0.0
    %v2781 = vld [vmem:[#allocation33] sm:$0xf]
    %v2782 = vld [vmem:[#allocation33 + $0x4] sm:$0xf]
    %v2783 = vld [vmem:[#allocation33 + $0x8] sm:$0xf]
    %v2784 = vld [vmem:[#allocation33 + $0xc] sm:$0xf]
    %v2785 = vpack.c.bf16 %v2780, %v2779
    %v2786 = vld [vmem:[#allocation8 + $0x10] sm:$0x1]
    %v2787 = vlaneseq
    %v2788 = vshrl.u32 %v2787, 7
    %v2789 = vsub.s32 0, %v2788
    %v2790 = vrot.slane %v2786, %v2789
    %v2795 = vunpack.c.l.b16 %v2781
    %v2796 = vunpack.c.l.b16 %v2782
    %v2797 = vunpack.c.l.b16 %v2783
    %v2798 = vunpack.c.l.b16 %v2784
    %v2799 = vpack.c.b16 %v2796, %v2795
    %v2800 = vpack.c.b16 %v2798, %v2797
    %v2804 = vsel %vm479, %v2785, 0
    %2806 = vmatprep.subr.bf16.mxu0 0
    %2807 = vmatpush1.bf16.msra.mxu0 %v2799
    %2808 = vmatprep.subr.bf16.mxu0 0
    %2809 = vmatpush1.bf16.msra.mxu0 %v2800
    %2810 = vmatprep.subr.bf16.mxu0 0
    %2811 = vmatpush1.bf16.msra.mxu0 0
    %2812 = vmatprep.subr.bf16.mxu0 0
    %2813 = vmatpush1.bf16.msra.mxu0 0
    %2814 = vmatprep.subr.bf16.mxu0 0
    %2815 = vmatpush1.bf16.msra.mxu0 0
    %2816 = vmatprep.subr.bf16.mxu0 0
    %2817 = vmatpush1.bf16.msra.mxu0 0
    %2818 = vmatprep.subr.bf16.mxu0 0
    %2819 = vmatpush1.bf16.msra.mxu0 0
    %2820 = vmatprep.subr.bf16.mxu0 0
    %2821 = vmatpush1.bf16.msra.mxu0 0
    %2822 = vmatprep.subr.bf16.mxu0 0
    %2823 = vmatpush1.bf16.msra.mxu0 0
    %2824 = vmatprep.subr.bf16.mxu0 0
    %2825 = vmatpush1.bf16.msra.mxu0 0
    %2826 = vmatprep.subr.bf16.mxu0 0
    %2827 = vmatpush1.bf16.msra.mxu0 0
    %2828 = vmatprep.subr.bf16.mxu0 0
    %2829 = vmatpush1.bf16.msra.mxu0 0
    %2830 = vmatprep.subr.bf16.mxu0 0
    %2831 = vmatpush1.bf16.msra.mxu0 0
    %2832 = vmatprep.subr.bf16.mxu0 0
    %2833 = vmatpush1.bf16.msra.mxu0 0
    %2834 = vmatprep.subr.bf16.mxu0 0
    %2835 = vmatpush1.bf16.msra.mxu0 0
    %2836 = vmatprep.subr.bf16.mxu0 0
    %2837 = vmatpush1.bf16.msra.mxu0 0
    %2838 = vmatprep.mubr.bf16.mxu0 0
    %2839 = vmatmul.mubr.bf16.gmra.mrb[0].mxu0 %v2804
    %v2840 = vpop.f32.mrb[0].mxu0
    %v2841 = vadd.f32 %v2790, %v2840
    %v2842 = vpop.f32.mrb[0].mxu0
    %v2843 = vpop.f32.mrb[0].mxu0
    %v2844 = vadd.f32 %v2790, %v2843
    %v2845 = vpop.f32.mrb[0].mxu0
    %2846 = vdwg.mxu0
    %2847 = vst [vmem:[#allocation35] sm:$0xff] %v2841
    %2848 = vst [vmem:[#allocation35 + $0x8] sm:$0xff] %v2844
    %v2849 = vadd.f32 %v2269, 0.0
    %s2850 = vtos %v2849
    %s2851 = scalar_lea.smem [#allocation36], 0
    %2852 = sst [smem:[%s2851]] %s2850
    %v2853 = vadd.f32 %v2027, 0.0
    %s2854 = vtos %v2853
    %s2855 = scalar_lea.smem [#allocation36], 1
    %2856 = sst [smem:[%s2855]] %s2854
    // Predicated region
    $region162: #{tpu_custom_call.1} parent=1 // pred_check
      _
    $region163: #{tpu_custom_call.1} parent=1 // pred_check_branch
      %2858 = sbr.rel (0) target = $region165
    $region164: #{tpu_custom_call.1} parent=1 // pred_region
      %s2860 = ssub.s32 256, 256
      %2861 = vsyncadd [#allocation4], %s2860
      %s2862 = sshll.u32 [#allocation35], 4
      %s2863 = int_to_ptr.vmem [resolvable:$true] %s2862
      %2868 = dma.vmem_to_hbm [thread:$0]  %s2863, 256, %s20, [#allocation4], 128, 128, 8
    $region165: #{tpu_custom_call.1} parent=1 // pred_fallthru
      _
    // Predicated region
    $region166: #{tpu_custom_call.1} parent=1 // pred_check
      _
    $region167: #{tpu_custom_call.1} parent=1 // pred_check_branch
      %2870 = sbr.rel (0) target = $region169
    $region168: #{tpu_custom_call.1} parent=1 // pred_region
      %s2872 = ssub.s32 16, 16
      %2873 = vsyncadd [#allocation5], %s2872
      %2876 = dma.smem_to_hbm [#allocation36], 16, %s21, [#allocation5]
    $region169: #{tpu_custom_call.1} parent=1 // pred_fallthru
      _
    // Predicated region
    $region170: #{tpu_custom_call.1} parent=1 // pred_check
      _
    $region171: #{tpu_custom_call.1} parent=1 // pred_check_branch
      %2878 = sbr.rel (0) target = $region173
    $region172: #{tpu_custom_call.1} parent=1 // pred_region
      %2879 = dma.done [#allocation4], 256
    $region173: #{tpu_custom_call.1} parent=1 // pred_fallthru
      _
    // Predicated region
    $region174: #{tpu_custom_call.1} parent=1 // pred_check
      _
    $region175: #{tpu_custom_call.1} parent=1 // pred_check_branch
      %2881 = sbr.rel (0) target = $region177
    $region176: #{tpu_custom_call.1} parent=1 // pred_region
      %2882 = dma.done [#allocation5], 16
    $region177: #{tpu_custom_call.1} parent=1 // pred_fallthru
      _
    %2883 = sfence
    %2884 = vsyncpa [#allocation3], 1
    %2885 = vsyncpa [#allocation7], 1
    %2886 = vsyncpa [#allocation10], 1
    %2887 = vsyncpa [#allocation13], 1
    %2888 = vsyncpa [#allocation16], 1
    %2889 = vsyncpa [#allocation19], 1
    %2890 = vsyncpa [#allocation22], 1
    %2891 = vsyncpa [#allocation25], 1
    %2892 = vsyncpa [#allocation28], 1
    %2893 = vsyncpa [#allocation31], 1
    %2894 = vsyncpa [#allocation34], 1
    %2895 = vsyncpa [#allocation4], 1
    %2896 = vsyncpa [#allocation5], 1

</llo_original>
